<compile_context>
chip_gen: v7x
topology: tpu7x:2x2x1
jax: 0.10.0
libtpu: 0.0.40
codegen_flags: <defaults>
</compile_context>

<pallas_src>
import math
import functools

import jax
import jax.numpy as jnp
from jax.experimental import pallas as pl
from jax.experimental.pallas import tpu as pltpu


# ----------------------------- kernel helpers -----------------------------

def _layernorm(x, gamma, beta, eps=1e-5):
    mu = jnp.mean(x, axis=-1, keepdims=True)
    xc = x - mu
    var = jnp.mean(xc * xc, axis=-1, keepdims=True)
    return xc * jax.lax.rsqrt(var + eps) * gamma + beta


# --------------------------------- kernel ---------------------------------

def fused_transformer_kernel(
        # constant (layer-independent) inputs
        src_ref, pe_ref, mask_ref, w_in_ref, b_in_ref,
        # per-layer (stacked, indexed by the layer grid axis)
        ln1_g_ref, ln1_b_ref,
        wq_ref, bq_ref, wk_ref, bk_ref, wv_ref, bv_ref,
        wo_ref, bo_ref,
        ln2_g_ref, ln2_b_ref,
        w1_ref, b1_ref, w2_ref, b2_ref,
        # final norm
        final_g_ref, final_b_ref,
        # output
        o_ref,
        # scratch: activation resident across layer iterations
        x_sc,
        *, nhead, batch, seq):
    layer = pl.program_id(0)

    # ---- embed + positional encoding (first grid step only) ----
    @pl.when(layer == 0)
    def _embed():
        x0 = jnp.dot(src_ref[...], w_in_ref[...],
                     preferred_element_type=jnp.float32) + b_in_ref[...]
        x_sc[...] = x0 + pe_ref[...]

    x = x_sc[...]                                  # (B*T, D), f32, VMEM-resident
    D = x.shape[-1]
    dh = D // nhead
    mask = mask_ref[...]                           # (T, T) additive float mask

    # ---- self-attention block (norm_first) ----
    xn = _layernorm(x, ln1_g_ref[0], ln1_b_ref[0])
    # 1/sqrt(dh) attention scale is pre-folded into Wq / bq at pack time.
    q = jnp.dot(xn, wq_ref[0], preferred_element_type=jnp.float32) + bq_ref[0]
    k = jnp.dot(xn, wk_ref[0], preferred_element_type=jnp.float32) + bk_ref[0]
    v = jnp.dot(xn, wv_ref[0], preferred_element_type=jnp.float32) + bv_ref[0]

    batch_ctx = []
    for b in range(batch):                         # static loop over batches
        rs = slice(b * seq, (b + 1) * seq)         # sublane-aligned row slice
        qb, kb, vb = q[rs], k[rs], v[rs]
        head_ctx = []
        for h in range(nhead):                     # static loop over heads
            cs = slice(h * dh, (h + 1) * dh)
            s = jnp.dot(qb[:, cs], kb[:, cs].T,
                        preferred_element_type=jnp.float32) + mask
            s = s - jnp.max(s, axis=-1, keepdims=True)
            p = jnp.exp(s)
            p = p * pl.reciprocal(jnp.sum(p, axis=-1, keepdims=True),
                                  approx=True)     # EUP reciprocal, not VALU div
            head_ctx.append(jnp.dot(p, vb[:, cs],
                                    preferred_element_type=jnp.float32))
        batch_ctx.append(jnp.concatenate(head_ctx, axis=-1))   # (T, D)
    ctx = jnp.concatenate(batch_ctx, axis=0)                    # (B*T, D)

    # single full-K output projection for all heads / batches at once
    x = x + jnp.dot(ctx, wo_ref[0], preferred_element_type=jnp.float32) + bo_ref[0]

    # ---- feed-forward block (norm_first) ----
    xn2 = _layernorm(x, ln2_g_ref[0], ln2_b_ref[0])
    h1 = jnp.maximum(
        jnp.dot(xn2, w1_ref[0], preferred_element_type=jnp.float32) + b1_ref[0],
        0.0)
    x = x + jnp.dot(h1, w2_ref[0], preferred_element_type=jnp.float32) + b2_ref[0]
    x_sc[...] = x

    # ---- final LayerNorm + store (last grid step only) ----
    @pl.when(layer == pl.num_programs(0) - 1)
    def _finalize():
        o_ref[...] = _layernorm(x, final_g_ref[...], final_b_ref[...])


# --------------------------------- wrapper ---------------------------------

def pack_params(params, nhead):
    """Transpose / split / stack / pre-scale PyTorch-layout params for the kernel."""
    D = params['w_in'].shape[0]
    dh = D // nhead
    scale = 1.0 / math.sqrt(dh)
    layers = params['layers']

    def stack(key):
        return jnp.stack([lp[key] for lp in layers], axis=0)

    return {
        'w_in_t': params['w_in'].T,                                    # (d_in, D)
        'b_in': params['b_in'],                                        # (1, D)
        'final_g': params['final_g'],
        'final_b': params['final_b'],
        'ln1_g': stack('ln1_g'), 'ln1_b': stack('ln1_b'),              # (L,1,D)
        'ln2_g': stack('ln2_g'), 'ln2_b': stack('ln2_b'),
        # fold the 1/sqrt(dh) attention scale into the query projection
        'wq_t': jnp.stack([lp['in_w'][:D].T * scale for lp in layers]),  # (L,D,D)
        'wk_t': jnp.stack([lp['in_w'][D:2 * D].T for lp in layers]),
        'wv_t': jnp.stack([lp['in_w'][2 * D:].T for lp in layers]),
        'bq': jnp.stack([lp['in_b'][:, :D] * scale for lp in layers]),   # (L,1,D)
        'bk': jnp.stack([lp['in_b'][:, D:2 * D] for lp in layers]),
        'bv': jnp.stack([lp['in_b'][:, 2 * D:] for lp in layers]),
        'wo_t': jnp.stack([lp['out_w'].T for lp in layers]),            # (L,D,D)
        'bo': stack('out_b'),
        'w1_t': jnp.stack([lp['w1'].T for lp in layers]),                # (L,D,H)
        'b1': stack('b1'),
        'w2_t': jnp.stack([lp['w2'].T for lp in layers]),                # (L,H,D)
        'b2': stack('b2'),
    }


def transformer_forward(src, src_mask, params, nhead):
    B, T, d_in = src.shape
    D = params['w_in'].shape[0]
    L = len(params['layers'])
    d_hid = params['layers'][0]['w1'].shape[0]
    assert D % nhead == 0

    p = pack_params(params, nhead)
    src_flat = src.reshape(B * T, d_in)
    # PositionalEncoding quirk: pe indexed by batch (dim 0), broadcast over T.
    pe_rows = jnp.repeat(params['pe'][:B, 0, :], T, axis=0)            # (B*T, D)

    def full2(m, n):
        return pl.BlockSpec((m, n), lambda l: (0, 0))

    def per_layer(m, n):
        return pl.BlockSpec((1, m, n), lambda l: (l, 0, 0))

    kernel = functools.partial(fused_transformer_kernel,
                               nhead=nhead, batch=B, seq=T)

    out_flat = pl.pallas_call(
        kernel,
        out_shape=jax.ShapeDtypeStruct((B * T, D), jnp.float32),
        grid=(L,),
        in_specs=[
            full2(B * T, d_in),                         # src
            full2(B * T, D),                            # pe rows
            full2(T, T),                                # additive attn mask
            full2(d_in, D),                             # w_in^T
            full2(1, D),                                # b_in
            per_layer(1, D), per_layer(1, D),           # ln1 gamma/beta
            per_layer(D, D), per_layer(1, D),           # Wq^T (pre-scaled), bq
            per_layer(D, D), per_layer(1, D),           # Wk^T, bk
            per_layer(D, D), per_layer(1, D),           # Wv^T, bv
            per_layer(D, D), per_layer(1, D),           # Wo^T, bo
            per_layer(1, D), per_layer(1, D),           # ln2 gamma/beta
            per_layer(D, d_hid), per_layer(1, d_hid),   # W1^T, b1
            per_layer(d_hid, D), per_layer(1, D),       # W2^T, b2
            full2(1, D), full2(1, D),                   # final LN gamma/beta
        ],
        out_specs=full2(B * T, D),
        scratch_shapes=[pltpu.VMEM((B * T, D), jnp.float32)],
        compiler_params=pltpu.CompilerParams(
            dimension_semantics=("arbitrary",),          # layer axis is sequential
            vmem_limit_bytes=32 * 1024 * 1024),          # explicit, with headroom
    )(src_flat, pe_rows, src_mask,
      p['w_in_t'], p['b_in'],
      p['ln1_g'], p['ln1_b'],
      p['wq_t'], p['bq'], p['wk_t'], p['bk'], p['wv_t'], p['bv'],
      p['wo_t'], p['bo'],
      p['ln2_g'], p['ln2_b'],
      p['w1_t'], p['b1'], p['w2_t'], p['b2'],
      p['final_g'], p['final_b'])

    return out_flat.reshape(B, T, D)


# ----------------------------- parameter setup ------------------------------

def make_positional_encoding(d_model, max_len=5000):
    position = jnp.arange(max_len, dtype=jnp.float32)[:, None]
    div_term = jnp.exp(jnp.arange(0, d_model, 2, dtype=jnp.float32)
                       * (-math.log(10000.0) / d_model))
    angles = position * div_term                          # (max_len, d_model//2)
    pe = jnp.zeros((max_len, 1, d_model), dtype=jnp.float32)
    pe = pe.at[:, 0, 0::2].set(jnp.sin(angles))
    pe = pe.at[:, 0, 1::2].set(jnp.cos(angles)[:, :d_model // 2])
    return pe


def init_params(key, d_in, d_model, nhead, d_hid, nlayers):
    keys = jax.random.split(key, 2 + nlayers)

    def normal(k, shape, scale=0.05):
        return scale * jax.random.normal(k, shape, dtype=jnp.float32)

    params = {
        'w_in': normal(keys[0], (d_model, d_in)),
        'b_in': normal(keys[1], (1, d_model)),
        'pe': make_positional_encoding(d_model),
        'final_g': jnp.ones((1, d_model), jnp.float32),
        'final_b': jnp.zeros((1, d_model), jnp.float32),
        'layers': [],
    }
    for l in range(nlayers):
        lk = jax.random.split(keys[2 + l], 8)
        params['layers'].append({
            'ln1_g': jnp.ones((1, d_model), jnp.float32),
            'ln1_b': jnp.zeros((1, d_model), jnp.float32),
            'in_w': normal(lk[0], (3 * d_model, d_model)),
            'in_b': normal(lk[1], (1, 3 * d_model)),
            'out_w': normal(lk[2], (d_model, d_model)),
            'out_b': normal(lk[3], (1, d_model)),
            'ln2_g': jnp.ones((1, d_model), jnp.float32),
            'ln2_b': jnp.zeros((1, d_model), jnp.float32),
            'w1': normal(lk[4], (d_hid, d_model)),
            'b1': normal(lk[5], (1, d_hid)),
            'w2': normal(lk[6], (d_model, d_hid)),
            'b2': normal(lk[7], (1, d_model)),
        })
    return params


# --------------------------- pure-JAX reference -----------------------------

def _ref_ln(x, g, b, eps=1e-5):
    mu = jnp.mean(x, axis=-1, keepdims=True)
    var = jnp.mean((x - mu) ** 2, axis=-1, keepdims=True)
    return (x - mu) / jnp.sqrt(var + eps) * g + b


def reference_forward(src, src_mask, params, nhead):
    B, T, _ = src.shape
    x = src @ params['w_in'].T + params['b_in']
    x = x + params['pe'][:B, 0, :][:, None, :]
    D = x.shape[-1]
    dh = D // nhead
    for lp in params['layers']:
        xn = _ref_ln(x, lp['ln1_g'], lp['ln1_b'])
        qkv = xn @ lp['in_w'].T + lp['in_b']
        q, k, v = qkv[..., :D], qkv[..., D:2 * D], qkv[..., 2 * D:]
        q = q.reshape(B, T, nhead, dh).transpose(0, 2, 1, 3) / math.sqrt(dh)
        k = k.reshape(B, T, nhead, dh).transpose(0, 2, 1, 3)
        v = v.reshape(B, T, nhead, dh).transpose(0, 2, 1, 3)
        s = q @ k.transpose(0, 1, 3, 2) + src_mask
        p = jax.nn.softmax(s, axis=-1)
        o = (p @ v).transpose(0, 2, 1, 3).reshape(B, T, D)
        x = x + o @ lp['out_w'].T + lp['out_b']
        xn2 = _ref_ln(x, lp['ln2_g'], lp['ln2_b'])
        x = x + (jnp.maximum(xn2 @ lp['w1'].T + lp['b1'], 0.0) @ lp['w2'].T + lp['b2'])
    return _ref_ln(x, params['final_g'], params['final_b'])


# ----------------------------------- main ------------------------------------

if __name__ == "__main__":
    B, T = 2, 8
    d_in, d_model, nhead, d_hid, nlayers = 16, 32, 4, 64, 2

    key = jax.random.PRNGKey(0)
    k_src, k_par = jax.random.split(key)
    src = jax.random.normal(k_src, (B, T, d_in), dtype=jnp.float32)
    # additive float attention mask (causal), same convention as PyTorch attn_mask
    src_mask = jnp.where(jnp.triu(jnp.ones((T, T), dtype=bool), k=1),
                         -1e9, 0.0).astype(jnp.float32)

    params = init_params(k_par, d_in, d_model, nhead, d_hid, nlayers)

    out = transformer_forward(src, src_mask, params, nhead)
    out = jax.block_until_ready(out)

    ref = reference_forward(src, src_mask, params, nhead)
    assert out.shape == (B, T, d_model)
    # Slightly loosened tolerance: softmax normalization uses the approximate
    # EUP reciprocal (pl.reciprocal(..., approx=True)) vs. exact divide in ref.
    assert jnp.allclose(out, ref, atol=5e-3, rtol=5e-3)

    print("KERNEL_OK")
</pallas_src>

<mosaic_0001>
module attributes {stable_mosaic.version = 11 : i64} {
  func.func @fused_transformer_kernel(%arg0: i32, %arg1: memref<16x16xf32, #tpu.memory_space<vmem>>, %arg2: memref<16x32xf32, #tpu.memory_space<vmem>>, %arg3: memref<8x8xf32, #tpu.memory_space<vmem>>, %arg4: memref<16x32xf32, #tpu.memory_space<vmem>>, %arg5: memref<1x32xf32, #tpu.memory_space<vmem>>, %arg6: memref<1x1x32xf32, #tpu.memory_space<vmem>>, %arg7: memref<1x1x32xf32, #tpu.memory_space<vmem>>, %arg8: memref<1x32x32xf32, #tpu.memory_space<vmem>>, %arg9: memref<1x1x32xf32, #tpu.memory_space<vmem>>, %arg10: memref<1x32x32xf32, #tpu.memory_space<vmem>>, %arg11: memref<1x1x32xf32, #tpu.memory_space<vmem>>, %arg12: memref<1x32x32xf32, #tpu.memory_space<vmem>>, %arg13: memref<1x1x32xf32, #tpu.memory_space<vmem>>, %arg14: memref<1x32x32xf32, #tpu.memory_space<vmem>>, %arg15: memref<1x1x32xf32, #tpu.memory_space<vmem>>, %arg16: memref<1x1x32xf32, #tpu.memory_space<vmem>>, %arg17: memref<1x1x32xf32, #tpu.memory_space<vmem>>, %arg18: memref<1x32x64xf32, #tpu.memory_space<vmem>>, %arg19: memref<1x1x64xf32, #tpu.memory_space<vmem>>, %arg20: memref<1x64x32xf32, #tpu.memory_space<vmem>>, %arg21: memref<1x1x32xf32, #tpu.memory_space<vmem>>, %arg22: memref<1x32xf32, #tpu.memory_space<vmem>>, %arg23: memref<1x32xf32, #tpu.memory_space<vmem>>, %arg24: memref<16x32xf32, #tpu.memory_space<vmem>>, %arg25: memref<16x32xf32, #tpu.memory_space<vmem>>) attributes {dimension_semantics = [#tpu.dimension_semantics<arbitrary>], iteration_bounds = array<i64: 2>, scalar_prefetch = 0 : i64, scratch_operands = 1 : i64, tpu.core_type = #tpu.core_type<tc>, window_params = [{pipeline_mode = #tpu.pipeline_mode<synchronous>, transform_indices = @transform_0, window_bounds = array<i64: 16, 16>}, {pipeline_mode = #tpu.pipeline_mode<synchronous>, transform_indices = @transform_1, window_bounds = array<i64: 16, 32>}, {pipeline_mode = #tpu.pipeline_mode<synchronous>, transform_indices = @transform_2, window_bounds = array<i64: 8, 8>}, {pipeline_mode = #tpu.pipeline_mode<synchronous>, transform_indices = @transform_3, window_bounds = array<i64: 16, 32>}, {pipeline_mode = #tpu.pipeline_mode<synchronous>, transform_indices = @transform_4, window_bounds = array<i64: 1, 32>}, {transform_indices = @transform_5, window_bounds = array<i64: 1, 1, 32>}, {transform_indices = @transform_6, window_bounds = array<i64: 1, 1, 32>}, {transform_indices = @transform_7, window_bounds = array<i64: 1, 32, 32>}, {transform_indices = @transform_8, window_bounds = array<i64: 1, 1, 32>}, {transform_indices = @transform_9, window_bounds = array<i64: 1, 32, 32>}, {transform_indices = @transform_10, window_bounds = array<i64: 1, 1, 32>}, {transform_indices = @transform_11, window_bounds = array<i64: 1, 32, 32>}, {transform_indices = @transform_12, window_bounds = array<i64: 1, 1, 32>}, {transform_indices = @transform_13, window_bounds = array<i64: 1, 32, 32>}, {transform_indices = @transform_14, window_bounds = array<i64: 1, 1, 32>}, {transform_indices = @transform_15, window_bounds = array<i64: 1, 1, 32>}, {transform_indices = @transform_16, window_bounds = array<i64: 1, 1, 32>}, {transform_indices = @transform_17, window_bounds = array<i64: 1, 32, 64>}, {transform_indices = @transform_18, window_bounds = array<i64: 1, 1, 64>}, {transform_indices = @transform_19, window_bounds = array<i64: 1, 64, 32>}, {transform_indices = @transform_20, window_bounds = array<i64: 1, 1, 32>}, {pipeline_mode = #tpu.pipeline_mode<synchronous>, transform_indices = @transform_21, window_bounds = array<i64: 1, 32>}, {pipeline_mode = #tpu.pipeline_mode<synchronous>, transform_indices = @transform_22, window_bounds = array<i64: 1, 32>}, {pipeline_mode = #tpu.pipeline_mode<synchronous>, transform_indices = @transform_23, window_bounds = array<i64: 16, 32>}]} {
    %c0_i32 = arith.constant 0 : i32
    %0 = arith.cmpi eq, %arg0, %c0_i32 : i32
    %1 = arith.extui %0 : i1 to i32
    %c0_i32_0 = arith.constant 0 : i32
    %2 = arith.cmpi ne, %1, %c0_i32_0 : i32
    scf.if %2 {
      %c0_103 = arith.constant 0 : index
      %c0_104 = arith.constant 0 : index
      %248 = vector.load %arg1[%c0_103, %c0_104] : memref<16x16xf32, #tpu.memory_space<vmem>>, vector<16x16xf32>
      %c0_105 = arith.constant 0 : index
      %c0_106 = arith.constant 0 : index
      %249 = vector.load %arg4[%c0_105, %c0_106] : memref<16x32xf32, #tpu.memory_space<vmem>>, vector<16x32xf32>
      %cst_107 = arith.constant dense<0.000000e+00> : vector<16x32xf32>
      %250 = tpu.matmul %248, %249, %cst_107 {dimension_numbers = #tpu.dot_dimension_numbers<[1], [0], [0], [1], [0, 0, 1, 1], [], []>} : vector<16x16xf32>, vector<16x32xf32>, vector<16x32xf32> -> vector<16x32xf32>
      %c0_108 = arith.constant 0 : index
      %c0_109 = arith.constant 0 : index
      %251 = vector.load %arg5[%c0_108, %c0_109] : memref<1x32xf32, #tpu.memory_space<vmem>>, vector<1x32xf32>
      %252 = vector.broadcast %251 : vector<1x32xf32> to vector<16x32xf32>
      %253 = arith.addf %250, %252 : vector<16x32xf32>
      %c0_110 = arith.constant 0 : index
      %c0_111 = arith.constant 0 : index
      %254 = vector.load %arg2[%c0_110, %c0_111] : memref<16x32xf32, #tpu.memory_space<vmem>>, vector<16x32xf32>
      %255 = arith.addf %253, %254 : vector<16x32xf32>
      %c0_112 = arith.constant 0 : index
      %c0_113 = arith.constant 0 : index
      %256 = vector.load %arg25[%c0_112, %c0_113] : memref<16x32xf32, #tpu.memory_space<vmem>>, vector<16x32xf32>
      tpu.vector_store %arg25[%c0_112, %c0_113], %255 {strides = array<i32>} : memref<16x32xf32, #tpu.memory_space<vmem>>, vector<16x32xf32>,
    } else {
    }
    %c0 = arith.constant 0 : index
    %c0_1 = arith.constant 0 : index
    %3 = vector.load %arg25[%c0, %c0_1] : memref<16x32xf32, #tpu.memory_space<vmem>>, vector<16x32xf32>
    %c0_2 = arith.constant 0 : index
    %c0_3 = arith.constant 0 : index
    %4 = vector.load %arg3[%c0_2, %c0_3] : memref<8x8xf32, #tpu.memory_space<vmem>>, vector<8x8xf32>
    %c0_4 = arith.constant 0 : index
    %c0_5 = arith.constant 0 : index
    %c0_6 = arith.constant 0 : index
    %5 = vector.load %arg6[%c0_4, %c0_5, %c0_6] : memref<1x1x32xf32, #tpu.memory_space<vmem>>, vector<1x1x32xf32>
    %6 = vector.shape_cast %5 : vector<1x1x32xf32> to vector<1x32xf32>
    %c0_7 = arith.constant 0 : index
    %c0_8 = arith.constant 0 : index
    %c0_9 = arith.constant 0 : index
    %7 = vector.load %arg7[%c0_7, %c0_8, %c0_9] : memref<1x1x32xf32, #tpu.memory_space<vmem>>, vector<1x1x32xf32>
    %8 = vector.shape_cast %7 : vector<1x1x32xf32> to vector<1x32xf32>
    %cst = arith.constant dense<0.000000e+00> : vector<16xf32>
    %9 = vector.multi_reduction <add>, %3, %cst [1] : vector<16x32xf32> to vector<16xf32>
    %10 = vector.shape_cast %9 : vector<16xf32> to vector<16x1xf32>
    %cst_10 = arith.constant 3.200000e+01 : f32
    %11 = vector.broadcast %cst_10 : f32 to vector<16x1xf32>
    %12 = arith.divf %10, %11 : vector<16x1xf32>
    %13 = vector.broadcast %12 : vector<16x1xf32> to vector<16x32xf32>
    %14 = arith.subf %3, %13 : vector<16x32xf32>
    %15 = arith.mulf %14, %14 : vector<16x32xf32>
    %cst_11 = arith.constant dense<0.000000e+00> : vector<16xf32>
    %16 = vector.multi_reduction <add>, %15, %cst_11 [1] : vector<16x32xf32> to vector<16xf32>
    %17 = vector.shape_cast %16 : vector<16xf32> to vector<16x1xf32>
    %cst_12 = arith.constant 3.200000e+01 : f32
    %18 = vector.broadcast %cst_12 : f32 to vector<16x1xf32>
    %19 = arith.divf %17, %18 : vector<16x1xf32>
    %cst_13 = arith.constant 9.99999974E-6 : f32
    %20 = vector.broadcast %cst_13 : f32 to vector<16x1xf32>
    %21 = arith.addf %19, %20 : vector<16x1xf32>
    %22 = math.rsqrt %21 : vector<16x1xf32>
    %23 = vector.broadcast %22 : vector<16x1xf32> to vector<16x32xf32>
    %24 = arith.mulf %14, %23 : vector<16x32xf32>
    %25 = vector.broadcast %6 : vector<1x32xf32> to vector<16x32xf32>
    %26 = arith.mulf %24, %25 : vector<16x32xf32>
    %27 = vector.broadcast %8 : vector<1x32xf32> to vector<16x32xf32>
    %28 = arith.addf %26, %27 : vector<16x32xf32>
    %c0_14 = arith.constant 0 : index
    %c0_15 = arith.constant 0 : index
    %c0_16 = arith.constant 0 : index
    %29 = vector.load %arg8[%c0_14, %c0_15, %c0_16] : memref<1x32x32xf32, #tpu.memory_space<vmem>>, vector<1x32x32xf32>
    %30 = vector.shape_cast %29 : vector<1x32x32xf32> to vector<32x32xf32>
    %cst_17 = arith.constant dense<0.000000e+00> : vector<16x32xf32>
    %31 = tpu.matmul %28, %30, %cst_17 {dimension_numbers = #tpu.dot_dimension_numbers<[1], [0], [0], [1], [0, 0, 1, 1], [], []>} : vector<16x32xf32>, vector<32x32xf32>, vector<16x32xf32> -> vector<16x32xf32>
    %c0_18 = arith.constant 0 : index
    %c0_19 = arith.constant 0 : index
    %c0_20 = arith.constant 0 : index
    %32 = vector.load %arg9[%c0_18, %c0_19, %c0_20] : memref<1x1x32xf32, #tpu.memory_space<vmem>>, vector<1x1x32xf32>
    %33 = vector.shape_cast %32 : vector<1x1x32xf32> to vector<1x32xf32>
    %34 = vector.broadcast %33 : vector<1x32xf32> to vector<16x32xf32>
    %35 = arith.addf %31, %34 : vector<16x32xf32>
    %c0_21 = arith.constant 0 : index
    %c0_22 = arith.constant 0 : index
    %c0_23 = arith.constant 0 : index
    %36 = vector.load %arg10[%c0_21, %c0_22, %c0_23] : memref<1x32x32xf32, #tpu.memory_space<vmem>>, vector<1x32x32xf32>
    %37 = vector.shape_cast %36 : vector<1x32x32xf32> to vector<32x32xf32>
    %cst_24 = arith.constant dense<0.000000e+00> : vector<16x32xf32>
    %38 = tpu.matmul %28, %37, %cst_24 {dimension_numbers = #tpu.dot_dimension_numbers<[1], [0], [0], [1], [0, 0, 1, 1], [], []>} : vector<16x32xf32>, vector<32x32xf32>, vector<16x32xf32> -> vector<16x32xf32>
    %c0_25 = arith.constant 0 : index
    %c0_26 = arith.constant 0 : index
    %c0_27 = arith.constant 0 : index
    %39 = vector.load %arg11[%c0_25, %c0_26, %c0_27] : memref<1x1x32xf32, #tpu.memory_space<vmem>>, vector<1x1x32xf32>
    %40 = vector.shape_cast %39 : vector<1x1x32xf32> to vector<1x32xf32>
    %41 = vector.broadcast %40 : vector<1x32xf32> to vector<16x32xf32>
    %42 = arith.addf %38, %41 : vector<16x32xf32>
    %c0_28 = arith.constant 0 : index
    %c0_29 = arith.constant 0 : index
    %c0_30 = arith.constant 0 : index
    %43 = vector.load %arg12[%c0_28, %c0_29, %c0_30] : memref<1x32x32xf32, #tpu.memory_space<vmem>>, vector<1x32x32xf32>
    %44 = vector.shape_cast %43 : vector<1x32x32xf32> to vector<32x32xf32>
    %cst_31 = arith.constant dense<0.000000e+00> : vector<16x32xf32>
    %45 = tpu.matmul %28, %44, %cst_31 {dimension_numbers = #tpu.dot_dimension_numbers<[1], [0], [0], [1], [0, 0, 1, 1], [], []>} : vector<16x32xf32>, vector<32x32xf32>, vector<16x32xf32> -> vector<16x32xf32>
    %c0_32 = arith.constant 0 : index
    %c0_33 = arith.constant 0 : index
    %c0_34 = arith.constant 0 : index
    %46 = vector.load %arg13[%c0_32, %c0_33, %c0_34] : memref<1x1x32xf32, #tpu.memory_space<vmem>>, vector<1x1x32xf32>
    %47 = vector.shape_cast %46 : vector<1x1x32xf32> to vector<1x32xf32>
    %48 = vector.broadcast %47 : vector<1x32xf32> to vector<16x32xf32>
    %49 = arith.addf %45, %48 : vector<16x32xf32>
    %50 = vector.extract_strided_slice %35 {offsets = [0, 0], sizes = [8, 32], strides = [1, 1]} : vector<16x32xf32> to vector<8x32xf32>
    %51 = vector.extract_strided_slice %42 {offsets = [0, 0], sizes = [8, 32], strides = [1, 1]} : vector<16x32xf32> to vector<8x32xf32>
    %52 = vector.extract_strided_slice %49 {offsets = [0, 0], sizes = [8, 32], strides = [1, 1]} : vector<16x32xf32> to vector<8x32xf32>
    %53 = vector.extract_strided_slice %50 {offsets = [0, 0], sizes = [8, 8], strides = [1, 1]} : vector<8x32xf32> to vector<8x8xf32>
    %54 = vector.extract_strided_slice %51 {offsets = [0, 0], sizes = [8, 8], strides = [1, 1]} : vector<8x32xf32> to vector<8x8xf32>
    %55 = tpu.transpose %54, [1, 0] : vector<8x8xf32> -> vector<8x8xf32>
    %cst_35 = arith.constant dense<0.000000e+00> : vector<8x8xf32>
    %56 = tpu.matmul %53, %55, %cst_35 {dimension_numbers = #tpu.dot_dimension_numbers<[1], [0], [0], [1], [0, 0, 1, 1], [], []>} : vector<8x8xf32>, vector<8x8xf32>, vector<8x8xf32> -> vector<8x8xf32>
    %57 = arith.addf %56, %4 : vector<8x8xf32>
    %cst_36 = arith.constant dense<0xFF800000> : vector<8xf32>
    %58 = vector.multi_reduction <maximumf>, %57, %cst_36 [1] : vector<8x8xf32> to vector<8xf32>
    %59 = vector.shape_cast %58 : vector<8xf32> to vector<8x1xf32>
    %60 = vector.broadcast %59 : vector<8x1xf32> to vector<8x8xf32>
    %61 = arith.subf %57, %60 : vector<8x8xf32>
    %62 = math.exp %61 : vector<8x8xf32>
    %cst_37 = arith.constant dense<0.000000e+00> : vector<8xf32>
    %63 = vector.multi_reduction <add>, %62, %cst_37 [1] : vector<8x8xf32> to vector<8xf32>
    %64 = vector.shape_cast %63 : vector<8xf32> to vector<8x1xf32>
    %65 = tpu.reciprocal %64 {approx = true} : vector<8x1xf32> -> vector<8x1xf32>
    %66 = vector.broadcast %65 : vector<8x1xf32> to vector<8x8xf32>
    %67 = arith.mulf %62, %66 : vector<8x8xf32>
    %68 = vector.extract_strided_slice %52 {offsets = [0, 0], sizes = [8, 8], strides = [1, 1]} : vector<8x32xf32> to vector<8x8xf32>
    %cst_38 = arith.constant dense<0.000000e+00> : vector<8x8xf32>
    %69 = tpu.matmul %67, %68, %cst_38 {dimension_numbers = #tpu.dot_dimension_numbers<[1], [0], [0], [1], [0, 0, 1, 1], [], []>} : vector<8x8xf32>, vector<8x8xf32>, vector<8x8xf32> -> vector<8x8xf32>
    %70 = vector.extract_strided_slice %50 {offsets = [0, 8], sizes = [8, 8], strides = [1, 1]} : vector<8x32xf32> to vector<8x8xf32>
    %71 = vector.extract_strided_slice %51 {offsets = [0, 8], sizes = [8, 8], strides = [1, 1]} : vector<8x32xf32> to vector<8x8xf32>
    %72 = tpu.transpose %71, [1, 0] : vector<8x8xf32> -> vector<8x8xf32>
    %cst_39 = arith.constant dense<0.000000e+00> : vector<8x8xf32>
    %73 = tpu.matmul %70, %72, %cst_39 {dimension_numbers = #tpu.dot_dimension_numbers<[1], [0], [0], [1], [0, 0, 1, 1], [], []>} : vector<8x8xf32>, vector<8x8xf32>, vector<8x8xf32> -> vector<8x8xf32>
    %74 = arith.addf %73, %4 : vector<8x8xf32>
    %cst_40 = arith.constant dense<0xFF800000> : vector<8xf32>
    %75 = vector.multi_reduction <maximumf>, %74, %cst_40 [1] : vector<8x8xf32> to vector<8xf32>
    %76 = vector.shape_cast %75 : vector<8xf32> to vector<8x1xf32>
    %77 = vector.broadcast %76 : vector<8x1xf32> to vector<8x8xf32>
    %78 = arith.subf %74, %77 : vector<8x8xf32>
    %79 = math.exp %78 : vector<8x8xf32>
    %cst_41 = arith.constant dense<0.000000e+00> : vector<8xf32>
    %80 = vector.multi_reduction <add>, %79, %cst_41 [1] : vector<8x8xf32> to vector<8xf32>
    %81 = vector.shape_cast %80 : vector<8xf32> to vector<8x1xf32>
    %82 = tpu.reciprocal %81 {approx = true} : vector<8x1xf32> -> vector<8x1xf32>
    %83 = vector.broadcast %82 : vector<8x1xf32> to vector<8x8xf32>
    %84 = arith.mulf %79, %83 : vector<8x8xf32>
    %85 = vector.extract_strided_slice %52 {offsets = [0, 8], sizes = [8, 8], strides = [1, 1]} : vector<8x32xf32> to vector<8x8xf32>
    %cst_42 = arith.constant dense<0.000000e+00> : vector<8x8xf32>
    %86 = tpu.matmul %84, %85, %cst_42 {dimension_numbers = #tpu.dot_dimension_numbers<[1], [0], [0], [1], [0, 0, 1, 1], [], []>} : vector<8x8xf32>, vector<8x8xf32>, vector<8x8xf32> -> vector<8x8xf32>
    %87 = vector.extract_strided_slice %50 {offsets = [0, 16], sizes = [8, 8], strides = [1, 1]} : vector<8x32xf32> to vector<8x8xf32>
    %88 = vector.extract_strided_slice %51 {offsets = [0, 16], sizes = [8, 8], strides = [1, 1]} : vector<8x32xf32> to vector<8x8xf32>
    %89 = tpu.transpose %88, [1, 0] : vector<8x8xf32> -> vector<8x8xf32>
    %cst_43 = arith.constant dense<0.000000e+00> : vector<8x8xf32>
    %90 = tpu.matmul %87, %89, %cst_43 {dimension_numbers = #tpu.dot_dimension_numbers<[1], [0], [0], [1], [0, 0, 1, 1], [], []>} : vector<8x8xf32>, vector<8x8xf32>, vector<8x8xf32> -> vector<8x8xf32>
    %91 = arith.addf %90, %4 : vector<8x8xf32>
    %cst_44 = arith.constant dense<0xFF800000> : vector<8xf32>
    %92 = vector.multi_reduction <maximumf>, %91, %cst_44 [1] : vector<8x8xf32> to vector<8xf32>
    %93 = vector.shape_cast %92 : vector<8xf32> to vector<8x1xf32>
    %94 = vector.broadcast %93 : vector<8x1xf32> to vector<8x8xf32>
    %95 = arith.subf %91, %94 : vector<8x8xf32>
    %96 = math.exp %95 : vector<8x8xf32>
    %cst_45 = arith.constant dense<0.000000e+00> : vector<8xf32>
    %97 = vector.multi_reduction <add>, %96, %cst_45 [1] : vector<8x8xf32> to vector<8xf32>
    %98 = vector.shape_cast %97 : vector<8xf32> to vector<8x1xf32>
    %99 = tpu.reciprocal %98 {approx = true} : vector<8x1xf32> -> vector<8x1xf32>
    %100 = vector.broadcast %99 : vector<8x1xf32> to vector<8x8xf32>
    %101 = arith.mulf %96, %100 : vector<8x8xf32>
    %102 = vector.extract_strided_slice %52 {offsets = [0, 16], sizes = [8, 8], strides = [1, 1]} : vector<8x32xf32> to vector<8x8xf32>
    %cst_46 = arith.constant dense<0.000000e+00> : vector<8x8xf32>
    %103 = tpu.matmul %101, %102, %cst_46 {dimension_numbers = #tpu.dot_dimension_numbers<[1], [0], [0], [1], [0, 0, 1, 1], [], []>} : vector<8x8xf32>, vector<8x8xf32>, vector<8x8xf32> -> vector<8x8xf32>
    %104 = vector.extract_strided_slice %50 {offsets = [0, 24], sizes = [8, 8], strides = [1, 1]} : vector<8x32xf32> to vector<8x8xf32>
    %105 = vector.extract_strided_slice %51 {offsets = [0, 24], sizes = [8, 8], strides = [1, 1]} : vector<8x32xf32> to vector<8x8xf32>
    %106 = tpu.transpose %105, [1, 0] : vector<8x8xf32> -> vector<8x8xf32>
    %cst_47 = arith.constant dense<0.000000e+00> : vector<8x8xf32>
    %107 = tpu.matmul %104, %106, %cst_47 {dimension_numbers = #tpu.dot_dimension_numbers<[1], [0], [0], [1], [0, 0, 1, 1], [], []>} : vector<8x8xf32>, vector<8x8xf32>, vector<8x8xf32> -> vector<8x8xf32>
    %108 = arith.addf %107, %4 : vector<8x8xf32>
    %cst_48 = arith.constant dense<0xFF800000> : vector<8xf32>
    %109 = vector.multi_reduction <maximumf>, %108, %cst_48 [1] : vector<8x8xf32> to vector<8xf32>
    %110 = vector.shape_cast %109 : vector<8xf32> to vector<8x1xf32>
    %111 = vector.broadcast %110 : vector<8x1xf32> to vector<8x8xf32>
    %112 = arith.subf %108, %111 : vector<8x8xf32>
    %113 = math.exp %112 : vector<8x8xf32>
    %cst_49 = arith.constant dense<0.000000e+00> : vector<8xf32>
    %114 = vector.multi_reduction <add>, %113, %cst_49 [1] : vector<8x8xf32> to vector<8xf32>
    %115 = vector.shape_cast %114 : vector<8xf32> to vector<8x1xf32>
    %116 = tpu.reciprocal %115 {approx = true} : vector<8x1xf32> -> vector<8x1xf32>
    %117 = vector.broadcast %116 : vector<8x1xf32> to vector<8x8xf32>
    %118 = arith.mulf %113, %117 : vector<8x8xf32>
    %119 = vector.extract_strided_slice %52 {offsets = [0, 24], sizes = [8, 8], strides = [1, 1]} : vector<8x32xf32> to vector<8x8xf32>
    %cst_50 = arith.constant dense<0.000000e+00> : vector<8x8xf32>
    %120 = tpu.matmul %118, %119, %cst_50 {dimension_numbers = #tpu.dot_dimension_numbers<[1], [0], [0], [1], [0, 0, 1, 1], [], []>} : vector<8x8xf32>, vector<8x8xf32>, vector<8x8xf32> -> vector<8x8xf32>
    %121 = tpu.concatenate %69, %86, %103, %120 in 1 : vector<8x8xf32>, vector<8x8xf32>, vector<8x8xf32>, vector<8x8xf32> -> vector<8x32xf32>
    %122 = vector.extract_strided_slice %35 {offsets = [8, 0], sizes = [8, 32], strides = [1, 1]} : vector<16x32xf32> to vector<8x32xf32>
    %123 = vector.extract_strided_slice %42 {offsets = [8, 0], sizes = [8, 32], strides = [1, 1]} : vector<16x32xf32> to vector<8x32xf32>
    %124 = vector.extract_strided_slice %49 {offsets = [8, 0], sizes = [8, 32], strides = [1, 1]} : vector<16x32xf32> to vector<8x32xf32>
    %125 = vector.extract_strided_slice %122 {offsets = [0, 0], sizes = [8, 8], strides = [1, 1]} : vector<8x32xf32> to vector<8x8xf32>
    %126 = vector.extract_strided_slice %123 {offsets = [0, 0], sizes = [8, 8], strides = [1, 1]} : vector<8x32xf32> to vector<8x8xf32>
    %127 = tpu.transpose %126, [1, 0] : vector<8x8xf32> -> vector<8x8xf32>
    %cst_51 = arith.constant dense<0.000000e+00> : vector<8x8xf32>
    %128 = tpu.matmul %125, %127, %cst_51 {dimension_numbers = #tpu.dot_dimension_numbers<[1], [0], [0], [1], [0, 0, 1, 1], [], []>} : vector<8x8xf32>, vector<8x8xf32>, vector<8x8xf32> -> vector<8x8xf32>
    %129 = arith.addf %128, %4 : vector<8x8xf32>
    %cst_52 = arith.constant dense<0xFF800000> : vector<8xf32>
    %130 = vector.multi_reduction <maximumf>, %129, %cst_52 [1] : vector<8x8xf32> to vector<8xf32>
    %131 = vector.shape_cast %130 : vector<8xf32> to vector<8x1xf32>
    %132 = vector.broadcast %131 : vector<8x1xf32> to vector<8x8xf32>
    %133 = arith.subf %129, %132 : vector<8x8xf32>
    %134 = math.exp %133 : vector<8x8xf32>
    %cst_53 = arith.constant dense<0.000000e+00> : vector<8xf32>
    %135 = vector.multi_reduction <add>, %134, %cst_53 [1] : vector<8x8xf32> to vector<8xf32>
    %136 = vector.shape_cast %135 : vector<8xf32> to vector<8x1xf32>
    %137 = tpu.reciprocal %136 {approx = true} : vector<8x1xf32> -> vector<8x1xf32>
    %138 = vector.broadcast %137 : vector<8x1xf32> to vector<8x8xf32>
    %139 = arith.mulf %134, %138 : vector<8x8xf32>
    %140 = vector.extract_strided_slice %124 {offsets = [0, 0], sizes = [8, 8], strides = [1, 1]} : vector<8x32xf32> to vector<8x8xf32>
    %cst_54 = arith.constant dense<0.000000e+00> : vector<8x8xf32>
    %141 = tpu.matmul %139, %140, %cst_54 {dimension_numbers = #tpu.dot_dimension_numbers<[1], [0], [0], [1], [0, 0, 1, 1], [], []>} : vector<8x8xf32>, vector<8x8xf32>, vector<8x8xf32> -> vector<8x8xf32>
    %142 = vector.extract_strided_slice %122 {offsets = [0, 8], sizes = [8, 8], strides = [1, 1]} : vector<8x32xf32> to vector<8x8xf32>
    %143 = vector.extract_strided_slice %123 {offsets = [0, 8], sizes = [8, 8], strides = [1, 1]} : vector<8x32xf32> to vector<8x8xf32>
    %144 = tpu.transpose %143, [1, 0] : vector<8x8xf32> -> vector<8x8xf32>
    %cst_55 = arith.constant dense<0.000000e+00> : vector<8x8xf32>
    %145 = tpu.matmul %142, %144, %cst_55 {dimension_numbers = #tpu.dot_dimension_numbers<[1], [0], [0], [1], [0, 0, 1, 1], [], []>} : vector<8x8xf32>, vector<8x8xf32>, vector<8x8xf32> -> vector<8x8xf32>
    %146 = arith.addf %145, %4 : vector<8x8xf32>
    %cst_56 = arith.constant dense<0xFF800000> : vector<8xf32>
    %147 = vector.multi_reduction <maximumf>, %146, %cst_56 [1] : vector<8x8xf32> to vector<8xf32>
    %148 = vector.shape_cast %147 : vector<8xf32> to vector<8x1xf32>
    %149 = vector.broadcast %148 : vector<8x1xf32> to vector<8x8xf32>
    %150 = arith.subf %146, %149 : vector<8x8xf32>
    %151 = math.exp %150 : vector<8x8xf32>
    %cst_57 = arith.constant dense<0.000000e+00> : vector<8xf32>
    %152 = vector.multi_reduction <add>, %151, %cst_57 [1] : vector<8x8xf32> to vector<8xf32>
    %153 = vector.shape_cast %152 : vector<8xf32> to vector<8x1xf32>
    %154 = tpu.reciprocal %153 {approx = true} : vector<8x1xf32> -> vector<8x1xf32>
    %155 = vector.broadcast %154 : vector<8x1xf32> to vector<8x8xf32>
    %156 = arith.mulf %151, %155 : vector<8x8xf32>
    %157 = vector.extract_strided_slice %124 {offsets = [0, 8], sizes = [8, 8], strides = [1, 1]} : vector<8x32xf32> to vector<8x8xf32>
    %cst_58 = arith.constant dense<0.000000e+00> : vector<8x8xf32>
    %158 = tpu.matmul %156, %157, %cst_58 {dimension_numbers = #tpu.dot_dimension_numbers<[1], [0], [0], [1], [0, 0, 1, 1], [], []>} : vector<8x8xf32>, vector<8x8xf32>, vector<8x8xf32> -> vector<8x8xf32>
    %159 = vector.extract_strided_slice %122 {offsets = [0, 16], sizes = [8, 8], strides = [1, 1]} : vector<8x32xf32> to vector<8x8xf32>
    %160 = vector.extract_strided_slice %123 {offsets = [0, 16], sizes = [8, 8], strides = [1, 1]} : vector<8x32xf32> to vector<8x8xf32>
    %161 = tpu.transpose %160, [1, 0] : vector<8x8xf32> -> vector<8x8xf32>
    %cst_59 = arith.constant dense<0.000000e+00> : vector<8x8xf32>
    %162 = tpu.matmul %159, %161, %cst_59 {dimension_numbers = #tpu.dot_dimension_numbers<[1], [0], [0], [1], [0, 0, 1, 1], [], []>} : vector<8x8xf32>, vector<8x8xf32>, vector<8x8xf32> -> vector<8x8xf32>
    %163 = arith.addf %162, %4 : vector<8x8xf32>
    %cst_60 = arith.constant dense<0xFF800000> : vector<8xf32>
    %164 = vector.multi_reduction <maximumf>, %163, %cst_60 [1] : vector<8x8xf32> to vector<8xf32>
    %165 = vector.shape_cast %164 : vector<8xf32> to vector<8x1xf32>
    %166 = vector.broadcast %165 : vector<8x1xf32> to vector<8x8xf32>
    %167 = arith.subf %163, %166 : vector<8x8xf32>
    %168 = math.exp %167 : vector<8x8xf32>
    %cst_61 = arith.constant dense<0.000000e+00> : vector<8xf32>
    %169 = vector.multi_reduction <add>, %168, %cst_61 [1] : vector<8x8xf32> to vector<8xf32>
    %170 = vector.shape_cast %169 : vector<8xf32> to vector<8x1xf32>
    %171 = tpu.reciprocal %170 {approx = true} : vector<8x1xf32> -> vector<8x1xf32>
    %172 = vector.broadcast %171 : vector<8x1xf32> to vector<8x8xf32>
    %173 = arith.mulf %168, %172 : vector<8x8xf32>
    %174 = vector.extract_strided_slice %124 {offsets = [0, 16], sizes = [8, 8], strides = [1, 1]} : vector<8x32xf32> to vector<8x8xf32>
    %cst_62 = arith.constant dense<0.000000e+00> : vector<8x8xf32>
    %175 = tpu.matmul %173, %174, %cst_62 {dimension_numbers = #tpu.dot_dimension_numbers<[1], [0], [0], [1], [0, 0, 1, 1], [], []>} : vector<8x8xf32>, vector<8x8xf32>, vector<8x8xf32> -> vector<8x8xf32>
    %176 = vector.extract_strided_slice %122 {offsets = [0, 24], sizes = [8, 8], strides = [1, 1]} : vector<8x32xf32> to vector<8x8xf32>
    %177 = vector.extract_strided_slice %123 {offsets = [0, 24], sizes = [8, 8], strides = [1, 1]} : vector<8x32xf32> to vector<8x8xf32>
    %178 = tpu.transpose %177, [1, 0] : vector<8x8xf32> -> vector<8x8xf32>
    %cst_63 = arith.constant dense<0.000000e+00> : vector<8x8xf32>
    %179 = tpu.matmul %176, %178, %cst_63 {dimension_numbers = #tpu.dot_dimension_numbers<[1], [0], [0], [1], [0, 0, 1, 1], [], []>} : vector<8x8xf32>, vector<8x8xf32>, vector<8x8xf32> -> vector<8x8xf32>
    %180 = arith.addf %179, %4 : vector<8x8xf32>
    %cst_64 = arith.constant dense<0xFF800000> : vector<8xf32>
    %181 = vector.multi_reduction <maximumf>, %180, %cst_64 [1] : vector<8x8xf32> to vector<8xf32>
    %182 = vector.shape_cast %181 : vector<8xf32> to vector<8x1xf32>
    %183 = vector.broadcast %182 : vector<8x1xf32> to vector<8x8xf32>
    %184 = arith.subf %180, %183 : vector<8x8xf32>
    %185 = math.exp %184 : vector<8x8xf32>
    %cst_65 = arith.constant dense<0.000000e+00> : vector<8xf32>
    %186 = vector.multi_reduction <add>, %185, %cst_65 [1] : vector<8x8xf32> to vector<8xf32>
    %187 = vector.shape_cast %186 : vector<8xf32> to vector<8x1xf32>
    %188 = tpu.reciprocal %187 {approx = true} : vector<8x1xf32> -> vector<8x1xf32>
    %189 = vector.broadcast %188 : vector<8x1xf32> to vector<8x8xf32>
    %190 = arith.mulf %185, %189 : vector<8x8xf32>
    %191 = vector.extract_strided_slice %124 {offsets = [0, 24], sizes = [8, 8], strides = [1, 1]} : vector<8x32xf32> to vector<8x8xf32>
    %cst_66 = arith.constant dense<0.000000e+00> : vector<8x8xf32>
    %192 = tpu.matmul %190, %191, %cst_66 {dimension_numbers = #tpu.dot_dimension_numbers<[1], [0], [0], [1], [0, 0, 1, 1], [], []>} : vector<8x8xf32>, vector<8x8xf32>, vector<8x8xf32> -> vector<8x8xf32>
    %193 = tpu.concatenate %141, %158, %175, %192 in 1 : vector<8x8xf32>, vector<8x8xf32>, vector<8x8xf32>, vector<8x8xf32> -> vector<8x32xf32>
    %194 = tpu.concatenate %121, %193 in 0 : vector<8x32xf32>, vector<8x32xf32> -> vector<16x32xf32>
    %c0_67 = arith.constant 0 : index
    %c0_68 = arith.constant 0 : index
    %c0_69 = arith.constant 0 : index
    %195 = vector.load %arg14[%c0_67, %c0_68, %c0_69] : memref<1x32x32xf32, #tpu.memory_space<vmem>>, vector<1x32x32xf32>
    %196 = vector.shape_cast %195 : vector<1x32x32xf32> to vector<32x32xf32>
    %cst_70 = arith.constant dense<0.000000e+00> : vector<16x32xf32>
    %197 = tpu.matmul %194, %196, %cst_70 {dimension_numbers = #tpu.dot_dimension_numbers<[1], [0], [0], [1], [0, 0, 1, 1], [], []>} : vector<16x32xf32>, vector<32x32xf32>, vector<16x32xf32> -> vector<16x32xf32>
    %198 = arith.addf %3, %197 : vector<16x32xf32>
    %c0_71 = arith.constant 0 : index
    %c0_72 = arith.constant 0 : index
    %c0_73 = arith.constant 0 : index
    %199 = vector.load %arg15[%c0_71, %c0_72, %c0_73] : memref<1x1x32xf32, #tpu.memory_space<vmem>>, vector<1x1x32xf32>
    %200 = vector.shape_cast %199 : vector<1x1x32xf32> to vector<1x32xf32>
    %201 = vector.broadcast %200 : vector<1x32xf32> to vector<16x32xf32>
    %202 = arith.addf %198, %201 : vector<16x32xf32>
    %c0_74 = arith.constant 0 : index
    %c0_75 = arith.constant 0 : index
    %c0_76 = arith.constant 0 : index
    %203 = vector.load %arg16[%c0_74, %c0_75, %c0_76] : memref<1x1x32xf32, #tpu.memory_space<vmem>>, vector<1x1x32xf32>
    %204 = vector.shape_cast %203 : vector<1x1x32xf32> to vector<1x32xf32>
    %c0_77 = arith.constant 0 : index
    %c0_78 = arith.constant 0 : index
    %c0_79 = arith.constant 0 : index
    %205 = vector.load %arg17[%c0_77, %c0_78, %c0_79] : memref<1x1x32xf32, #tpu.memory_space<vmem>>, vector<1x1x32xf32>
    %206 = vector.shape_cast %205 : vector<1x1x32xf32> to vector<1x32xf32>
    %cst_80 = arith.constant dense<0.000000e+00> : vector<16xf32>
    %207 = vector.multi_reduction <add>, %202, %cst_80 [1] : vector<16x32xf32> to vector<16xf32>
    %208 = vector.shape_cast %207 : vector<16xf32> to vector<16x1xf32>
    %cst_81 = arith.constant 3.200000e+01 : f32
    %209 = vector.broadcast %cst_81 : f32 to vector<16x1xf32>
    %210 = arith.divf %208, %209 : vector<16x1xf32>
    %211 = vector.broadcast %210 : vector<16x1xf32> to vector<16x32xf32>
    %212 = arith.subf %202, %211 : vector<16x32xf32>
    %213 = arith.mulf %212, %212 : vector<16x32xf32>
    %cst_82 = arith.constant dense<0.000000e+00> : vector<16xf32>
    %214 = vector.multi_reduction <add>, %213, %cst_82 [1] : vector<16x32xf32> to vector<16xf32>
    %215 = vector.shape_cast %214 : vector<16xf32> to vector<16x1xf32>
    %cst_83 = arith.constant 3.200000e+01 : f32
    %216 = vector.broadcast %cst_83 : f32 to vector<16x1xf32>
    %217 = arith.divf %215, %216 : vector<16x1xf32>
    %cst_84 = arith.constant 9.99999974E-6 : f32
    %218 = vector.broadcast %cst_84 : f32 to vector<16x1xf32>
    %219 = arith.addf %217, %218 : vector<16x1xf32>
    %220 = math.rsqrt %219 : vector<16x1xf32>
    %221 = vector.broadcast %220 : vector<16x1xf32> to vector<16x32xf32>
    %222 = arith.mulf %212, %221 : vector<16x32xf32>
    %223 = vector.broadcast %204 : vector<1x32xf32> to vector<16x32xf32>
    %224 = arith.mulf %222, %223 : vector<16x32xf32>
    %225 = vector.broadcast %206 : vector<1x32xf32> to vector<16x32xf32>
    %226 = arith.addf %224, %225 : vector<16x32xf32>
    %c0_85 = arith.constant 0 : index
    %c0_86 = arith.constant 0 : index
    %c0_87 = arith.constant 0 : index
    %227 = vector.load %arg18[%c0_85, %c0_86, %c0_87] : memref<1x32x64xf32, #tpu.memory_space<vmem>>, vector<1x32x64xf32>
    %228 = vector.shape_cast %227 : vector<1x32x64xf32> to vector<32x64xf32>
    %cst_88 = arith.constant dense<0.000000e+00> : vector<16x64xf32>
    %229 = tpu.matmul %226, %228, %cst_88 {dimension_numbers = #tpu.dot_dimension_numbers<[1], [0], [0], [1], [0, 0, 1, 1], [], []>} : vector<16x32xf32>, vector<32x64xf32>, vector<16x64xf32> -> vector<16x64xf32>
    %c0_89 = arith.constant 0 : index
    %c0_90 = arith.constant 0 : index
    %c0_91 = arith.constant 0 : index
    %230 = vector.load %arg19[%c0_89, %c0_90, %c0_91] : memref<1x1x64xf32, #tpu.memory_space<vmem>>, vector<1x1x64xf32>
    %231 = vector.shape_cast %230 : vector<1x1x64xf32> to vector<1x64xf32>
    %232 = vector.broadcast %231 : vector<1x64xf32> to vector<16x64xf32>
    %233 = arith.addf %229, %232 : vector<16x64xf32>
    %cst_92 = arith.constant 0.000000e+00 : f32
    %234 = vector.broadcast %cst_92 : f32 to vector<16x64xf32>
    %235 = arith.maximumf %233, %234 : vector<16x64xf32>
    %c0_93 = arith.constant 0 : index
    %c0_94 = arith.constant 0 : index
    %c0_95 = arith.constant 0 : index
    %236 = vector.load %arg20[%c0_93, %c0_94, %c0_95] : memref<1x64x32xf32, #tpu.memory_space<vmem>>, vector<1x64x32xf32>
    %237 = vector.shape_cast %236 : vector<1x64x32xf32> to vector<64x32xf32>
    %cst_96 = arith.constant dense<0.000000e+00> : vector<16x32xf32>
    %238 = tpu.matmul %235, %237, %cst_96 {dimension_numbers = #tpu.dot_dimension_numbers<[1], [0], [0], [1], [0, 0, 1, 1], [], []>} : vector<16x64xf32>, vector<64x32xf32>, vector<16x32xf32> -> vector<16x32xf32>
    %239 = arith.addf %202, %238 : vector<16x32xf32>
    %c0_97 = arith.constant 0 : index
    %c0_98 = arith.constant 0 : index
    %c0_99 = arith.constant 0 : index
    %240 = vector.load %arg21[%c0_97, %c0_98, %c0_99] : memref<1x1x32xf32, #tpu.memory_space<vmem>>, vector<1x1x32xf32>
    %241 = vector.shape_cast %240 : vector<1x1x32xf32> to vector<1x32xf32>
    %242 = vector.broadcast %241 : vector<1x32xf32> to vector<16x32xf32>
    %243 = arith.addf %239, %242 : vector<16x32xf32>
    %c0_100 = arith.constant 0 : index
    %c0_101 = arith.constant 0 : index
    %244 = vector.load %arg25[%c0_100, %c0_101] : memref<16x32xf32, #tpu.memory_space<vmem>>, vector<16x32xf32>
    tpu.vector_store %arg25[%c0_100, %c0_101], %243 {strides = array<i32>} : memref<16x32xf32, #tpu.memory_space<vmem>>, vector<16x32xf32>,
    %c1_i32 = arith.constant 1 : i32
    %245 = arith.cmpi eq, %arg0, %c1_i32 : i32
    %246 = arith.extui %245 : i1 to i32
    %c0_i32_102 = arith.constant 0 : i32
    %247 = arith.cmpi ne, %246, %c0_i32_102 : i32
    scf.if %247 {
      %c0_103 = arith.constant 0 : index
      %c0_104 = arith.constant 0 : index
      %248 = vector.load %arg22[%c0_103, %c0_104] : memref<1x32xf32, #tpu.memory_space<vmem>>, vector<1x32xf32>
      %c0_105 = arith.constant 0 : index
      %c0_106 = arith.constant 0 : index
      %249 = vector.load %arg23[%c0_105, %c0_106] : memref<1x32xf32, #tpu.memory_space<vmem>>, vector<1x32xf32>
      %cst_107 = arith.constant dense<0.000000e+00> : vector<16xf32>
      %250 = vector.multi_reduction <add>, %243, %cst_107 [1] : vector<16x32xf32> to vector<16xf32>
      %251 = vector.shape_cast %250 : vector<16xf32> to vector<16x1xf32>
      %cst_108 = arith.constant 3.200000e+01 : f32
      %252 = vector.broadcast %cst_108 : f32 to vector<16x1xf32>
      %253 = arith.divf %251, %252 : vector<16x1xf32>
      %254 = vector.broadcast %253 : vector<16x1xf32> to vector<16x32xf32>
      %255 = arith.subf %243, %254 : vector<16x32xf32>
      %256 = arith.mulf %255, %255 : vector<16x32xf32>
      %cst_109 = arith.constant dense<0.000000e+00> : vector<16xf32>
      %257 = vector.multi_reduction <add>, %256, %cst_109 [1] : vector<16x32xf32> to vector<16xf32>
      %258 = vector.shape_cast %257 : vector<16xf32> to vector<16x1xf32>
      %cst_110 = arith.constant 3.200000e+01 : f32
      %259 = vector.broadcast %cst_110 : f32 to vector<16x1xf32>
      %260 = arith.divf %258, %259 : vector<16x1xf32>
      %cst_111 = arith.constant 9.99999974E-6 : f32
      %261 = vector.broadcast %cst_111 : f32 to vector<16x1xf32>
      %262 = arith.addf %260, %261 : vector<16x1xf32>
      %263 = math.rsqrt %262 : vector<16x1xf32>
      %264 = vector.broadcast %263 : vector<16x1xf32> to vector<16x32xf32>
      %265 = arith.mulf %255, %264 : vector<16x32xf32>
      %266 = vector.broadcast %248 : vector<1x32xf32> to vector<16x32xf32>
      %267 = arith.mulf %265, %266 : vector<16x32xf32>
      %268 = vector.broadcast %249 : vector<1x32xf32> to vector<16x32xf32>
      %269 = arith.addf %267, %268 : vector<16x32xf32>
      %c0_112 = arith.constant 0 : index
      %c0_113 = arith.constant 0 : index
      %270 = vector.load %arg24[%c0_112, %c0_113] : memref<16x32xf32, #tpu.memory_space<vmem>>, vector<16x32xf32>
      tpu.vector_store %arg24[%c0_112, %c0_113], %269 {strides = array<i32>} : memref<16x32xf32, #tpu.memory_space<vmem>>, vector<16x32xf32>,
    } else {
    }
    return
  }
  func.func @transform_0(%arg0: i32) -> (i32, i32) {
    %c0_i32 = arith.constant 0 : i32
    %c0_i32_0 = arith.constant 0 : i32
    %c0_i32_1 = arith.constant 0 : i32
    return %c0_i32, %c0_i32_0 : i32, i32
  }
  func.func @transform_1(%arg0: i32) -> (i32, i32) {
    %c0_i32 = arith.constant 0 : i32
    %c0_i32_0 = arith.constant 0 : i32
    %c0_i32_1 = arith.constant 0 : i32
    return %c0_i32, %c0_i32_0 : i32, i32
  }
  func.func @transform_2(%arg0: i32) -> (i32, i32) {
    %c0_i32 = arith.constant 0 : i32
    %c0_i32_0 = arith.constant 0 : i32
    %c0_i32_1 = arith.constant 0 : i32
    return %c0_i32, %c0_i32_0 : i32, i32
  }
  func.func @transform_3(%arg0: i32) -> (i32, i32) {
    %c0_i32 = arith.constant 0 : i32
    %c0_i32_0 = arith.constant 0 : i32
    %c0_i32_1 = arith.constant 0 : i32
    return %c0_i32, %c0_i32_0 : i32, i32
  }
  func.func @transform_4(%arg0: i32) -> (i32, i32) {
    %c0_i32 = arith.constant 0 : i32
    %c0_i32_0 = arith.constant 0 : i32
    %c0_i32_1 = arith.constant 0 : i32
    return %c0_i32, %c0_i32_0 : i32, i32
  }
  func.func @transform_5(%arg0: i32) -> (i32, i32, i32) {
    %c0_i32 = arith.constant 0 : i32
    %c0_i32_0 = arith.constant 0 : i32
    %c0_i32_1 = arith.constant 0 : i32
    return %arg0, %c0_i32, %c0_i32_0 : i32, i32, i32
  }
  func.func @transform_6(%arg0: i32) -> (i32, i32, i32) {
    %c0_i32 = arith.constant 0 : i32
    %c0_i32_0 = arith.constant 0 : i32
    %c0_i32_1 = arith.constant 0 : i32
    return %arg0, %c0_i32, %c0_i32_0 : i32, i32, i32
  }
  func.func @transform_7(%arg0: i32) -> (i32, i32, i32) {
    %c0_i32 = arith.constant 0 : i32
    %c0_i32_0 = arith.constant 0 : i32
    %c0_i32_1 = arith.constant 0 : i32
    return %arg0, %c0_i32, %c0_i32_0 : i32, i32, i32
  }
  func.func @transform_8(%arg0: i32) -> (i32, i32, i32) {
    %c0_i32 = arith.constant 0 : i32
    %c0_i32_0 = arith.constant 0 : i32
    %c0_i32_1 = arith.constant 0 : i32
    return %arg0, %c0_i32, %c0_i32_0 : i32, i32, i32
  }
  func.func @transform_9(%arg0: i32) -> (i32, i32, i32) {
    %c0_i32 = arith.constant 0 : i32
    %c0_i32_0 = arith.constant 0 : i32
    %c0_i32_1 = arith.constant 0 : i32
    return %arg0, %c0_i32, %c0_i32_0 : i32, i32, i32
  }
  func.func @transform_10(%arg0: i32) -> (i32, i32, i32) {
    %c0_i32 = arith.constant 0 : i32
    %c0_i32_0 = arith.constant 0 : i32
    %c0_i32_1 = arith.constant 0 : i32
    return %arg0, %c0_i32, %c0_i32_0 : i32, i32, i32
  }
  func.func @transform_11(%arg0: i32) -> (i32, i32, i32) {
    %c0_i32 = arith.constant 0 : i32
    %c0_i32_0 = arith.constant 0 : i32
    %c0_i32_1 = arith.constant 0 : i32
    return %arg0, %c0_i32, %c0_i32_0 : i32, i32, i32
  }
  func.func @transform_12(%arg0: i32) -> (i32, i32, i32) {
    %c0_i32 = arith.constant 0 : i32
    %c0_i32_0 = arith.constant 0 : i32
    %c0_i32_1 = arith.constant 0 : i32
    return %arg0, %c0_i32, %c0_i32_0 : i32, i32, i32
  }
  func.func @transform_13(%arg0: i32) -> (i32, i32, i32) {
    %c0_i32 = arith.constant 0 : i32
    %c0_i32_0 = arith.constant 0 : i32
    %c0_i32_1 = arith.constant 0 : i32
    return %arg0, %c0_i32, %c0_i32_0 : i32, i32, i32
  }
  func.func @transform_14(%arg0: i32) -> (i32, i32, i32) {
    %c0_i32 = arith.constant 0 : i32
    %c0_i32_0 = arith.constant 0 : i32
    %c0_i32_1 = arith.constant 0 : i32
    return %arg0, %c0_i32, %c0_i32_0 : i32, i32, i32
  }
  func.func @transform_15(%arg0: i32) -> (i32, i32, i32) {
    %c0_i32 = arith.constant 0 : i32
    %c0_i32_0 = arith.constant 0 : i32
    %c0_i32_1 = arith.constant 0 : i32
    return %arg0, %c0_i32, %c0_i32_0 : i32, i32, i32
  }
  func.func @transform_16(%arg0: i32) -> (i32, i32, i32) {
    %c0_i32 = arith.constant 0 : i32
    %c0_i32_0 = arith.constant 0 : i32
    %c0_i32_1 = arith.constant 0 : i32
    return %arg0, %c0_i32, %c0_i32_0 : i32, i32, i32
  }
  func.func @transform_17(%arg0: i32) -> (i32, i32, i32) {
    %c0_i32 = arith.constant 0 : i32
    %c0_i32_0 = arith.constant 0 : i32
    %c0_i32_1 = arith.constant 0 : i32
    return %arg0, %c0_i32, %c0_i32_0 : i32, i32, i32
  }
  func.func @transform_18(%arg0: i32) -> (i32, i32, i32) {
    %c0_i32 = arith.constant 0 : i32
    %c0_i32_0 = arith.constant 0 : i32
    %c0_i32_1 = arith.constant 0 : i32
    return %arg0, %c0_i32, %c0_i32_0 : i32, i32, i32
  }
  func.func @transform_19(%arg0: i32) -> (i32, i32, i32) {
    %c0_i32 = arith.constant 0 : i32
    %c0_i32_0 = arith.constant 0 : i32
    %c0_i32_1 = arith.constant 0 : i32
    return %arg0, %c0_i32, %c0_i32_0 : i32, i32, i32
  }
  func.func @transform_20(%arg0: i32) -> (i32, i32, i32) {
    %c0_i32 = arith.constant 0 : i32
    %c0_i32_0 = arith.constant 0 : i32
    %c0_i32_1 = arith.constant 0 : i32
    return %arg0, %c0_i32, %c0_i32_0 : i32, i32, i32
  }
  func.func @transform_21(%arg0: i32) -> (i32, i32) {
    %c0_i32 = arith.constant 0 : i32
    %c0_i32_0 = arith.constant 0 : i32
    %c0_i32_1 = arith.constant 0 : i32
    return %c0_i32, %c0_i32_0 : i32, i32
  }
  func.func @transform_22(%arg0: i32) -> (i32, i32) {
    %c0_i32 = arith.constant 0 : i32
    %c0_i32_0 = arith.constant 0 : i32
    %c0_i32_1 = arith.constant 0 : i32
    return %c0_i32, %c0_i32_0 : i32, i32
  }
  func.func @transform_23(%arg0: i32) -> (i32, i32) {
    %c0_i32 = arith.constant 0 : i32
    %c0_i32_0 = arith.constant 0 : i32
    %c0_i32_1 = arith.constant 0 : i32
    return %c0_i32, %c0_i32_0 : i32, i32
  }
}

</mosaic_0001>

<llo_original>
// kernel: tpu_custom_call.1
$region0: #{tpu_custom_call.1}
  #allocation0 [shape = 'u32[]', space=smem, size = 0x4, offset = 0x4, fixed_abs, tag = 'smem constant byte address 0x4 - core index']
  #allocation1 [shape = 'u32[144,128]{1,0:T(1,128)}', space=vmem, size = 0x12000, scoped, tag = 'internal scratch']
  #allocation2 [shape = 'f32[16,32]{1,0:T(8,128)}', space=vmem, size = 0x2000, scoped, tag = 'scratch operand']
  %s0 = inlined_call_operand.hbm [shape: f32[16,16], index: 0, kind: input, shape index: {}]
  %s1 = inlined_call_operand.hbm [shape: f32[16,32], index: 1, kind: input, shape index: {}]
  %s2 = inlined_call_operand.hbm [shape: f32[8,8], index: 2, kind: input, shape index: {}]
  %s3 = inlined_call_operand.hbm [shape: f32[16,32], index: 3, kind: input, shape index: {}]
  %s4 = inlined_call_operand.vmem [shape: f32[1,32], index: 4, kind: input, shape index: {}]
  %s5 = inlined_call_operand.vmem [shape: f32[2,1,32], index: 5, kind: input, shape index: {}]
  %s6 = inlined_call_operand.vmem [shape: f32[2,1,32], index: 6, kind: input, shape index: {}]
  %s7 = inlined_call_operand.vmem [shape: f32[2,32,32], index: 7, kind: input, shape index: {}]
  %s8 = inlined_call_operand.vmem [shape: f32[2,1,32], index: 8, kind: input, shape index: {}]
  %s9 = inlined_call_operand.vmem [shape: f32[2,32,32], index: 9, kind: input, shape index: {}]
  %s10 = inlined_call_operand.hbm [shape: f32[2,1,32], index: 10, kind: input, shape index: {}]
  %s11 = inlined_call_operand.vmem [shape: f32[2,32,32], index: 11, kind: input, shape index: {}]
  %s12 = inlined_call_operand.hbm [shape: f32[2,1,32], index: 12, kind: input, shape index: {}]
  %s13 = inlined_call_operand.hbm [shape: f32[2,32,32], index: 13, kind: input, shape index: {}]
  %s14 = inlined_call_operand.hbm [shape: f32[2,1,32], index: 14, kind: input, shape index: {}]
  %s15 = inlined_call_operand.hbm [shape: f32[2,1,32], index: 15, kind: input, shape index: {}]
  %s16 = inlined_call_operand.hbm [shape: f32[2,1,32], index: 16, kind: input, shape index: {}]
  %s17 = inlined_call_operand.hbm [shape: f32[2,32,64], index: 17, kind: input, shape index: {}]
  %s18 = inlined_call_operand.hbm [shape: f32[2,1,64], index: 18, kind: input, shape index: {}]
  %s19 = inlined_call_operand.vmem [shape: f32[2,64,32], index: 19, kind: input, shape index: {}]
  %s20 = inlined_call_operand.vmem [shape: f32[2,1,32], index: 20, kind: input, shape index: {}]
  %s21 = inlined_call_operand.vmem [shape: f32[1,32], index: 21, kind: input, shape index: {}]
  %s22 = inlined_call_operand.vmem [shape: f32[1,32], index: 22, kind: input, shape index: {}]
  %s23 = inlined_call_operand.hbm [shape: f32[16,32], index: 23, kind: output, shape index: {}]
  %s24 = sld [smem:[#allocation0]]
  $region181: #{tpu_custom_call.1} parent=0
    _
  %s26 = ssub.s32 1, %s24
  %s27 = scalar_select 0, %s26, %s24
  $region1: #{tpu_custom_call.1} parent=0
    #allocation3 [shape = 'u8[8192]{0}', space=vmem, size = 0x2000, scoped, tag = 'input window, operand 0, single buffered']
    #allocation4 [shape = 's32[2]{0}', space=sflag, size = 0x8, scoped, tag = 'scoped memory for tpu_custom_call.1']
    #allocation5 [shape = 's32[2]{0}', space=sflag, size = 0x8, scoped, tag = 'scoped memory for tpu_custom_call.1']
    #allocation6 [shape = 'u8[8192]{0}', space=vmem, size = 0x2000, scoped, tag = 'input window, operand 1, single buffered']
    #allocation7 [shape = 's32[1]{0}', space=sflag, size = 0x4, scoped, tag = 'scoped memory for tpu_custom_call.1']
    #allocation8 [shape = 'u8[4096]{0}', space=vmem, size = 0x1000, scoped, tag = 'input window, operand 2, single buffered']
    #allocation9 [shape = 'u8[8192]{0}', space=vmem, size = 0x2000, scoped, tag = 'input window, operand 3, single buffered']
    #allocation10 [shape = 's32[1]{0}', space=sflag, size = 0x4, scoped, tag = 'scoped memory for tpu_custom_call.1']
    #allocation11 [shape = 'u8[1024]{0}', space=vmem, size = 0x400, scoped, tag = 'input window, operand 10']
    #allocation12 [shape = 'u8[1024]{0}', space=vmem, size = 0x400, scoped, tag = 'input window, operand 12']
    #allocation13 [shape = 'u8[32768]{0}', space=vmem, size = 0x8000, scoped, tag = 'input window, operand 13']
    #allocation14 [shape = 'u8[1024]{0}', space=vmem, size = 0x400, scoped, tag = 'input window, operand 14']
    #allocation15 [shape = 'u8[1024]{0}', space=vmem, size = 0x400, scoped, tag = 'input window, operand 15']
    #allocation16 [shape = 'u8[1024]{0}', space=vmem, size = 0x400, scoped, tag = 'input window, operand 16']
    #allocation17 [shape = 'u8[32768]{0}', space=vmem, size = 0x8000, scoped, tag = 'input window, operand 17']
    #allocation18 [shape = 'u8[1024]{0}', space=vmem, size = 0x400, scoped, tag = 'input window, operand 18']
    #allocation19 [shape = 'u8[8192]{0}', space=vmem, size = 0x2000, scoped, tag = 'output window, operand 0, single buffered']
    %28 = vsyncpa [#allocation4], 0
    %29 = vsyncpa [#allocation7], 0
    %30 = vsyncpa [#allocation10], 0
    %31 = vsyncpa [#allocation5], 0
    loop: start=0, step=1, limit=4
    $region2: #{tpu_custom_call.1} parent=1 // loop_pre_header
      _
    $region3: #{tpu_custom_call.1} parent=1 // loop_header
      %s33 = sphi 0, %s37
      %p34 = scmp.ge.s32.totalorder %s33, 4
      %s41 = sphi 0, %s41
      %s43 = sphi 0, %s41
      %s44 = sphi 0, %s43
      %s58 = sphi 0, %s44
      %s62 = sphi 0, %s62
      %s64 = sphi 0, %s62
      %s65 = sphi 0, %s64
      %s79 = sphi 0, %s65
      %s83 = sphi 0, %s83
      %s85 = sphi 0, %s83
      %s86 = sphi 0, %s85
      %s100 = sphi 0, %s86
      %s104 = sphi 0, %s104
      %s106 = sphi 0, %s104
      %s107 = sphi 0, %s106
      %s121 = sphi 0, %s107
      %s125 = sphi 0, %s125
      %s127 = sphi 0, %s125
      %s128 = sphi 0, %s127
      %s142 = sphi 0, %s128
      %s148 = sphi 0, %s150
      %s151 = sphi 0, %s148
      %s152 = sphi 0, %s151
      %s168 = sphi 0, %s152
      %s174 = sphi 0, %s176
      %s177 = sphi 0, %s174
      %s178 = sphi 0, %s177
      %s194 = sphi 0, %s178
      %s200 = sphi 0, %s202
      %s203 = sphi 0, %s200
      %s204 = sphi 0, %s203
      %s220 = sphi 0, %s204
      %s226 = sphi 0, %s228
      %s229 = sphi 0, %s226
      %s230 = sphi 0, %s229
      %s246 = sphi 0, %s230
      %s252 = sphi 0, %s254
      %s255 = sphi 0, %s252
      %s256 = sphi 0, %s255
      %s272 = sphi 0, %s256
      %s278 = sphi 0, %s280
      %s281 = sphi 0, %s278
      %s282 = sphi 0, %s281
      %s298 = sphi 0, %s282
      %s304 = sphi 0, %s306
      %s307 = sphi 0, %s304
      %s308 = sphi 0, %s307
      %s324 = sphi 0, %s308
      %s330 = sphi 0, %s332
      %s333 = sphi 0, %s330
      %s334 = sphi 0, %s333
      %s350 = sphi 0, %s334
      %s356 = sphi 0, %s358
      %s359 = sphi 0, %s356
      %s360 = sphi 0, %s359
      %s376 = sphi 0, %s360
      %s382 = sphi 0, %s384
      %s385 = sphi 0, %s382
      %s386 = sphi 0, %s385
      %s402 = sphi 0, %s386
      %s408 = sphi 0, %s410
      %s411 = sphi 0, %s408
      %s412 = sphi 0, %s411
      %s428 = sphi 0, %s412
      %s434 = sphi 0, %s436
      %s437 = sphi 0, %s434
      %s438 = sphi 0, %s437
      %s454 = sphi 0, %s438
      %s460 = sphi 0, %s462
      %s463 = sphi 0, %s460
      %s464 = sphi 0, %s463
      %s480 = sphi 0, %s464
      %s486 = sphi 0, %s488
      %s489 = sphi 0, %s486
      %s490 = sphi 0, %s489
      %s506 = sphi 0, %s490
      %s512 = sphi 0, %s514
      %s515 = sphi 0, %s512
      %s516 = sphi 0, %s515
      %s532 = sphi 0, %s516
      %s538 = sphi 0, %s540
      %s541 = sphi 0, %s538
      %s542 = sphi 0, %s541
      %s558 = sphi 0, %s542
      %s562 = sphi 0, %s562
      %s564 = sphi 0, %s562
      %s565 = sphi 0, %s564
      %s579 = sphi 0, %s565
      %s583 = sphi 0, %s583
      %s585 = sphi 0, %s583
      %s586 = sphi 0, %s585
      %s600 = sphi 0, %s586
      %s604 = sphi 0, %s604
      %s606 = sphi 0, %s604
      %s607 = sphi 0, %s606
      %s621 = sphi 0, %s607
    $region4: #{tpu_custom_call.1} parent=1 // loop_header_branch
      %36 = sbr.rel (%p34) target = $region8
    $region5: #{tpu_custom_call.1} parent=1 // loop_body
      %s38 = ssub.s32 %s33, 1
      %s39 = ssub.s32 %s33, 2
      %s40 = sadd.s32 %s33, 1
      %s42 = sadd.s32 %s41, 1
      %p45 = scmp.eq.s32.totalorder %s33, 1
      %p46 = scmp.ne.s32.totalorder %s41, %s43
      %p47 = scmp.eq.s32.totalorder %s33, 0
      %p48 = por %p46, %p47
      %p49 = scmp.ne.s32.totalorder %s41, %s43
      %p50 = scmp.eq.s32.totalorder %s38, 1
      %p51 = por %p49, %p50
      %p52 = scmp.ne.s32.totalorder %s43, %s44
      %p53 = scmp.eq.s32.totalorder %s38, 0
      %p54 = por %p52, %p53
      %p55 = scmp.ne.s32.totalorder %s43, %s44
      %p56 = scmp.eq.s32.totalorder %s39, 1
      %p57 = por %p55, %p56
      %p59 = scmp.ne.s32.totalorder %s44, %s58
      %p60 = scmp.eq.s32.totalorder %s39, 0
      %p61 = por %p59, %p60
      %s63 = sadd.s32 %s62, 1
      %p66 = scmp.eq.s32.totalorder %s33, 1
      %p67 = scmp.ne.s32.totalorder %s62, %s64
      %p68 = scmp.eq.s32.totalorder %s33, 0
      %p69 = por %p67, %p68
      %p70 = scmp.ne.s32.totalorder %s62, %s64
      %p71 = scmp.eq.s32.totalorder %s38, 1
      %p72 = por %p70, %p71
      %p73 = scmp.ne.s32.totalorder %s64, %s65
      %p74 = scmp.eq.s32.totalorder %s38, 0
      %p75 = por %p73, %p74
      %p76 = scmp.ne.s32.totalorder %s64, %s65
      %p77 = scmp.eq.s32.totalorder %s39, 1
      %p78 = por %p76, %p77
      %p80 = scmp.ne.s32.totalorder %s65, %s79
      %p81 = scmp.eq.s32.totalorder %s39, 0
      %p82 = por %p80, %p81
      %s84 = sadd.s32 %s83, 1
      %p87 = scmp.eq.s32.totalorder %s33, 1
      %p88 = scmp.ne.s32.totalorder %s83, %s85
      %p89 = scmp.eq.s32.totalorder %s33, 0
      %p90 = por %p88, %p89
      %p91 = scmp.ne.s32.totalorder %s83, %s85
      %p92 = scmp.eq.s32.totalorder %s38, 1
      %p93 = por %p91, %p92
      %p94 = scmp.ne.s32.totalorder %s85, %s86
      %p95 = scmp.eq.s32.totalorder %s38, 0
      %p96 = por %p94, %p95
      %p97 = scmp.ne.s32.totalorder %s85, %s86
      %p98 = scmp.eq.s32.totalorder %s39, 1
      %p99 = por %p97, %p98
      %p101 = scmp.ne.s32.totalorder %s86, %s100
      %p102 = scmp.eq.s32.totalorder %s39, 0
      %p103 = por %p101, %p102
      %s105 = sadd.s32 %s104, 1
      %p108 = scmp.eq.s32.totalorder %s33, 1
      %p109 = scmp.ne.s32.totalorder %s104, %s106
      %p110 = scmp.eq.s32.totalorder %s33, 0
      %p111 = por %p109, %p110
      %p112 = scmp.ne.s32.totalorder %s104, %s106
      %p113 = scmp.eq.s32.totalorder %s38, 1
      %p114 = por %p112, %p113
      %p115 = scmp.ne.s32.totalorder %s106, %s107
      %p116 = scmp.eq.s32.totalorder %s38, 0
      %p117 = por %p115, %p116
      %p118 = scmp.ne.s32.totalorder %s106, %s107
      %p119 = scmp.eq.s32.totalorder %s39, 1
      %p120 = por %p118, %p119
      %p122 = scmp.ne.s32.totalorder %s107, %s121
      %p123 = scmp.eq.s32.totalorder %s39, 0
      %p124 = por %p122, %p123
      %s126 = sadd.s32 %s125, 1
      %p129 = scmp.eq.s32.totalorder %s33, 1
      %p130 = scmp.ne.s32.totalorder %s125, %s127
      %p131 = scmp.eq.s32.totalorder %s33, 0
      %p132 = por %p130, %p131
      %p133 = scmp.ne.s32.totalorder %s125, %s127
      %p134 = scmp.eq.s32.totalorder %s38, 1
      %p135 = por %p133, %p134
      %p136 = scmp.ne.s32.totalorder %s127, %s128
      %p137 = scmp.eq.s32.totalorder %s38, 0
      %p138 = por %p136, %p137
      %p139 = scmp.ne.s32.totalorder %s127, %s128
      %p140 = scmp.eq.s32.totalorder %s39, 1
      %p141 = por %p139, %p140
      %p143 = scmp.ne.s32.totalorder %s128, %s142
      %p144 = scmp.eq.s32.totalorder %s39, 0
      %p145 = por %p143, %p144
      %s146 = ssub.s32 %s33, %s40
      %p147 = scmp.eq.s32.totalorder %s146, 0
      %s149 = sadd.s32 %s148, 1
      %s150 = scalar_select %p147, %s148, %s149
      %p153 = pneg %p147
      %p154 = scmp.eq.s32.totalorder %s33, 1
      %p155 = por %p153, %p154
      %p156 = scmp.ne.s32.totalorder %s148, %s151
      %p157 = scmp.eq.s32.totalorder %s33, 0
      %p158 = por %p156, %p157
      %p159 = scmp.ne.s32.totalorder %s148, %s151
      %p160 = scmp.eq.s32.totalorder %s38, 1
      %p161 = por %p159, %p160
      %p162 = scmp.ne.s32.totalorder %s151, %s152
      %p163 = scmp.eq.s32.totalorder %s38, 0
      %p164 = por %p162, %p163
      %p165 = scmp.ne.s32.totalorder %s151, %s152
      %p166 = scmp.eq.s32.totalorder %s39, 1
      %p167 = por %p165, %p166
      %p169 = scmp.ne.s32.totalorder %s152, %s168
      %p170 = scmp.eq.s32.totalorder %s39, 0
      %p171 = por %p169, %p170
      %s172 = ssub.s32 %s33, %s40
      %p173 = scmp.eq.s32.totalorder %s172, 0
      %s175 = sadd.s32 %s174, 1
      %s176 = scalar_select %p173, %s174, %s175
      %p179 = pneg %p173
      %p180 = scmp.eq.s32.totalorder %s33, 1
      %p181 = por %p179, %p180
      %p182 = scmp.ne.s32.totalorder %s174, %s177
      %p183 = scmp.eq.s32.totalorder %s33, 0
      %p184 = por %p182, %p183
      %p185 = scmp.ne.s32.totalorder %s174, %s177
      %p186 = scmp.eq.s32.totalorder %s38, 1
      %p187 = por %p185, %p186
      %p188 = scmp.ne.s32.totalorder %s177, %s178
      %p189 = scmp.eq.s32.totalorder %s38, 0
      %p190 = por %p188, %p189
      %p191 = scmp.ne.s32.totalorder %s177, %s178
      %p192 = scmp.eq.s32.totalorder %s39, 1
      %p193 = por %p191, %p192
      %p195 = scmp.ne.s32.totalorder %s178, %s194
      %p196 = scmp.eq.s32.totalorder %s39, 0
      %p197 = por %p195, %p196
      %s198 = ssub.s32 %s33, %s40
      %p199 = scmp.eq.s32.totalorder %s198, 0
      %s201 = sadd.s32 %s200, 1
      %s202 = scalar_select %p199, %s200, %s201
      %p205 = pneg %p199
      %p206 = scmp.eq.s32.totalorder %s33, 1
      %p207 = por %p205, %p206
      %p208 = scmp.ne.s32.totalorder %s200, %s203
      %p209 = scmp.eq.s32.totalorder %s33, 0
      %p210 = por %p208, %p209
      %p211 = scmp.ne.s32.totalorder %s200, %s203
      %p212 = scmp.eq.s32.totalorder %s38, 1
      %p213 = por %p211, %p212
      %p214 = scmp.ne.s32.totalorder %s203, %s204
      %p215 = scmp.eq.s32.totalorder %s38, 0
      %p216 = por %p214, %p215
      %p217 = scmp.ne.s32.totalorder %s203, %s204
      %p218 = scmp.eq.s32.totalorder %s39, 1
      %p219 = por %p217, %p218
      %p221 = scmp.ne.s32.totalorder %s204, %s220
      %p222 = scmp.eq.s32.totalorder %s39, 0
      %p223 = por %p221, %p222
      %s224 = ssub.s32 %s33, %s40
      %p225 = scmp.eq.s32.totalorder %s224, 0
      %s227 = sadd.s32 %s226, 1
      %s228 = scalar_select %p225, %s226, %s227
      %p231 = pneg %p225
      %p232 = scmp.eq.s32.totalorder %s33, 1
      %p233 = por %p231, %p232
      %p234 = scmp.ne.s32.totalorder %s226, %s229
      %p235 = scmp.eq.s32.totalorder %s33, 0
      %p236 = por %p234, %p235
      %p237 = scmp.ne.s32.totalorder %s226, %s229
      %p238 = scmp.eq.s32.totalorder %s38, 1
      %p239 = por %p237, %p238
      %p240 = scmp.ne.s32.totalorder %s229, %s230
      %p241 = scmp.eq.s32.totalorder %s38, 0
      %p242 = por %p240, %p241
      %p243 = scmp.ne.s32.totalorder %s229, %s230
      %p244 = scmp.eq.s32.totalorder %s39, 1
      %p245 = por %p243, %p244
      %p247 = scmp.ne.s32.totalorder %s230, %s246
      %p248 = scmp.eq.s32.totalorder %s39, 0
      %p249 = por %p247, %p248
      %s250 = ssub.s32 %s33, %s40
      %p251 = scmp.eq.s32.totalorder %s250, 0
      %s253 = sadd.s32 %s252, 1
      %s254 = scalar_select %p251, %s252, %s253
      %p257 = pneg %p251
      %p258 = scmp.eq.s32.totalorder %s33, 1
      %p259 = por %p257, %p258
      %p260 = scmp.ne.s32.totalorder %s252, %s255
      %p261 = scmp.eq.s32.totalorder %s33, 0
      %p262 = por %p260, %p261
      %p263 = scmp.ne.s32.totalorder %s252, %s255
      %p264 = scmp.eq.s32.totalorder %s38, 1
      %p265 = por %p263, %p264
      %p266 = scmp.ne.s32.totalorder %s255, %s256
      %p267 = scmp.eq.s32.totalorder %s38, 0
      %p268 = por %p266, %p267
      %p269 = scmp.ne.s32.totalorder %s255, %s256
      %p270 = scmp.eq.s32.totalorder %s39, 1
      %p271 = por %p269, %p270
      %p273 = scmp.ne.s32.totalorder %s256, %s272
      %p274 = scmp.eq.s32.totalorder %s39, 0
      %p275 = por %p273, %p274
      %s276 = ssub.s32 %s33, %s40
      %p277 = scmp.eq.s32.totalorder %s276, 0
      %s279 = sadd.s32 %s278, 1
      %s280 = scalar_select %p277, %s278, %s279
      %p283 = pneg %p277
      %p284 = scmp.eq.s32.totalorder %s33, 1
      %p285 = por %p283, %p284
      %p286 = scmp.ne.s32.totalorder %s278, %s281
      %p287 = scmp.eq.s32.totalorder %s33, 0
      %p288 = por %p286, %p287
      %p289 = scmp.ne.s32.totalorder %s278, %s281
      %p290 = scmp.eq.s32.totalorder %s38, 1
      %p291 = por %p289, %p290
      %p292 = scmp.ne.s32.totalorder %s281, %s282
      %p293 = scmp.eq.s32.totalorder %s38, 0
      %p294 = por %p292, %p293
      %p295 = scmp.ne.s32.totalorder %s281, %s282
      %p296 = scmp.eq.s32.totalorder %s39, 1
      %p297 = por %p295, %p296
      %p299 = scmp.ne.s32.totalorder %s282, %s298
      %p300 = scmp.eq.s32.totalorder %s39, 0
      %p301 = por %p299, %p300
      %s302 = ssub.s32 %s33, %s40
      %p303 = scmp.eq.s32.totalorder %s302, 0
      %s305 = sadd.s32 %s304, 1
      %s306 = scalar_select %p303, %s304, %s305
      %p309 = pneg %p303
      %p310 = scmp.eq.s32.totalorder %s33, 1
      %p311 = por %p309, %p310
      %p312 = scmp.ne.s32.totalorder %s304, %s307
      %p313 = scmp.eq.s32.totalorder %s33, 0
      %p314 = por %p312, %p313
      %p315 = scmp.ne.s32.totalorder %s304, %s307
      %p316 = scmp.eq.s32.totalorder %s38, 1
      %p317 = por %p315, %p316
      %p318 = scmp.ne.s32.totalorder %s307, %s308
      %p319 = scmp.eq.s32.totalorder %s38, 0
      %p320 = por %p318, %p319
      %p321 = scmp.ne.s32.totalorder %s307, %s308
      %p322 = scmp.eq.s32.totalorder %s39, 1
      %p323 = por %p321, %p322
      %p325 = scmp.ne.s32.totalorder %s308, %s324
      %p326 = scmp.eq.s32.totalorder %s39, 0
      %p327 = por %p325, %p326
      %s328 = ssub.s32 %s33, %s40
      %p329 = scmp.eq.s32.totalorder %s328, 0
      %s331 = sadd.s32 %s330, 1
      %s332 = scalar_select %p329, %s330, %s331
      %p335 = pneg %p329
      %p336 = scmp.eq.s32.totalorder %s33, 1
      %p337 = por %p335, %p336
      %p338 = scmp.ne.s32.totalorder %s330, %s333
      %p339 = scmp.eq.s32.totalorder %s33, 0
      %p340 = por %p338, %p339
      %p341 = scmp.ne.s32.totalorder %s330, %s333
      %p342 = scmp.eq.s32.totalorder %s38, 1
      %p343 = por %p341, %p342
      %p344 = scmp.ne.s32.totalorder %s333, %s334
      %p345 = scmp.eq.s32.totalorder %s38, 0
      %p346 = por %p344, %p345
      %p347 = scmp.ne.s32.totalorder %s333, %s334
      %p348 = scmp.eq.s32.totalorder %s39, 1
      %p349 = por %p347, %p348
      %p351 = scmp.ne.s32.totalorder %s334, %s350
      %p352 = scmp.eq.s32.totalorder %s39, 0
      %p353 = por %p351, %p352
      %s354 = ssub.s32 %s33, %s40
      %p355 = scmp.eq.s32.totalorder %s354, 0
      %s357 = sadd.s32 %s356, 1
      %s358 = scalar_select %p355, %s356, %s357
      %p361 = pneg %p355
      %p362 = scmp.eq.s32.totalorder %s33, 1
      %p363 = por %p361, %p362
      %p364 = scmp.ne.s32.totalorder %s356, %s359
      %p365 = scmp.eq.s32.totalorder %s33, 0
      %p366 = por %p364, %p365
      %p367 = scmp.ne.s32.totalorder %s356, %s359
      %p368 = scmp.eq.s32.totalorder %s38, 1
      %p369 = por %p367, %p368
      %p370 = scmp.ne.s32.totalorder %s359, %s360
      %p371 = scmp.eq.s32.totalorder %s38, 0
      %p372 = por %p370, %p371
      %p373 = scmp.ne.s32.totalorder %s359, %s360
      %p374 = scmp.eq.s32.totalorder %s39, 1
      %p375 = por %p373, %p374
      %p377 = scmp.ne.s32.totalorder %s360, %s376
      %p378 = scmp.eq.s32.totalorder %s39, 0
      %p379 = por %p377, %p378
      %s380 = ssub.s32 %s33, %s40
      %p381 = scmp.eq.s32.totalorder %s380, 0
      %s383 = sadd.s32 %s382, 1
      %s384 = scalar_select %p381, %s382, %s383
      %p387 = pneg %p381
      %p388 = scmp.eq.s32.totalorder %s33, 1
      %p389 = por %p387, %p388
      %p390 = scmp.ne.s32.totalorder %s382, %s385
      %p391 = scmp.eq.s32.totalorder %s33, 0
      %p392 = por %p390, %p391
      %p393 = scmp.ne.s32.totalorder %s382, %s385
      %p394 = scmp.eq.s32.totalorder %s38, 1
      %p395 = por %p393, %p394
      %p396 = scmp.ne.s32.totalorder %s385, %s386
      %p397 = scmp.eq.s32.totalorder %s38, 0
      %p398 = por %p396, %p397
      %p399 = scmp.ne.s32.totalorder %s385, %s386
      %p400 = scmp.eq.s32.totalorder %s39, 1
      %p401 = por %p399, %p400
      %p403 = scmp.ne.s32.totalorder %s386, %s402
      %p404 = scmp.eq.s32.totalorder %s39, 0
      %p405 = por %p403, %p404
      %s406 = ssub.s32 %s33, %s40
      %p407 = scmp.eq.s32.totalorder %s406, 0
      %s409 = sadd.s32 %s408, 1
      %s410 = scalar_select %p407, %s408, %s409
      %p413 = pneg %p407
      %p414 = scmp.eq.s32.totalorder %s33, 1
      %p415 = por %p413, %p414
      %p416 = scmp.ne.s32.totalorder %s408, %s411
      %p417 = scmp.eq.s32.totalorder %s33, 0
      %p418 = por %p416, %p417
      %p419 = scmp.ne.s32.totalorder %s408, %s411
      %p420 = scmp.eq.s32.totalorder %s38, 1
      %p421 = por %p419, %p420
      %p422 = scmp.ne.s32.totalorder %s411, %s412
      %p423 = scmp.eq.s32.totalorder %s38, 0
      %p424 = por %p422, %p423
      %p425 = scmp.ne.s32.totalorder %s411, %s412
      %p426 = scmp.eq.s32.totalorder %s39, 1
      %p427 = por %p425, %p426
      %p429 = scmp.ne.s32.totalorder %s412, %s428
      %p430 = scmp.eq.s32.totalorder %s39, 0
      %p431 = por %p429, %p430
      %s432 = ssub.s32 %s33, %s40
      %p433 = scmp.eq.s32.totalorder %s432, 0
      %s435 = sadd.s32 %s434, 1
      %s436 = scalar_select %p433, %s434, %s435
      %p439 = pneg %p433
      %p440 = scmp.eq.s32.totalorder %s33, 1
      %p441 = por %p439, %p440
      %p442 = scmp.ne.s32.totalorder %s434, %s437
      %p443 = scmp.eq.s32.totalorder %s33, 0
      %p444 = por %p442, %p443
      %p445 = scmp.ne.s32.totalorder %s434, %s437
      %p446 = scmp.eq.s32.totalorder %s38, 1
      %p447 = por %p445, %p446
      %p448 = scmp.ne.s32.totalorder %s437, %s438
      %p449 = scmp.eq.s32.totalorder %s38, 0
      %p450 = por %p448, %p449
      %p451 = scmp.ne.s32.totalorder %s437, %s438
      %p452 = scmp.eq.s32.totalorder %s39, 1
      %p453 = por %p451, %p452
      %p455 = scmp.ne.s32.totalorder %s438, %s454
      %p456 = scmp.eq.s32.totalorder %s39, 0
      %p457 = por %p455, %p456
      %s458 = ssub.s32 %s33, %s40
      %p459 = scmp.eq.s32.totalorder %s458, 0
      %s461 = sadd.s32 %s460, 1
      %s462 = scalar_select %p459, %s460, %s461
      %p465 = pneg %p459
      %p466 = scmp.eq.s32.totalorder %s33, 1
      %p467 = por %p465, %p466
      %p468 = scmp.ne.s32.totalorder %s460, %s463
      %p469 = scmp.eq.s32.totalorder %s33, 0
      %p470 = por %p468, %p469
      %p471 = scmp.ne.s32.totalorder %s460, %s463
      %p472 = scmp.eq.s32.totalorder %s38, 1
      %p473 = por %p471, %p472
      %p474 = scmp.ne.s32.totalorder %s463, %s464
      %p475 = scmp.eq.s32.totalorder %s38, 0
      %p476 = por %p474, %p475
      %p477 = scmp.ne.s32.totalorder %s463, %s464
      %p478 = scmp.eq.s32.totalorder %s39, 1
      %p479 = por %p477, %p478
      %p481 = scmp.ne.s32.totalorder %s464, %s480
      %p482 = scmp.eq.s32.totalorder %s39, 0
      %p483 = por %p481, %p482
      %s484 = ssub.s32 %s33, %s40
      %p485 = scmp.eq.s32.totalorder %s484, 0
      %s487 = sadd.s32 %s486, 1
      %s488 = scalar_select %p485, %s486, %s487
      %p491 = pneg %p485
      %p492 = scmp.eq.s32.totalorder %s33, 1
      %p493 = por %p491, %p492
      %p494 = scmp.ne.s32.totalorder %s486, %s489
      %p495 = scmp.eq.s32.totalorder %s33, 0
      %p496 = por %p494, %p495
      %p497 = scmp.ne.s32.totalorder %s486, %s489
      %p498 = scmp.eq.s32.totalorder %s38, 1
      %p499 = por %p497, %p498
      %p500 = scmp.ne.s32.totalorder %s489, %s490
      %p501 = scmp.eq.s32.totalorder %s38, 0
      %p502 = por %p500, %p501
      %p503 = scmp.ne.s32.totalorder %s489, %s490
      %p504 = scmp.eq.s32.totalorder %s39, 1
      %p505 = por %p503, %p504
      %p507 = scmp.ne.s32.totalorder %s490, %s506
      %p508 = scmp.eq.s32.totalorder %s39, 0
      %p509 = por %p507, %p508
      %s510 = ssub.s32 %s33, %s40
      %p511 = scmp.eq.s32.totalorder %s510, 0
      %s513 = sadd.s32 %s512, 1
      %s514 = scalar_select %p511, %s512, %s513
      %p517 = pneg %p511
      %p518 = scmp.eq.s32.totalorder %s33, 1
      %p519 = por %p517, %p518
      %p520 = scmp.ne.s32.totalorder %s512, %s515
      %p521 = scmp.eq.s32.totalorder %s33, 0
      %p522 = por %p520, %p521
      %p523 = scmp.ne.s32.totalorder %s512, %s515
      %p524 = scmp.eq.s32.totalorder %s38, 1
      %p525 = por %p523, %p524
      %p526 = scmp.ne.s32.totalorder %s515, %s516
      %p527 = scmp.eq.s32.totalorder %s38, 0
      %p528 = por %p526, %p527
      %p529 = scmp.ne.s32.totalorder %s515, %s516
      %p530 = scmp.eq.s32.totalorder %s39, 1
      %p531 = por %p529, %p530
      %p533 = scmp.ne.s32.totalorder %s516, %s532
      %p534 = scmp.eq.s32.totalorder %s39, 0
      %p535 = por %p533, %p534
      %s536 = ssub.s32 %s33, %s40
      %p537 = scmp.eq.s32.totalorder %s536, 0
      %s539 = sadd.s32 %s538, 1
      %s540 = scalar_select %p537, %s538, %s539
      %p543 = pneg %p537
      %p544 = scmp.eq.s32.totalorder %s33, 1
      %p545 = por %p543, %p544
      %p546 = scmp.ne.s32.totalorder %s538, %s541
      %p547 = scmp.eq.s32.totalorder %s33, 0
      %p548 = por %p546, %p547
      %p549 = scmp.ne.s32.totalorder %s538, %s541
      %p550 = scmp.eq.s32.totalorder %s38, 1
      %p551 = por %p549, %p550
      %p552 = scmp.ne.s32.totalorder %s541, %s542
      %p553 = scmp.eq.s32.totalorder %s38, 0
      %p554 = por %p552, %p553
      %p555 = scmp.ne.s32.totalorder %s541, %s542
      %p556 = scmp.eq.s32.totalorder %s39, 1
      %p557 = por %p555, %p556
      %p559 = scmp.ne.s32.totalorder %s542, %s558
      %p560 = scmp.eq.s32.totalorder %s39, 0
      %p561 = por %p559, %p560
      %s563 = sadd.s32 %s562, 1
      %p566 = scmp.eq.s32.totalorder %s33, 1
      %p567 = scmp.ne.s32.totalorder %s562, %s564
      %p568 = scmp.eq.s32.totalorder %s33, 0
      %p569 = por %p567, %p568
      %p570 = scmp.ne.s32.totalorder %s562, %s564
      %p571 = scmp.eq.s32.totalorder %s38, 1
      %p572 = por %p570, %p571
      %p573 = scmp.ne.s32.totalorder %s564, %s565
      %p574 = scmp.eq.s32.totalorder %s38, 0
      %p575 = por %p573, %p574
      %p576 = scmp.ne.s32.totalorder %s564, %s565
      %p577 = scmp.eq.s32.totalorder %s39, 1
      %p578 = por %p576, %p577
      %p580 = scmp.ne.s32.totalorder %s565, %s579
      %p581 = scmp.eq.s32.totalorder %s39, 0
      %p582 = por %p580, %p581
      %s584 = sadd.s32 %s583, 1
      %p587 = scmp.eq.s32.totalorder %s33, 1
      %p588 = scmp.ne.s32.totalorder %s583, %s585
      %p589 = scmp.eq.s32.totalorder %s33, 0
      %p590 = por %p588, %p589
      %p591 = scmp.ne.s32.totalorder %s583, %s585
      %p592 = scmp.eq.s32.totalorder %s38, 1
      %p593 = por %p591, %p592
      %p594 = scmp.ne.s32.totalorder %s585, %s586
      %p595 = scmp.eq.s32.totalorder %s38, 0
      %p596 = por %p594, %p595
      %p597 = scmp.ne.s32.totalorder %s585, %s586
      %p598 = scmp.eq.s32.totalorder %s39, 1
      %p599 = por %p597, %p598
      %p601 = scmp.ne.s32.totalorder %s586, %s600
      %p602 = scmp.eq.s32.totalorder %s39, 0
      %p603 = por %p601, %p602
      %s605 = sadd.s32 %s604, 1
      %p608 = scmp.eq.s32.totalorder %s33, 1
      %p609 = scmp.ne.s32.totalorder %s604, %s606
      %p610 = scmp.eq.s32.totalorder %s33, 0
      %p611 = por %p609, %p610
      %p612 = scmp.ne.s32.totalorder %s604, %s606
      %p613 = scmp.eq.s32.totalorder %s38, 1
      %p614 = por %p612, %p613
      %p615 = scmp.ne.s32.totalorder %s606, %s607
      %p616 = scmp.eq.s32.totalorder %s38, 0
      %p617 = por %p615, %p616
      %p618 = scmp.ne.s32.totalorder %s606, %s607
      %p619 = scmp.eq.s32.totalorder %s39, 1
      %p620 = por %p618, %p619
      %p622 = scmp.ne.s32.totalorder %s607, %s621
      %p623 = scmp.eq.s32.totalorder %s39, 0
      %p624 = por %p622, %p623
      %p625 = scmp.le.s32.totalorder 1, %s33
      %p626 = scmp.lt.s32.totalorder %s33, 3
      %p627 = pnand %p625, %p626
      %p628 = pneg %p627
      // Predicated region
      $region9: #{tpu_custom_call.1} parent=5 // pred_check
        _
      $region10: #{tpu_custom_call.1} parent=5 // pred_check_branch
        %630 = sbr.rel (%p627) target = $region12
      $region11: #{tpu_custom_call.1} parent=5 // pred_region
        %s631 = ssub.s32 %s33, 1
        // Predicated region
        $region13: #{tpu_custom_call.1} parent=11 // pred_check
          %p632 = pneg %p54
        $region14: #{tpu_custom_call.1} parent=11 // pred_check_branch
          %634 = sbr.rel (%p632) target = $region16
        $region15: #{tpu_custom_call.1} parent=11 // pred_region
          %s636 = ssub.s32 256, 256
          %637 = vsyncadd [#allocation4], %s636
          %s638 = sshll.u32 [#allocation3], 4
          %s639 = int_to_ptr.vmem [resolvable:$true] %s638
          %644 = dma.hbm_to_vmem [thread:$0]  %s0, 256, %s639, [#allocation4], 128, 128, 8
        $region16: #{tpu_custom_call.1} parent=11 // pred_fallthru
          _
        // Predicated region
        $region17: #{tpu_custom_call.1} parent=11 // pred_check
          %p645 = pneg %p75
        $region18: #{tpu_custom_call.1} parent=11 // pred_check_branch
          %647 = sbr.rel (%p645) target = $region20
        $region19: #{tpu_custom_call.1} parent=11 // pred_region
          %s649 = ssub.s32 256, 256
          %650 = vsyncadd [#allocation7], %s649
          %s651 = sshll.u32 [#allocation6], 4
          %s652 = int_to_ptr.vmem [resolvable:$true] %s651
          %657 = dma.hbm_to_vmem [thread:$0]  %s1, 256, %s652, [#allocation7], 128, 128, 8
        $region20: #{tpu_custom_call.1} parent=11 // pred_fallthru
          _
        // Predicated region
        $region21: #{tpu_custom_call.1} parent=11 // pred_check
          %p658 = pneg %p96
        $region22: #{tpu_custom_call.1} parent=11 // pred_check_branch
          %660 = sbr.rel (%p658) target = $region24
        $region23: #{tpu_custom_call.1} parent=11 // pred_region
          %s662 = ssub.s32 128, 128
          %663 = vsyncadd [#allocation7], %s662
          %s665 = sshll.u32 [#allocation8], 4
          %s666 = int_to_ptr.vmem [resolvable:$true] %s665
          %668 = dma.hbm_to_vmem [thread:$0]  %s2, 128, %s666, [#allocation7]
        $region24: #{tpu_custom_call.1} parent=11 // pred_fallthru
          _
        // Predicated region
        $region25: #{tpu_custom_call.1} parent=11 // pred_check
          %p669 = pneg %p117
        $region26: #{tpu_custom_call.1} parent=11 // pred_check_branch
          %671 = sbr.rel (%p669) target = $region28
        $region27: #{tpu_custom_call.1} parent=11 // pred_region
          %s673 = ssub.s32 256, 256
          %674 = vsyncadd [#allocation10], %s673
          %s675 = sshll.u32 [#allocation9], 4
          %s676 = int_to_ptr.vmem [resolvable:$true] %s675
          %681 = dma.hbm_to_vmem [thread:$0]  %s3, 256, %s676, [#allocation10], 128, 128, 8
        $region28: #{tpu_custom_call.1} parent=11 // pred_fallthru
          _
        // Predicated region
        $region29: #{tpu_custom_call.1} parent=11 // pred_check
          %p682 = pneg %p138
        $region30: #{tpu_custom_call.1} parent=11 // pred_check_branch
          %684 = sbr.rel (%p682) target = $region32
        $region31: #{tpu_custom_call.1} parent=11 // pred_region
          _
        $region32: #{tpu_custom_call.1} parent=11 // pred_fallthru
          _
        // Predicated region
        $region33: #{tpu_custom_call.1} parent=11 // pred_check
          %p685 = pneg %p575
        $region34: #{tpu_custom_call.1} parent=11 // pred_check_branch
          %687 = sbr.rel (%p685) target = $region36
        $region35: #{tpu_custom_call.1} parent=11 // pred_region
          _
        $region36: #{tpu_custom_call.1} parent=11 // pred_fallthru
          _
        // Predicated region
        $region37: #{tpu_custom_call.1} parent=11 // pred_check
          %p688 = pneg %p596
        $region38: #{tpu_custom_call.1} parent=11 // pred_check_branch
          %690 = sbr.rel (%p688) target = $region40
        $region39: #{tpu_custom_call.1} parent=11 // pred_region
          _
        $region40: #{tpu_custom_call.1} parent=11 // pred_fallthru
          _
      $region12: #{tpu_custom_call.1} parent=5 // pred_fallthru
        _
      %p691 = scmp.lt.s32.totalorder %s33, 2
      // Predicated region
      $region41: #{tpu_custom_call.1} parent=5 // pred_check
        %p692 = pneg %p691
      $region42: #{tpu_custom_call.1} parent=5 // pred_check_branch
        %694 = sbr.rel (%p692) target = $region44
      $region43: #{tpu_custom_call.1} parent=5 // pred_region
        // Predicated region
        $region45: #{tpu_custom_call.1} parent=43 // pred_check
          %p695 = pneg %p158
        $region46: #{tpu_custom_call.1} parent=43 // pred_check_branch
          %697 = sbr.rel (%p695) target = $region48
        $region47: #{tpu_custom_call.1} parent=43 // pred_region
          %p698 = scmp.lt.s32.totalorder %s33, 1
          %s699 = scalar_select %p698, %s33, 1
          %s700 = scalar_lea.vmem %s5, %s699
        $region48: #{tpu_custom_call.1} parent=43 // pred_fallthru
          _
        // Predicated region
        $region49: #{tpu_custom_call.1} parent=43 // pred_check
          %p701 = pneg %p184
        $region50: #{tpu_custom_call.1} parent=43 // pred_check_branch
          %703 = sbr.rel (%p701) target = $region52
        $region51: #{tpu_custom_call.1} parent=43 // pred_region
          %p704 = scmp.lt.s32.totalorder %s33, 1
          %s705 = scalar_select %p704, %s33, 1
          %s706 = scalar_lea.vmem %s6, %s705
        $region52: #{tpu_custom_call.1} parent=43 // pred_fallthru
          _
        // Predicated region
        $region53: #{tpu_custom_call.1} parent=43 // pred_check
          %p707 = pneg %p210
        $region54: #{tpu_custom_call.1} parent=43 // pred_check_branch
          %709 = sbr.rel (%p707) target = $region56
        $region55: #{tpu_custom_call.1} parent=43 // pred_region
          %p710 = scmp.lt.s32.totalorder %s33, 1
          %s711 = scalar_select %p710, %s33, 1
          %s712 = smul.addr %s711, 4
          %s713 = smul.addr %s712, 8
          %s714 = scalar_lea.vmem %s7, %s713
        $region56: #{tpu_custom_call.1} parent=43 // pred_fallthru
          _
        // Predicated region
        $region57: #{tpu_custom_call.1} parent=43 // pred_check
          %p715 = pneg %p236
        $region58: #{tpu_custom_call.1} parent=43 // pred_check_branch
          %717 = sbr.rel (%p715) target = $region60
        $region59: #{tpu_custom_call.1} parent=43 // pred_region
          %p718 = scmp.lt.s32.totalorder %s33, 1
          %s719 = scalar_select %p718, %s33, 1
          %s720 = scalar_lea.vmem %s8, %s719
        $region60: #{tpu_custom_call.1} parent=43 // pred_fallthru
          _
        // Predicated region
        $region61: #{tpu_custom_call.1} parent=43 // pred_check
          %p721 = pneg %p262
        $region62: #{tpu_custom_call.1} parent=43 // pred_check_branch
          %723 = sbr.rel (%p721) target = $region64
        $region63: #{tpu_custom_call.1} parent=43 // pred_region
          %p724 = scmp.lt.s32.totalorder %s33, 1
          %s725 = scalar_select %p724, %s33, 1
          %s726 = smul.addr %s725, 4
          %s727 = smul.addr %s726, 8
          %s728 = scalar_lea.vmem %s9, %s727
        $region64: #{tpu_custom_call.1} parent=43 // pred_fallthru
          _
        // Predicated region
        $region65: #{tpu_custom_call.1} parent=43 // pred_check
          %p729 = pneg %p288
        $region66: #{tpu_custom_call.1} parent=43 // pred_check_branch
          %731 = sbr.rel (%p729) target = $region68
        $region67: #{tpu_custom_call.1} parent=43 // pred_region
          %s732 = sand.u32 %s33, 1
          %s733 = scalar_lea.sflag [#allocation4], %s732
          %s734 = sand.u32 %s278, 1
          %s735 = scalar_lea.vmem [#allocation11], %s734
          %s737 = ssub.s32 16, 16
          %738 = vsyncadd %s733, %s737
          %s739 = smul.addr %s33, 16
          %s740 = scalar_lea.hbm %s10, %s739
          %s742 = sshll.u32 %s735, 4
          %s743 = int_to_ptr.vmem [resolvable:$true] %s742
          %745 = dma.hbm_to_vmem [thread:$0]  %s740, 16, %s743, %s733
        $region68: #{tpu_custom_call.1} parent=43 // pred_fallthru
          _
        // Predicated region
        $region69: #{tpu_custom_call.1} parent=43 // pred_check
          %p746 = pneg %p314
        $region70: #{tpu_custom_call.1} parent=43 // pred_check_branch
          %748 = sbr.rel (%p746) target = $region72
        $region71: #{tpu_custom_call.1} parent=43 // pred_region
          %p749 = scmp.lt.s32.totalorder %s33, 1
          %s750 = scalar_select %p749, %s33, 1
          %s751 = smul.addr %s750, 4
          %s752 = smul.addr %s751, 8
          %s753 = scalar_lea.vmem %s11, %s752
        $region72: #{tpu_custom_call.1} parent=43 // pred_fallthru
          _
        // Predicated region
        $region73: #{tpu_custom_call.1} parent=43 // pred_check
          %p754 = pneg %p340
        $region74: #{tpu_custom_call.1} parent=43 // pred_check_branch
          %756 = sbr.rel (%p754) target = $region76
        $region75: #{tpu_custom_call.1} parent=43 // pred_region
          %s757 = sand.u32 %s33, 1
          %s758 = scalar_lea.sflag [#allocation4], %s757
          %s759 = sand.u32 %s330, 1
          %s760 = scalar_lea.vmem [#allocation12], %s759
          %s762 = ssub.s32 16, 16
          %763 = vsyncadd %s758, %s762
          %s764 = smul.addr %s33, 16
          %s765 = scalar_lea.hbm %s12, %s764
          %s767 = sshll.u32 %s760, 4
          %s768 = int_to_ptr.vmem [resolvable:$true] %s767
          %770 = dma.hbm_to_vmem [thread:$0]  %s765, 16, %s768, %s758
        $region76: #{tpu_custom_call.1} parent=43 // pred_fallthru
          _
        // Predicated region
        $region77: #{tpu_custom_call.1} parent=43 // pred_check
          %p771 = pneg %p366
        $region78: #{tpu_custom_call.1} parent=43 // pred_check_branch
          %773 = sbr.rel (%p771) target = $region80
        $region79: #{tpu_custom_call.1} parent=43 // pred_region
          %s774 = sand.u32 %s33, 1
          %s775 = scalar_lea.sflag [#allocation4], %s774
          %s776 = sand.u32 %s356, 1
          %s777 = smul.addr %s776, 32
          %s778 = scalar_lea.vmem [#allocation13], %s777
          %s780 = ssub.s32 512, 512
          %781 = vsyncadd %s775, %s780
          %s782 = smul.addr %s33, 4
          %s783 = smul.addr %s782, 128
          %s784 = scalar_lea.hbm %s13, %s783
          %s785 = sshll.u32 %s778, 4
          %s786 = int_to_ptr.vmem [resolvable:$true] %s785
          %791 = dma.hbm_to_vmem [thread:$0]  %s784, 512, %s786, %s775, 128, 128, 8
        $region80: #{tpu_custom_call.1} parent=43 // pred_fallthru
          _
        // Predicated region
        $region81: #{tpu_custom_call.1} parent=43 // pred_check
          %p792 = pneg %p392
        $region82: #{tpu_custom_call.1} parent=43 // pred_check_branch
          %794 = sbr.rel (%p792) target = $region84
        $region83: #{tpu_custom_call.1} parent=43 // pred_region
          %s795 = sand.u32 %s33, 1
          %s796 = scalar_lea.sflag [#allocation4], %s795
          %s797 = sand.u32 %s382, 1
          %s798 = scalar_lea.vmem [#allocation14], %s797
          %s800 = ssub.s32 16, 16
          %801 = vsyncadd %s796, %s800
          %s802 = smul.addr %s33, 16
          %s803 = scalar_lea.hbm %s14, %s802
          %s805 = sshll.u32 %s798, 4
          %s806 = int_to_ptr.vmem [resolvable:$true] %s805
          %808 = dma.hbm_to_vmem [thread:$0]  %s803, 16, %s806, %s796
        $region84: #{tpu_custom_call.1} parent=43 // pred_fallthru
          _
        // Predicated region
        $region85: #{tpu_custom_call.1} parent=43 // pred_check
          %p809 = pneg %p418
        $region86: #{tpu_custom_call.1} parent=43 // pred_check_branch
          %811 = sbr.rel (%p809) target = $region88
        $region87: #{tpu_custom_call.1} parent=43 // pred_region
          %s812 = sand.u32 %s33, 1
          %s813 = scalar_lea.sflag [#allocation4], %s812
          %s814 = sand.u32 %s408, 1
          %s815 = scalar_lea.vmem [#allocation15], %s814
          %s817 = ssub.s32 16, 16
          %818 = vsyncadd %s813, %s817
          %s819 = smul.addr %s33, 16
          %s820 = scalar_lea.hbm %s15, %s819
          %s822 = sshll.u32 %s815, 4
          %s823 = int_to_ptr.vmem [resolvable:$true] %s822
          %825 = dma.hbm_to_vmem [thread:$0]  %s820, 16, %s823, %s813
        $region88: #{tpu_custom_call.1} parent=43 // pred_fallthru
          _
        // Predicated region
        $region89: #{tpu_custom_call.1} parent=43 // pred_check
          %p826 = pneg %p444
        $region90: #{tpu_custom_call.1} parent=43 // pred_check_branch
          %828 = sbr.rel (%p826) target = $region92
        $region91: #{tpu_custom_call.1} parent=43 // pred_region
          %s829 = sand.u32 %s33, 1
          %s830 = scalar_lea.sflag [#allocation4], %s829
          %s831 = sand.u32 %s434, 1
          %s832 = scalar_lea.vmem [#allocation16], %s831
          %s834 = ssub.s32 16, 16
          %835 = vsyncadd %s830, %s834
          %s836 = smul.addr %s33, 16
          %s837 = scalar_lea.hbm %s16, %s836
          %s839 = sshll.u32 %s832, 4
          %s840 = int_to_ptr.vmem [resolvable:$true] %s839
          %842 = dma.hbm_to_vmem [thread:$0]  %s837, 16, %s840, %s830
        $region92: #{tpu_custom_call.1} parent=43 // pred_fallthru
          _
        // Predicated region
        $region93: #{tpu_custom_call.1} parent=43 // pred_check
          %p843 = pneg %p470
        $region94: #{tpu_custom_call.1} parent=43 // pred_check_branch
          %845 = sbr.rel (%p843) target = $region96
        $region95: #{tpu_custom_call.1} parent=43 // pred_region
          %s846 = sand.u32 %s33, 1
          %s847 = scalar_lea.sflag [#allocation4], %s846
          %s848 = sand.u32 %s460, 1
          %s849 = smul.addr %s848, 32
          %s850 = scalar_lea.vmem [#allocation17], %s849
          %s852 = ssub.s32 512, 512
          %853 = vsyncadd %s847, %s852
          %s854 = smul.addr %s33, 4
          %s855 = smul.addr %s854, 128
          %s856 = scalar_lea.hbm %s17, %s855
          %s857 = sshll.u32 %s850, 4
          %s858 = int_to_ptr.vmem [resolvable:$true] %s857
          %863 = dma.hbm_to_vmem [thread:$0]  %s856, 512, %s858, %s847, 128, 128, 8
        $region96: #{tpu_custom_call.1} parent=43 // pred_fallthru
          _
        // Predicated region
        $region97: #{tpu_custom_call.1} parent=43 // pred_check
          %p864 = pneg %p496
        $region98: #{tpu_custom_call.1} parent=43 // pred_check_branch
          %866 = sbr.rel (%p864) target = $region100
        $region99: #{tpu_custom_call.1} parent=43 // pred_region
          %s867 = sand.u32 %s33, 1
          %s868 = scalar_lea.sflag [#allocation4], %s867
          %s869 = sand.u32 %s486, 1
          %s870 = scalar_lea.vmem [#allocation18], %s869
          %s872 = ssub.s32 16, 16
          %873 = vsyncadd %s868, %s872
          %s874 = smul.addr %s33, 16
          %s875 = scalar_lea.hbm %s18, %s874
          %s877 = sshll.u32 %s870, 4
          %s878 = int_to_ptr.vmem [resolvable:$true] %s877
          %880 = dma.hbm_to_vmem [thread:$0]  %s875, 16, %s878, %s868
        $region100: #{tpu_custom_call.1} parent=43 // pred_fallthru
          _
        // Predicated region
        $region101: #{tpu_custom_call.1} parent=43 // pred_check
          %p881 = pneg %p522
        $region102: #{tpu_custom_call.1} parent=43 // pred_check_branch
          %883 = sbr.rel (%p881) target = $region104
        $region103: #{tpu_custom_call.1} parent=43 // pred_region
          %p884 = scmp.lt.s32.totalorder %s33, 1
          %s885 = scalar_select %p884, %s33, 1
          %s886 = smul.addr %s885, 8
          %s887 = smul.addr %s886, 8
          %s888 = scalar_lea.vmem %s19, %s887
        $region104: #{tpu_custom_call.1} parent=43 // pred_fallthru
          _
        // Predicated region
        $region105: #{tpu_custom_call.1} parent=43 // pred_check
          %p889 = pneg %p548
        $region106: #{tpu_custom_call.1} parent=43 // pred_check_branch
          %891 = sbr.rel (%p889) target = $region108
        $region107: #{tpu_custom_call.1} parent=43 // pred_region
          %p892 = scmp.lt.s32.totalorder %s33, 1
          %s893 = scalar_select %p892, %s33, 1
          %s894 = scalar_lea.vmem %s20, %s893
        $region108: #{tpu_custom_call.1} parent=43 // pred_fallthru
          _
      $region44: #{tpu_custom_call.1} parent=5 // pred_fallthru
        _
      %p895 = scmp.le.s32.totalorder 1, %s33
      %p896 = scmp.lt.s32.totalorder %s33, 3
      %p897 = pnand %p895, %p896
      %p898 = pneg %p897
      // Predicated region
      $region109: #{tpu_custom_call.1} parent=5 // pred_check
        _
      $region110: #{tpu_custom_call.1} parent=5 // pred_check_branch
        %900 = sbr.rel (%p897) target = $region112
      $region111: #{tpu_custom_call.1} parent=5 // pred_region
        %s901 = ssub.s32 %s33, 1
        // Predicated region
        $region113: #{tpu_custom_call.1} parent=111 // pred_check
          %p902 = pneg %p54
        $region114: #{tpu_custom_call.1} parent=111 // pred_check_branch
          %904 = sbr.rel (%p902) target = $region116
        $region115: #{tpu_custom_call.1} parent=111 // pred_region
          %905 = dma.done [#allocation4], 256
        $region116: #{tpu_custom_call.1} parent=111 // pred_fallthru
          _
        // Predicated region
        $region117: #{tpu_custom_call.1} parent=111 // pred_check
          %p906 = pneg %p75
        $region118: #{tpu_custom_call.1} parent=111 // pred_check_branch
          %908 = sbr.rel (%p906) target = $region120
        $region119: #{tpu_custom_call.1} parent=111 // pred_region
          %909 = dma.done [#allocation7], 256
        $region120: #{tpu_custom_call.1} parent=111 // pred_fallthru
          _
        // Predicated region
        $region121: #{tpu_custom_call.1} parent=111 // pred_check
          %p910 = pneg %p96
        $region122: #{tpu_custom_call.1} parent=111 // pred_check_branch
          %912 = sbr.rel (%p910) target = $region124
        $region123: #{tpu_custom_call.1} parent=111 // pred_region
          %913 = dma.done [#allocation7], 128
        $region124: #{tpu_custom_call.1} parent=111 // pred_fallthru
          _
        // Predicated region
        $region125: #{tpu_custom_call.1} parent=111 // pred_check
          %p914 = pneg %p117
        $region126: #{tpu_custom_call.1} parent=111 // pred_check_branch
          %916 = sbr.rel (%p914) target = $region128
        $region127: #{tpu_custom_call.1} parent=111 // pred_region
          %917 = dma.done [#allocation10], 256
        $region128: #{tpu_custom_call.1} parent=111 // pred_fallthru
          _
        %s918 = sand.u32 %s38, 1
        %s919 = scalar_lea.sflag [#allocation4], %s918
        %s920 = sand.u32 %s281, 1
        %s921 = scalar_lea.vmem [#allocation11], %s920
        // Predicated region
        $region129: #{tpu_custom_call.1} parent=111 // pred_check
          %p922 = pneg %p294
        $region130: #{tpu_custom_call.1} parent=111 // pred_check_branch
          %924 = sbr.rel (%p922) target = $region132
        $region131: #{tpu_custom_call.1} parent=111 // pred_region
          %925 = dma.done %s919, 16
        $region132: #{tpu_custom_call.1} parent=111 // pred_fallthru
          _
        %s926 = sand.u32 %s38, 1
        %s927 = scalar_lea.sflag [#allocation4], %s926
        %s928 = sand.u32 %s333, 1
        %s929 = scalar_lea.vmem [#allocation12], %s928
        // Predicated region
        $region133: #{tpu_custom_call.1} parent=111 // pred_check
          %p930 = pneg %p346
        $region134: #{tpu_custom_call.1} parent=111 // pred_check_branch
          %932 = sbr.rel (%p930) target = $region136
        $region135: #{tpu_custom_call.1} parent=111 // pred_region
          %933 = dma.done %s927, 16
        $region136: #{tpu_custom_call.1} parent=111 // pred_fallthru
          _
        %s934 = sand.u32 %s38, 1
        %s935 = scalar_lea.sflag [#allocation4], %s934
        %s936 = sand.u32 %s359, 1
        %s937 = smul.addr %s936, 32
        %s938 = scalar_lea.vmem [#allocation13], %s937
        // Predicated region
        $region137: #{tpu_custom_call.1} parent=111 // pred_check
          %p939 = pneg %p372
        $region138: #{tpu_custom_call.1} parent=111 // pred_check_branch
          %941 = sbr.rel (%p939) target = $region140
        $region139: #{tpu_custom_call.1} parent=111 // pred_region
          %942 = dma.done %s935, 512
        $region140: #{tpu_custom_call.1} parent=111 // pred_fallthru
          _
        %s943 = sand.u32 %s38, 1
        %s944 = scalar_lea.sflag [#allocation4], %s943
        %s945 = sand.u32 %s385, 1
        %s946 = scalar_lea.vmem [#allocation14], %s945
        // Predicated region
        $region141: #{tpu_custom_call.1} parent=111 // pred_check
          %p947 = pneg %p398
        $region142: #{tpu_custom_call.1} parent=111 // pred_check_branch
          %949 = sbr.rel (%p947) target = $region144
        $region143: #{tpu_custom_call.1} parent=111 // pred_region
          %950 = dma.done %s944, 16
        $region144: #{tpu_custom_call.1} parent=111 // pred_fallthru
          _
        %s951 = sand.u32 %s38, 1
        %s952 = scalar_lea.sflag [#allocation4], %s951
        %s953 = sand.u32 %s411, 1
        %s954 = scalar_lea.vmem [#allocation15], %s953
        // Predicated region
        $region145: #{tpu_custom_call.1} parent=111 // pred_check
          %p955 = pneg %p424
        $region146: #{tpu_custom_call.1} parent=111 // pred_check_branch
          %957 = sbr.rel (%p955) target = $region148
        $region147: #{tpu_custom_call.1} parent=111 // pred_region
          %958 = dma.done %s952, 16
        $region148: #{tpu_custom_call.1} parent=111 // pred_fallthru
          _
        %s959 = sand.u32 %s38, 1
        %s960 = scalar_lea.sflag [#allocation4], %s959
        %s961 = sand.u32 %s437, 1
        %s962 = scalar_lea.vmem [#allocation16], %s961
        // Predicated region
        $region149: #{tpu_custom_call.1} parent=111 // pred_check
          %p963 = pneg %p450
        $region150: #{tpu_custom_call.1} parent=111 // pred_check_branch
          %965 = sbr.rel (%p963) target = $region152
        $region151: #{tpu_custom_call.1} parent=111 // pred_region
          %966 = dma.done %s960, 16
        $region152: #{tpu_custom_call.1} parent=111 // pred_fallthru
          _
        %s967 = sand.u32 %s38, 1
        %s968 = scalar_lea.sflag [#allocation4], %s967
        %s969 = sand.u32 %s463, 1
        %s970 = smul.addr %s969, 32
        %s971 = scalar_lea.vmem [#allocation17], %s970
        // Predicated region
        $region153: #{tpu_custom_call.1} parent=111 // pred_check
          %p972 = pneg %p476
        $region154: #{tpu_custom_call.1} parent=111 // pred_check_branch
          %974 = sbr.rel (%p972) target = $region156
        $region155: #{tpu_custom_call.1} parent=111 // pred_region
          %975 = dma.done %s968, 512
        $region156: #{tpu_custom_call.1} parent=111 // pred_fallthru
          _
        %s976 = sand.u32 %s38, 1
        %s977 = scalar_lea.sflag [#allocation4], %s976
        %s978 = sand.u32 %s489, 1
        %s979 = scalar_lea.vmem [#allocation18], %s978
        // Predicated region
        $region157: #{tpu_custom_call.1} parent=111 // pred_check
          %p980 = pneg %p502
        $region158: #{tpu_custom_call.1} parent=111 // pred_check_branch
          %982 = sbr.rel (%p980) target = $region160
        $region159: #{tpu_custom_call.1} parent=111 // pred_region
          %983 = dma.done %s977, 16
        $region160: #{tpu_custom_call.1} parent=111 // pred_fallthru
          _
        %p984 = pneg %p54
        %p985 = pneg %p51
        %p986 = pneg %p75
        %p987 = pneg %p72
        %p988 = pneg %p96
        %p989 = pneg %p93
        %p990 = pneg %p117
        %p991 = pneg %p114
        %p992 = pneg %p138
        %p993 = pneg %p135
        %p994 = scmp.lt.s32.totalorder %s38, 1
        %s995 = scalar_select %p994, %s38, 1
        %s996 = scalar_lea.vmem %s5, %s995
        %p997 = pneg %p164
        %p998 = pneg %p161
        %p999 = scmp.lt.s32.totalorder %s38, 1
        %s1000 = scalar_select %p999, %s38, 1
        %s1001 = scalar_lea.vmem %s6, %s1000
        %p1002 = pneg %p190
        %p1003 = pneg %p187
        %p1004 = scmp.lt.s32.totalorder %s38, 1
        %s1005 = scalar_select %p1004, %s38, 1
        %s1006 = smul.addr %s1005, 4
        %s1007 = smul.addr %s1006, 8
        %s1008 = scalar_lea.vmem %s7, %s1007
        %p1009 = pneg %p216
        %p1010 = pneg %p213
        %p1011 = scmp.lt.s32.totalorder %s38, 1
        %s1012 = scalar_select %p1011, %s38, 1
        %s1013 = scalar_lea.vmem %s8, %s1012
        %p1014 = pneg %p242
        %p1015 = pneg %p239
        %p1016 = scmp.lt.s32.totalorder %s38, 1
        %s1017 = scalar_select %p1016, %s38, 1
        %s1018 = smul.addr %s1017, 4
        %s1019 = smul.addr %s1018, 8
        %s1020 = scalar_lea.vmem %s9, %s1019
        %p1021 = pneg %p268
        %p1022 = pneg %p265
        %s1023 = sand.u32 %s38, 1
        %s1024 = scalar_lea.sflag [#allocation4], %s1023
        %s1025 = sand.u32 %s281, 1
        %s1026 = scalar_lea.vmem [#allocation11], %s1025
        %p1027 = pneg %p294
        %p1028 = pneg %p291
        %p1029 = scmp.lt.s32.totalorder %s38, 1
        %s1030 = scalar_select %p1029, %s38, 1
        %s1031 = smul.addr %s1030, 4
        %s1032 = smul.addr %s1031, 8
        %s1033 = scalar_lea.vmem %s11, %s1032
        %p1034 = pneg %p320
        %p1035 = pneg %p317
        %s1036 = sand.u32 %s38, 1
        %s1037 = scalar_lea.sflag [#allocation4], %s1036
        %s1038 = sand.u32 %s333, 1
        %s1039 = scalar_lea.vmem [#allocation12], %s1038
        %p1040 = pneg %p346
        %p1041 = pneg %p343
        %s1042 = sand.u32 %s38, 1
        %s1043 = scalar_lea.sflag [#allocation4], %s1042
        %s1044 = sand.u32 %s359, 1
        %s1045 = smul.addr %s1044, 32
        %s1046 = scalar_lea.vmem [#allocation13], %s1045
        %p1047 = pneg %p372
        %p1048 = pneg %p369
        %s1049 = sand.u32 %s38, 1
        %s1050 = scalar_lea.sflag [#allocation4], %s1049
        %s1051 = sand.u32 %s385, 1
        %s1052 = scalar_lea.vmem [#allocation14], %s1051
        %p1053 = pneg %p398
        %p1054 = pneg %p395
        %s1055 = sand.u32 %s38, 1
        %s1056 = scalar_lea.sflag [#allocation4], %s1055
        %s1057 = sand.u32 %s411, 1
        %s1058 = scalar_lea.vmem [#allocation15], %s1057
        %p1059 = pneg %p424
        %p1060 = pneg %p421
        %s1061 = sand.u32 %s38, 1
        %s1062 = scalar_lea.sflag [#allocation4], %s1061
        %s1063 = sand.u32 %s437, 1
        %s1064 = scalar_lea.vmem [#allocation16], %s1063
        %p1065 = pneg %p450
        %p1066 = pneg %p447
        %s1067 = sand.u32 %s38, 1
        %s1068 = scalar_lea.sflag [#allocation4], %s1067
        %s1069 = sand.u32 %s463, 1
        %s1070 = smul.addr %s1069, 32
        %s1071 = scalar_lea.vmem [#allocation17], %s1070
        %p1072 = pneg %p476
        %p1073 = pneg %p473
        %s1074 = sand.u32 %s38, 1
        %s1075 = scalar_lea.sflag [#allocation4], %s1074
        %s1076 = sand.u32 %s489, 1
        %s1077 = scalar_lea.vmem [#allocation18], %s1076
        %p1078 = pneg %p502
        %p1079 = pneg %p499
        %p1080 = scmp.lt.s32.totalorder %s38, 1
        %s1081 = scalar_select %p1080, %s38, 1
        %s1082 = smul.addr %s1081, 8
        %s1083 = smul.addr %s1082, 8
        %s1084 = scalar_lea.vmem %s19, %s1083
        %p1085 = pneg %p528
        %p1086 = pneg %p525
        %p1087 = scmp.lt.s32.totalorder %s38, 1
        %s1088 = scalar_select %p1087, %s38, 1
        %s1089 = scalar_lea.vmem %s20, %s1088
        %p1090 = pneg %p554
        %p1091 = pneg %p551
        %p1092 = pneg %p575
        %p1093 = pneg %p572
        %p1094 = pneg %p596
        %p1095 = pneg %p593
        %p1096 = pneg %p617
        %p1097 = pneg %p614
        %p1098 = scmp.lt.s32.totalorder %s38, 1
        %s1099 = scalar_select %p1098, %s38, 1
        %s1100 = scalar_lea.vmem %s5, %s1099
        %p1101 = scmp.lt.s32.totalorder %s38, 1
        %s1102 = scalar_select %p1101, %s38, 1
        %s1103 = scalar_lea.vmem %s6, %s1102
        %p1104 = scmp.lt.s32.totalorder %s38, 1
        %s1105 = scalar_select %p1104, %s38, 1
        %s1106 = smul.addr %s1105, 4
        %s1107 = smul.addr %s1106, 8
        %s1108 = scalar_lea.vmem %s7, %s1107
        %p1109 = scmp.lt.s32.totalorder %s38, 1
        %s1110 = scalar_select %p1109, %s38, 1
        %s1111 = scalar_lea.vmem %s8, %s1110
        %p1112 = scmp.lt.s32.totalorder %s38, 1
        %s1113 = scalar_select %p1112, %s38, 1
        %s1114 = smul.addr %s1113, 4
        %s1115 = smul.addr %s1114, 8
        %s1116 = scalar_lea.vmem %s9, %s1115
        %p1117 = scmp.lt.s32.totalorder %s38, 1
        %s1118 = scalar_select %p1117, %s38, 1
        %s1119 = smul.addr %s1118, 4
        %s1120 = smul.addr %s1119, 8
        %s1121 = scalar_lea.vmem %s11, %s1120
        %p1122 = scmp.lt.s32.totalorder %s38, 1
        %s1123 = scalar_select %p1122, %s38, 1
        %s1124 = smul.addr %s1123, 8
        %s1125 = smul.addr %s1124, 8
        %s1126 = scalar_lea.vmem %s19, %s1125
        %p1127 = scmp.lt.s32.totalorder %s38, 1
        %s1128 = scalar_select %p1127, %s38, 1
        %s1129 = scalar_lea.vmem %s20, %s1128
        %p1130 = scmp.eq.s32.totalorder %s38, 0
        // Predicated region
        $region161: #{tpu_custom_call.1} parent=111 // pred_check
          %p1131 = pneg %p1130
        $region162: #{tpu_custom_call.1} parent=111 // pred_check_branch
          %1133 = sbr.rel (%p1131) target = $region164
        $region163: #{tpu_custom_call.1} parent=111 // pred_region
          %v1134 = vld [vmem:[#allocation3] sm:$0xff]
          %v1135 = vld [vmem:[#allocation3 + $0x8] sm:$0xff]
          %v1136 = vld [vmem:[#allocation9] sm:$0xff]
          %v1137 = vld [vmem:[#allocation9 + $0x8] sm:$0xff]
          %v1138 = vld [vmem:[%s4] sm:$0x1]
          %v1140 = vlaneseq
          %v1141 = vshrl.u32 %v1140, 7
          %v1142 = vsub.s32 0, %v1141
          %v1143 = vrot.slane %v1138, %v1142
          %vm1145 = vcmask 130048
          %v1147 = vsel %vm1145, %v1134, 0
          %v1150 = vsel %vm1145, %v1135, 0
          %1152 = vmatprep.subr.mxu0 0.0
          %1153 = vmatpush1.msra.mxu0 %v1136
          %1154 = vmatprep.subr.mxu0 0.0
          %1155 = vmatpush1.msra.mxu0 %v1137
          %1156 = vmatprep.subr.mxu0 0.0
          %1157 = vmatpush1.msra.mxu0 0.0
          %1158 = vmatprep.subr.mxu0 0.0
          %1159 = vmatpush1.msra.mxu0 0.0
          %1160 = vmatprep.subr.mxu0 0.0
          %1161 = vmatpush1.msra.mxu0 0.0
          %1162 = vmatprep.subr.mxu0 0.0
          %1163 = vmatpush1.msra.mxu0 0.0
          %1164 = vmatprep.subr.mxu0 0.0
          %1165 = vmatpush1.msra.mxu0 0.0
          %1166 = vmatprep.subr.mxu0 0.0
          %1167 = vmatpush1.msra.mxu0 0.0
          %1168 = vmatprep.subr.mxu0 0.0
          %1169 = vmatpush1.msra.mxu0 0.0
          %1170 = vmatprep.subr.mxu0 0.0
          %1171 = vmatpush1.msra.mxu0 0.0
          %1172 = vmatprep.subr.mxu0 0.0
          %1173 = vmatpush1.msra.mxu0 0.0
          %1174 = vmatprep.subr.mxu0 0.0
          %1175 = vmatpush1.msra.mxu0 0.0
          %1176 = vmatprep.subr.mxu0 0.0
          %1177 = vmatpush1.msra.mxu0 0.0
          %1178 = vmatprep.subr.mxu0 0.0
          %1179 = vmatpush1.msra.mxu0 0.0
          %1180 = vmatprep.subr.mxu0 0.0
          %1181 = vmatpush1.msra.mxu0 0.0
          %1182 = vmatprep.subr.mxu0 0.0
          %1183 = vmatpush1.msra.mxu0 0.0
          %1184 = vmatprep.subr.mxu0 0.0
          %1185 = vmatpush1.msra.mxu0 0.0
          %1186 = vmatprep.subr.mxu0 0.0
          %1187 = vmatpush1.msra.mxu0 0.0
          %1188 = vmatprep.subr.mxu0 0.0
          %1189 = vmatpush1.msra.mxu0 0.0
          %1190 = vmatprep.subr.mxu0 0.0
          %1191 = vmatpush1.msra.mxu0 0.0
          %1192 = vmatprep.subr.mxu0 0.0
          %1193 = vmatpush1.msra.mxu0 0.0
          %1194 = vmatprep.subr.mxu0 0.0
          %1195 = vmatpush1.msra.mxu0 0.0
          %1196 = vmatprep.subr.mxu0 0.0
          %1197 = vmatpush1.msra.mxu0 0.0
          %1198 = vmatprep.subr.mxu0 0.0
          %1199 = vmatpush1.msra.mxu0 0.0
          %1200 = vmatprep.subr.mxu0 0.0
          %1201 = vmatpush1.msra.mxu0 0.0
          %1202 = vmatprep.subr.mxu0 0.0
          %1203 = vmatpush1.msra.mxu0 0.0
          %1204 = vmatprep.subr.mxu0 0.0
          %1205 = vmatpush1.msra.mxu0 0.0
          %1206 = vmatprep.subr.mxu0 0.0
          %1207 = vmatpush1.msra.mxu0 0.0
          %1208 = vmatprep.subr.mxu0 0.0
          %1209 = vmatpush1.msra.mxu0 0.0
          %1210 = vmatprep.subr.mxu0 0.0
          %1211 = vmatpush1.msra.mxu0 0.0
          %1212 = vmatprep.subr.mxu0 0.0
          %1213 = vmatpush1.msra.mxu0 0.0
          %1214 = vmatprep.subr.mxu0 0.0
          %1215 = vmatpush1.msra.mxu0 0.0
          %1216 = vmatprep.mubr.f32.mxu0 0.0
          %1217 = vmatmul.mubr.f32.gmra.mrb[0].mxu0 %v1147
          %v1218 = vpop.f32.mrb[0].mxu0
          %v1219 = vadd.f32 %v1143, %v1218
          %v1220 = vpop.f32.mrb[0].mxu0
          %1221 = vmatprep.mubr.f32.mxu0 0.0
          %1222 = vmatmul.mubr.f32.gmra.mrb[0].mxu0 %v1150
          %v1223 = vpop.f32.mrb[0].mxu0
          %v1224 = vadd.f32 %v1143, %v1223
          %v1225 = vpop.f32.mrb[0].mxu0
          %1226 = vdwg.mxu0
          %v1227 = vld [vmem:[#allocation6] sm:$0xff]
          %v1228 = vld [vmem:[#allocation6 + $0x8] sm:$0xff]
          %v1229 = vadd.f32 %v1219, %v1227
          %v1230 = vadd.f32 %v1224, %v1228
          %vm1231 = vcmask 261120
          %1232 = vst.msk [vmem:[#allocation2] sm:$0xff] %vm1231, %v1229
          %1233 = vst.msk [vmem:[#allocation2 + $0x8] sm:$0xff] %vm1231, %v1230
        $region164: #{tpu_custom_call.1} parent=111 // pred_fallthru
          _
        %v1234 = vld [vmem:[#allocation2] sm:$0xff]
        %v1235 = vld [vmem:[#allocation2 + $0x8] sm:$0xff]
        %v1236 = vld [vmem:[#allocation8] sm:$0xff]
        %v1237 = vld [vmem:[%s1100] sm:$0x1]
        %v1238 = vld [vmem:[%s1103] sm:$0x1]
        %vm1239 = vcmask 261120
        %v1240 = vsel %vm1239, %v1234, 0.0
        %1241 = vadd.xlane.f32.xlu0 %v1240
        %v1242 = vpop.xlane.xlu0 %1241
        %v1243 = vsel %vm1239, %v1235, 0.0
        %1244 = vadd.xlane.f32.xlu0 %v1243
        %v1245 = vpop.xlane.xlu0 %1244
        %v1246 = vrcp.pop 32.0
        %v1247 = vmul.f32 %v1242, %v1246
        %v1248 = vmul.f32 %v1245, %v1246
        %v1249 = vsub.f32 %v1234, %v1247
        %v1250 = vsub.f32 %v1235, %v1248
        %v1251 = vmul.f32 %v1249, %v1249
        %v1252 = vmul.f32 %v1250, %v1250
        %v1253 = vsel %vm1239, %v1251, 0.0
        %1254 = vadd.xlane.f32.xlu0 %v1253
        %v1255 = vpop.xlane.xlu0 %1254
        %v1256 = vsel %vm1239, %v1252, 0.0
        %1257 = vadd.xlane.f32.xlu0 %v1256
        %v1258 = vpop.xlane.xlu0 %1257
        %v1259 = vmul.f32 %v1255, %v1246
        %v1260 = vmul.f32 %v1258, %v1246
        %v1261 = vadd.f32 %v1259, 1e-05
        %v1262 = vadd.f32 %v1260, 1e-05
        %v1263 = vrsqrt.pop %v1261
        %v1264 = vrsqrt.pop %v1262
        %v1265 = vmul.f32 %v1249, %v1263
        %v1266 = vmul.f32 %v1250, %v1264
        %v1268 = vlaneseq
        %v1269 = vshrl.u32 %v1268, 7
        %v1270 = vsub.s32 0, %v1269
        %v1271 = vrot.slane %v1237, %v1270
        %v1273 = vmul.f32 %v1265, %v1271
        %v1274 = vmul.f32 %v1266, %v1271
        %v1276 = vlaneseq
        %v1277 = vshrl.u32 %v1276, 7
        %v1278 = vsub.s32 0, %v1277
        %v1279 = vrot.slane %v1238, %v1278
        %v1281 = vadd.f32 %v1273, %v1279
        %v1282 = vadd.f32 %v1274, %v1279
        %v1283 = vld [vmem:[%s1108] sm:$0xff]
        %v1284 = vld [vmem:[%s1108 + $0x8] sm:$0xff]
        %v1285 = vld [vmem:[%s1108 + $0x10] sm:$0xff]
        %v1286 = vld [vmem:[%s1108 + $0x18] sm:$0xff]
        %v1287 = vld [vmem:[%s1111] sm:$0x1]
        %v1289 = vlaneseq
        %v1290 = vshrl.u32 %v1289, 7
        %v1291 = vsub.s32 0, %v1290
        %v1292 = vrot.slane %v1287, %v1291
        %v1295 = vsel %vm1239, %v1281, 0
        %v1298 = vsel %vm1239, %v1282, 0
        %1300 = vmatprep.subr.mxu0 0.0
        %1301 = vmatpush1.msra.mxu0 %v1283
        %1302 = vmatprep.subr.mxu0 0.0
        %1303 = vmatpush1.msra.mxu0 %v1284
        %1304 = vmatprep.subr.mxu0 0.0
        %1305 = vmatpush1.msra.mxu0 %v1285
        %1306 = vmatprep.subr.mxu0 0.0
        %1307 = vmatpush1.msra.mxu0 %v1286
        %1308 = vmatprep.subr.mxu0 0.0
        %1309 = vmatpush1.msra.mxu0 0.0
        %1310 = vmatprep.subr.mxu0 0.0
        %1311 = vmatpush1.msra.mxu0 0.0
        %1312 = vmatprep.subr.mxu0 0.0
        %1313 = vmatpush1.msra.mxu0 0.0
        %1314 = vmatprep.subr.mxu0 0.0
        %1315 = vmatpush1.msra.mxu0 0.0
        %1316 = vmatprep.subr.mxu0 0.0
        %1317 = vmatpush1.msra.mxu0 0.0
        %1318 = vmatprep.subr.mxu0 0.0
        %1319 = vmatpush1.msra.mxu0 0.0
        %1320 = vmatprep.subr.mxu0 0.0
        %1321 = vmatpush1.msra.mxu0 0.0
        %1322 = vmatprep.subr.mxu0 0.0
        %1323 = vmatpush1.msra.mxu0 0.0
        %1324 = vmatprep.subr.mxu0 0.0
        %1325 = vmatpush1.msra.mxu0 0.0
        %1326 = vmatprep.subr.mxu0 0.0
        %1327 = vmatpush1.msra.mxu0 0.0
        %1328 = vmatprep.subr.mxu0 0.0
        %1329 = vmatpush1.msra.mxu0 0.0
        %1330 = vmatprep.subr.mxu0 0.0
        %1331 = vmatpush1.msra.mxu0 0.0
        %1332 = vmatprep.subr.mxu0 0.0
        %1333 = vmatpush1.msra.mxu0 0.0
        %1334 = vmatprep.subr.mxu0 0.0
        %1335 = vmatpush1.msra.mxu0 0.0
        %1336 = vmatprep.subr.mxu0 0.0
        %1337 = vmatpush1.msra.mxu0 0.0
        %1338 = vmatprep.subr.mxu0 0.0
        %1339 = vmatpush1.msra.mxu0 0.0
        %1340 = vmatprep.subr.mxu0 0.0
        %1341 = vmatpush1.msra.mxu0 0.0
        %1342 = vmatprep.subr.mxu0 0.0
        %1343 = vmatpush1.msra.mxu0 0.0
        %1344 = vmatprep.subr.mxu0 0.0
        %1345 = vmatpush1.msra.mxu0 0.0
        %1346 = vmatprep.subr.mxu0 0.0
        %1347 = vmatpush1.msra.mxu0 0.0
        %1348 = vmatprep.subr.mxu0 0.0
        %1349 = vmatpush1.msra.mxu0 0.0
        %1350 = vmatprep.subr.mxu0 0.0
        %1351 = vmatpush1.msra.mxu0 0.0
        %1352 = vmatprep.subr.mxu0 0.0
        %1353 = vmatpush1.msra.mxu0 0.0
        %1354 = vmatprep.subr.mxu0 0.0
        %1355 = vmatpush1.msra.mxu0 0.0
        %1356 = vmatprep.subr.mxu0 0.0
        %1357 = vmatpush1.msra.mxu0 0.0
        %1358 = vmatprep.subr.mxu0 0.0
        %1359 = vmatpush1.msra.mxu0 0.0
        %1360 = vmatprep.subr.mxu0 0.0
        %1361 = vmatpush1.msra.mxu0 0.0
        %1362 = vmatprep.subr.mxu0 0.0
        %1363 = vmatpush1.msra.mxu0 0.0
        %1364 = vmatprep.mubr.f32.mxu0 0.0
        %1365 = vmatmul.mubr.f32.gmra.mrb[0].mxu0 %v1295
        %v1366 = vpop.f32.mrb[0].mxu0
        %v1367 = vadd.f32 %v1292, %v1366
        %v1368 = vpop.f32.mrb[0].mxu0
        %1369 = vmatprep.mubr.f32.mxu0 0.0
        %1370 = vmatmul.mubr.f32.gmra.mrb[0].mxu0 %v1298
        %v1371 = vpop.f32.mrb[0].mxu0
        %v1372 = vadd.f32 %v1292, %v1371
        %v1373 = vpop.f32.mrb[0].mxu0
        %1374 = vdwg.mxu0
        %v1375 = vld [vmem:[%s1116] sm:$0xff]
        %v1376 = vld [vmem:[%s1116 + $0x8] sm:$0xff]
        %v1377 = vld [vmem:[%s1116 + $0x10] sm:$0xff]
        %v1378 = vld [vmem:[%s1116 + $0x18] sm:$0xff]
        %v1379 = vld [vmem:[%s921] sm:$0x1]
        %v1381 = vlaneseq
        %v1382 = vshrl.u32 %v1381, 7
        %v1383 = vsub.s32 0, %v1382
        %v1384 = vrot.slane %v1379, %v1383
        %1386 = vmatprep.subr.mxu0 0.0
        %1387 = vmatpush1.msra.mxu0 %v1375
        %1388 = vmatprep.subr.mxu0 0.0
        %1389 = vmatpush1.msra.mxu0 %v1376
        %1390 = vmatprep.subr.mxu0 0.0
        %1391 = vmatpush1.msra.mxu0 %v1377
        %1392 = vmatprep.subr.mxu0 0.0
        %1393 = vmatpush1.msra.mxu0 %v1378
        %1394 = vmatprep.subr.mxu0 0.0
        %1395 = vmatpush1.msra.mxu0 0.0
        %1396 = vmatprep.subr.mxu0 0.0
        %1397 = vmatpush1.msra.mxu0 0.0
        %1398 = vmatprep.subr.mxu0 0.0
        %1399 = vmatpush1.msra.mxu0 0.0
        %1400 = vmatprep.subr.mxu0 0.0
        %1401 = vmatpush1.msra.mxu0 0.0
        %1402 = vmatprep.subr.mxu0 0.0
        %1403 = vmatpush1.msra.mxu0 0.0
        %1404 = vmatprep.subr.mxu0 0.0
        %1405 = vmatpush1.msra.mxu0 0.0
        %1406 = vmatprep.subr.mxu0 0.0
        %1407 = vmatpush1.msra.mxu0 0.0
        %1408 = vmatprep.subr.mxu0 0.0
        %1409 = vmatpush1.msra.mxu0 0.0
        %1410 = vmatprep.subr.mxu0 0.0
        %1411 = vmatpush1.msra.mxu0 0.0
        %1412 = vmatprep.subr.mxu0 0.0
        %1413 = vmatpush1.msra.mxu0 0.0
        %1414 = vmatprep.subr.mxu0 0.0
        %1415 = vmatpush1.msra.mxu0 0.0
        %1416 = vmatprep.subr.mxu0 0.0
        %1417 = vmatpush1.msra.mxu0 0.0
        %1418 = vmatprep.subr.mxu0 0.0
        %1419 = vmatpush1.msra.mxu0 0.0
        %1420 = vmatprep.subr.mxu0 0.0
        %1421 = vmatpush1.msra.mxu0 0.0
        %1422 = vmatprep.subr.mxu0 0.0
        %1423 = vmatpush1.msra.mxu0 0.0
        %1424 = vmatprep.subr.mxu0 0.0
        %1425 = vmatpush1.msra.mxu0 0.0
        %1426 = vmatprep.subr.mxu0 0.0
        %1427 = vmatpush1.msra.mxu0 0.0
        %1428 = vmatprep.subr.mxu0 0.0
        %1429 = vmatpush1.msra.mxu0 0.0
        %1430 = vmatprep.subr.mxu0 0.0
        %1431 = vmatpush1.msra.mxu0 0.0
        %1432 = vmatprep.subr.mxu0 0.0
        %1433 = vmatpush1.msra.mxu0 0.0
        %1434 = vmatprep.subr.mxu0 0.0
        %1435 = vmatpush1.msra.mxu0 0.0
        %1436 = vmatprep.subr.mxu0 0.0
        %1437 = vmatpush1.msra.mxu0 0.0
        %1438 = vmatprep.subr.mxu0 0.0
        %1439 = vmatpush1.msra.mxu0 0.0
        %1440 = vmatprep.subr.mxu0 0.0
        %1441 = vmatpush1.msra.mxu0 0.0
        %1442 = vmatprep.subr.mxu0 0.0
        %1443 = vmatpush1.msra.mxu0 0.0
        %1444 = vmatprep.subr.mxu0 0.0
        %1445 = vmatpush1.msra.mxu0 0.0
        %1446 = vmatprep.subr.mxu0 0.0
        %1447 = vmatpush1.msra.mxu0 0.0
        %1448 = vmatprep.subr.mxu0 0.0
        %1449 = vmatpush1.msra.mxu0 0.0
        %1450 = vmatprep.mubr.f32.mxu0 0.0
        %1451 = vmatmul.mubr.f32.gmra.mrb[0].mxu0 %v1295
        %v1452 = vpop.f32.mrb[0].mxu0
        %v1453 = vadd.f32 %v1384, %v1452
        %v1454 = vpop.f32.mrb[0].mxu0
        %1455 = vmatprep.mubr.f32.mxu0 0.0
        %1456 = vmatmul.mubr.f32.gmra.mrb[0].mxu0 %v1298
        %v1457 = vpop.f32.mrb[0].mxu0
        %v1458 = vadd.f32 %v1384, %v1457
        %v1459 = vpop.f32.mrb[0].mxu0
        %1460 = vdwg.mxu0
        %v1461 = vld [vmem:[%s1121] sm:$0xff]
        %v1462 = vld [vmem:[%s1121 + $0x8] sm:$0xff]
        %v1463 = vld [vmem:[%s1121 + $0x10] sm:$0xff]
        %v1464 = vld [vmem:[%s1121 + $0x18] sm:$0xff]
        %v1465 = vld [vmem:[%s929] sm:$0x1]
        %v1467 = vlaneseq
        %v1468 = vshrl.u32 %v1467, 7
        %v1469 = vsub.s32 0, %v1468
        %v1470 = vrot.slane %v1465, %v1469
        %1472 = vmatprep.subr.mxu0 0.0
        %1473 = vmatpush1.msra.mxu0 %v1461
        %1474 = vmatprep.subr.mxu0 0.0
        %1475 = vmatpush1.msra.mxu0 %v1462
        %1476 = vmatprep.subr.mxu0 0.0
        %1477 = vmatpush1.msra.mxu0 %v1463
        %1478 = vmatprep.subr.mxu0 0.0
        %1479 = vmatpush1.msra.mxu0 %v1464
        %1480 = vmatprep.subr.mxu0 0.0
        %1481 = vmatpush1.msra.mxu0 0.0
        %1482 = vmatprep.subr.mxu0 0.0
        %1483 = vmatpush1.msra.mxu0 0.0
        %1484 = vmatprep.subr.mxu0 0.0
        %1485 = vmatpush1.msra.mxu0 0.0
        %1486 = vmatprep.subr.mxu0 0.0
        %1487 = vmatpush1.msra.mxu0 0.0
        %1488 = vmatprep.subr.mxu0 0.0
        %1489 = vmatpush1.msra.mxu0 0.0
        %1490 = vmatprep.subr.mxu0 0.0
        %1491 = vmatpush1.msra.mxu0 0.0
        %1492 = vmatprep.subr.mxu0 0.0
        %1493 = vmatpush1.msra.mxu0 0.0
        %1494 = vmatprep.subr.mxu0 0.0
        %1495 = vmatpush1.msra.mxu0 0.0
        %1496 = vmatprep.subr.mxu0 0.0
        %1497 = vmatpush1.msra.mxu0 0.0
        %1498 = vmatprep.subr.mxu0 0.0
        %1499 = vmatpush1.msra.mxu0 0.0
        %1500 = vmatprep.subr.mxu0 0.0
        %1501 = vmatpush1.msra.mxu0 0.0
        %1502 = vmatprep.subr.mxu0 0.0
        %1503 = vmatpush1.msra.mxu0 0.0
        %1504 = vmatprep.subr.mxu0 0.0
        %1505 = vmatpush1.msra.mxu0 0.0
        %1506 = vmatprep.subr.mxu0 0.0
        %1507 = vmatpush1.msra.mxu0 0.0
        %1508 = vmatprep.subr.mxu0 0.0
        %1509 = vmatpush1.msra.mxu0 0.0
        %1510 = vmatprep.subr.mxu0 0.0
        %1511 = vmatpush1.msra.mxu0 0.0
        %1512 = vmatprep.subr.mxu0 0.0
        %1513 = vmatpush1.msra.mxu0 0.0
        %1514 = vmatprep.subr.mxu0 0.0
        %1515 = vmatpush1.msra.mxu0 0.0
        %1516 = vmatprep.subr.mxu0 0.0
        %1517 = vmatpush1.msra.mxu0 0.0
        %1518 = vmatprep.subr.mxu0 0.0
        %1519 = vmatpush1.msra.mxu0 0.0
        %1520 = vmatprep.subr.mxu0 0.0
        %1521 = vmatpush1.msra.mxu0 0.0
        %1522 = vmatprep.subr.mxu0 0.0
        %1523 = vmatpush1.msra.mxu0 0.0
        %1524 = vmatprep.subr.mxu0 0.0
        %1525 = vmatpush1.msra.mxu0 0.0
        %1526 = vmatprep.subr.mxu0 0.0
        %1527 = vmatpush1.msra.mxu0 0.0
        %1528 = vmatprep.subr.mxu0 0.0
        %1529 = vmatpush1.msra.mxu0 0.0
        %1530 = vmatprep.subr.mxu0 0.0
        %1531 = vmatpush1.msra.mxu0 0.0
        %1532 = vmatprep.subr.mxu0 0.0
        %1533 = vmatpush1.msra.mxu0 0.0
        %1534 = vmatprep.subr.mxu0 0.0
        %1535 = vmatpush1.msra.mxu0 0.0
        %1536 = vmatprep.mubr.f32.mxu0 0.0
        %1537 = vmatmul.mubr.f32.gmra.mrb[0].mxu0 %v1295
        %v1538 = vpop.f32.mrb[0].mxu0
        %v1539 = vadd.f32 %v1470, %v1538
        %v1540 = vpop.f32.mrb[0].mxu0
        %1541 = vmatprep.mubr.f32.mxu0 0.0
        %1542 = vmatmul.mubr.f32.gmra.mrb[0].mxu0 %v1298
        %v1543 = vpop.f32.mrb[0].mxu0
        %v1544 = vadd.f32 %v1470, %v1543
        %v1545 = vpop.f32.mrb[0].mxu0
        %1546 = vdwg.mxu0
        %vm1547 = vcmask 64512
        %v1549 = vsel %vm1547, %v1367, 0
        %v1552 = vsel %vm1547, %v1453, 0
        %1554 = vmatprep.subr.mxu0 0.0
        %1555 = vmatpush1.xpose.msra.mxu0 %v1552
        %1556 = vmatprep.subr.mxu0 0.0
        %1557 = vmatpush1.xpose.msra.mxu0 0.0
        %1558 = vmatprep.subr.mxu0 0.0
        %1559 = vmatpush1.xpose.msra.mxu0 0.0
        %1560 = vmatprep.subr.mxu0 0.0
        %1561 = vmatpush1.xpose.msra.mxu0 0.0
        %1562 = vmatprep.subr.mxu0 0.0
        %1563 = vmatpush1.xpose.msra.mxu0 0.0
        %1564 = vmatprep.subr.mxu0 0.0
        %1565 = vmatpush1.xpose.msra.mxu0 0.0
        %1566 = vmatprep.subr.mxu0 0.0
        %1567 = vmatpush1.xpose.msra.mxu0 0.0
        %1568 = vmatprep.subr.mxu0 0.0
        %1569 = vmatpush1.xpose.msra.mxu0 0.0
        %1570 = vmatprep.subr.mxu0 0.0
        %1571 = vmatpush1.xpose.msra.mxu0 0.0
        %1572 = vmatprep.subr.mxu0 0.0
        %1573 = vmatpush1.xpose.msra.mxu0 0.0
        %1574 = vmatprep.subr.mxu0 0.0
        %1575 = vmatpush1.xpose.msra.mxu0 0.0
        %1576 = vmatprep.subr.mxu0 0.0
        %1577 = vmatpush1.xpose.msra.mxu0 0.0
        %1578 = vmatprep.subr.mxu0 0.0
        %1579 = vmatpush1.xpose.msra.mxu0 0.0
        %1580 = vmatprep.subr.mxu0 0.0
        %1581 = vmatpush1.xpose.msra.mxu0 0.0
        %1582 = vmatprep.subr.mxu0 0.0
        %1583 = vmatpush1.xpose.msra.mxu0 0.0
        %1584 = vmatprep.subr.mxu0 0.0
        %1585 = vmatpush1.xpose.msra.mxu0 0.0
        %1586 = vmatprep.subr.mxu0 0.0
        %1587 = vmatpush1.xpose.msra.mxu0 0.0
        %1588 = vmatprep.subr.mxu0 0.0
        %1589 = vmatpush1.xpose.msra.mxu0 0.0
        %1590 = vmatprep.subr.mxu0 0.0
        %1591 = vmatpush1.xpose.msra.mxu0 0.0
        %1592 = vmatprep.subr.mxu0 0.0
        %1593 = vmatpush1.xpose.msra.mxu0 0.0
        %1594 = vmatprep.subr.mxu0 0.0
        %1595 = vmatpush1.xpose.msra.mxu0 0.0
        %1596 = vmatprep.subr.mxu0 0.0
        %1597 = vmatpush1.xpose.msra.mxu0 0.0
        %1598 = vmatprep.subr.mxu0 0.0
        %1599 = vmatpush1.xpose.msra.mxu0 0.0
        %1600 = vmatprep.subr.mxu0 0.0
        %1601 = vmatpush1.xpose.msra.mxu0 0.0
        %1602 = vmatprep.subr.mxu0 0.0
        %1603 = vmatpush1.xpose.msra.mxu0 0.0
        %1604 = vmatprep.subr.mxu0 0.0
        %1605 = vmatpush1.xpose.msra.mxu0 0.0
        %1606 = vmatprep.subr.mxu0 0.0
        %1607 = vmatpush1.xpose.msra.mxu0 0.0
        %1608 = vmatprep.subr.mxu0 0.0
        %1609 = vmatpush1.xpose.msra.mxu0 0.0
        %1610 = vmatprep.subr.mxu0 0.0
        %1611 = vmatpush1.xpose.msra.mxu0 0.0
        %1612 = vmatprep.subr.mxu0 0.0
        %1613 = vmatpush1.xpose.msra.mxu0 0.0
        %1614 = vmatprep.subr.mxu0 0.0
        %1615 = vmatpush1.xpose.msra.mxu0 0.0
        %1616 = vmatprep.subr.mxu0 0.0
        %1617 = vmatpush1.xpose.msra.mxu0 0.0
        %1618 = vmatprep.mubr.f32.mxu0 0.0
        %1619 = vmatmul.mubr.f32.gmra.mrb[0].mxu0 %v1549
        %v1620 = vpop.f32.mrb[0].mxu0
        %v1621 = vadd.f32 %v1236, %v1620
        %v1622 = vpop.f32.mrb[0].mxu0
        %1623 = vdwg.mxu0
        %v1624 = vsel %vm1547, %v1621, -inf
        %1625 = vmax.xlane.f32.xlu0 %v1624
        %v1626 = vpop.xlane.xlu0 %1625
        %v1627 = vsub.f32 %v1621, %v1626
        %v1628 = vmul.f32 %v1627, 1.442695
        %v1629 = vpow.pop %v1628
        %v1630 = vsel %vm1547, %v1629, 0.0
        %1631 = vadd.xlane.f32.xlu0 %v1630
        %v1632 = vpop.xlane.xlu0 %1631
        %v1633 = vrcp.pop %v1632
        %v1634 = vmul.f32 %v1629, %v1633
        %v1636 = vsel %vm1547, %v1634, 0
        %1638 = vmatprep.subr.mxu0 0.0
        %1639 = vmatpush1.msra.mxu0 %v1539
        %1640 = vmatprep.subr.mxu0 0.0
        %1641 = vmatpush1.msra.mxu0 0.0
        %1642 = vmatprep.subr.mxu0 0.0
        %1643 = vmatpush1.msra.mxu0 0.0
        %1644 = vmatprep.subr.mxu0 0.0
        %1645 = vmatpush1.msra.mxu0 0.0
        %1646 = vmatprep.subr.mxu0 0.0
        %1647 = vmatpush1.msra.mxu0 0.0
        %1648 = vmatprep.subr.mxu0 0.0
        %1649 = vmatpush1.msra.mxu0 0.0
        %1650 = vmatprep.subr.mxu0 0.0
        %1651 = vmatpush1.msra.mxu0 0.0
        %1652 = vmatprep.subr.mxu0 0.0
        %1653 = vmatpush1.msra.mxu0 0.0
        %1654 = vmatprep.subr.mxu0 0.0
        %1655 = vmatpush1.msra.mxu0 0.0
        %1656 = vmatprep.subr.mxu0 0.0
        %1657 = vmatpush1.msra.mxu0 0.0
        %1658 = vmatprep.subr.mxu0 0.0
        %1659 = vmatpush1.msra.mxu0 0.0
        %1660 = vmatprep.subr.mxu0 0.0
        %1661 = vmatpush1.msra.mxu0 0.0
        %1662 = vmatprep.subr.mxu0 0.0
        %1663 = vmatpush1.msra.mxu0 0.0
        %1664 = vmatprep.subr.mxu0 0.0
        %1665 = vmatpush1.msra.mxu0 0.0
        %1666 = vmatprep.subr.mxu0 0.0
        %1667 = vmatpush1.msra.mxu0 0.0
        %1668 = vmatprep.subr.mxu0 0.0
        %1669 = vmatpush1.msra.mxu0 0.0
        %1670 = vmatprep.subr.mxu0 0.0
        %1671 = vmatpush1.msra.mxu0 0.0
        %1672 = vmatprep.subr.mxu0 0.0
        %1673 = vmatpush1.msra.mxu0 0.0
        %1674 = vmatprep.subr.mxu0 0.0
        %1675 = vmatpush1.msra.mxu0 0.0
        %1676 = vmatprep.subr.mxu0 0.0
        %1677 = vmatpush1.msra.mxu0 0.0
        %1678 = vmatprep.subr.mxu0 0.0
        %1679 = vmatpush1.msra.mxu0 0.0
        %1680 = vmatprep.subr.mxu0 0.0
        %1681 = vmatpush1.msra.mxu0 0.0
        %1682 = vmatprep.subr.mxu0 0.0
        %1683 = vmatpush1.msra.mxu0 0.0
        %1684 = vmatprep.subr.mxu0 0.0
        %1685 = vmatpush1.msra.mxu0 0.0
        %1686 = vmatprep.subr.mxu0 0.0
        %1687 = vmatpush1.msra.mxu0 0.0
        %1688 = vmatprep.subr.mxu0 0.0
        %1689 = vmatpush1.msra.mxu0 0.0
        %1690 = vmatprep.subr.mxu0 0.0
        %1691 = vmatpush1.msra.mxu0 0.0
        %1692 = vmatprep.subr.mxu0 0.0
        %1693 = vmatpush1.msra.mxu0 0.0
        %1694 = vmatprep.subr.mxu0 0.0
        %1695 = vmatpush1.msra.mxu0 0.0
        %1696 = vmatprep.subr.mxu0 0.0
        %1697 = vmatpush1.msra.mxu0 0.0
        %1698 = vmatprep.subr.mxu0 0.0
        %1699 = vmatpush1.msra.mxu0 0.0
        %1700 = vmatprep.subr.mxu0 0.0
        %1701 = vmatpush1.msra.mxu0 0.0
        %1702 = vmatprep.mubr.f32.mxu0 0.0
        %1703 = vmatmul.mubr.f32.gmra.mrb[0].mxu0 %v1636
        %v1704 = vpop.f32.mrb[0].mxu0
        %v1705 = vadd.f32 0.0, %v1704
        %v1706 = vpop.f32.mrb[0].mxu0
        %1707 = vdwg.mxu0
        %1708 = vrot.lane.b32.xlu0 %v1367, 120
        %v1709 = vpop.permute.xlu0 %1708
        %1710 = vrot.lane.b32.xlu0 %v1453, 120
        %v1711 = vpop.permute.xlu0 %1710
        %v1712 = vsel %vm1547, %v1709, 0
        %v1714 = vsel %vm1547, %v1711, 0
        %1716 = vmatprep.subr.mxu0 0.0
        %1717 = vmatpush1.xpose.msra.mxu0 %v1714
        %1718 = vmatprep.subr.mxu0 0.0
        %1719 = vmatpush1.xpose.msra.mxu0 0.0
        %1720 = vmatprep.subr.mxu0 0.0
        %1721 = vmatpush1.xpose.msra.mxu0 0.0
        %1722 = vmatprep.subr.mxu0 0.0
        %1723 = vmatpush1.xpose.msra.mxu0 0.0
        %1724 = vmatprep.subr.mxu0 0.0
        %1725 = vmatpush1.xpose.msra.mxu0 0.0
        %1726 = vmatprep.subr.mxu0 0.0
        %1727 = vmatpush1.xpose.msra.mxu0 0.0
        %1728 = vmatprep.subr.mxu0 0.0
        %1729 = vmatpush1.xpose.msra.mxu0 0.0
        %1730 = vmatprep.subr.mxu0 0.0
        %1731 = vmatpush1.xpose.msra.mxu0 0.0
        %1732 = vmatprep.subr.mxu0 0.0
        %1733 = vmatpush1.xpose.msra.mxu0 0.0
        %1734 = vmatprep.subr.mxu0 0.0
        %1735 = vmatpush1.xpose.msra.mxu0 0.0
        %1736 = vmatprep.subr.mxu0 0.0
        %1737 = vmatpush1.xpose.msra.mxu0 0.0
        %1738 = vmatprep.subr.mxu0 0.0
        %1739 = vmatpush1.xpose.msra.mxu0 0.0
        %1740 = vmatprep.subr.mxu0 0.0
        %1741 = vmatpush1.xpose.msra.mxu0 0.0
        %1742 = vmatprep.subr.mxu0 0.0
        %1743 = vmatpush1.xpose.msra.mxu0 0.0
        %1744 = vmatprep.subr.mxu0 0.0
        %1745 = vmatpush1.xpose.msra.mxu0 0.0
        %1746 = vmatprep.subr.mxu0 0.0
        %1747 = vmatpush1.xpose.msra.mxu0 0.0
        %1748 = vmatprep.subr.mxu0 0.0
        %1749 = vmatpush1.xpose.msra.mxu0 0.0
        %1750 = vmatprep.subr.mxu0 0.0
        %1751 = vmatpush1.xpose.msra.mxu0 0.0
        %1752 = vmatprep.subr.mxu0 0.0
        %1753 = vmatpush1.xpose.msra.mxu0 0.0
        %1754 = vmatprep.subr.mxu0 0.0
        %1755 = vmatpush1.xpose.msra.mxu0 0.0
        %1756 = vmatprep.subr.mxu0 0.0
        %1757 = vmatpush1.xpose.msra.mxu0 0.0
        %1758 = vmatprep.subr.mxu0 0.0
        %1759 = vmatpush1.xpose.msra.mxu0 0.0
        %1760 = vmatprep.subr.mxu0 0.0
        %1761 = vmatpush1.xpose.msra.mxu0 0.0
        %1762 = vmatprep.subr.mxu0 0.0
        %1763 = vmatpush1.xpose.msra.mxu0 0.0
        %1764 = vmatprep.subr.mxu0 0.0
        %1765 = vmatpush1.xpose.msra.mxu0 0.0
        %1766 = vmatprep.subr.mxu0 0.0
        %1767 = vmatpush1.xpose.msra.mxu0 0.0
        %1768 = vmatprep.subr.mxu0 0.0
        %1769 = vmatpush1.xpose.msra.mxu0 0.0
        %1770 = vmatprep.subr.mxu0 0.0
        %1771 = vmatpush1.xpose.msra.mxu0 0.0
        %1772 = vmatprep.subr.mxu0 0.0
        %1773 = vmatpush1.xpose.msra.mxu0 0.0
        %1774 = vmatprep.subr.mxu0 0.0
        %1775 = vmatpush1.xpose.msra.mxu0 0.0
        %1776 = vmatprep.subr.mxu0 0.0
        %1777 = vmatpush1.xpose.msra.mxu0 0.0
        %1778 = vmatprep.subr.mxu0 0.0
        %1779 = vmatpush1.xpose.msra.mxu0 0.0
        %1780 = vmatprep.mubr.f32.mxu0 0.0
        %1781 = vmatmul.mubr.f32.gmra.mrb[0].mxu0 %v1712
        %v1782 = vpop.f32.mrb[0].mxu0
        %v1783 = vadd.f32 %v1236, %v1782
        %v1784 = vpop.f32.mrb[0].mxu0
        %1785 = vdwg.mxu0
        %v1786 = vsel %vm1547, %v1783, -inf
        %1787 = vmax.xlane.f32.xlu0 %v1786
        %v1788 = vpop.xlane.xlu0 %1787
        %v1789 = vsub.f32 %v1783, %v1788
        %v1790 = vmul.f32 %v1789, 1.442695
        %v1791 = vpow.pop %v1790
        %v1792 = vsel %vm1547, %v1791, 0.0
        %1793 = vadd.xlane.f32.xlu0 %v1792
        %v1794 = vpop.xlane.xlu0 %1793
        %v1795 = vrcp.pop %v1794
        %v1796 = vmul.f32 %v1791, %v1795
        %1798 = vrot.lane.b32.xlu0 %v1539, 120
        %v1799 = vpop.permute.xlu0 %1798
        %v1802 = vsel %vm1547, %v1796, 0
        %1804 = vmatprep.subr.mxu0 0.0
        %1805 = vmatpush1.msra.mxu0 %v1799
        %1806 = vmatprep.subr.mxu0 0.0
        %1807 = vmatpush1.msra.mxu0 0.0
        %1808 = vmatprep.subr.mxu0 0.0
        %1809 = vmatpush1.msra.mxu0 0.0
        %1810 = vmatprep.subr.mxu0 0.0
        %1811 = vmatpush1.msra.mxu0 0.0
        %1812 = vmatprep.subr.mxu0 0.0
        %1813 = vmatpush1.msra.mxu0 0.0
        %1814 = vmatprep.subr.mxu0 0.0
        %1815 = vmatpush1.msra.mxu0 0.0
        %1816 = vmatprep.subr.mxu0 0.0
        %1817 = vmatpush1.msra.mxu0 0.0
        %1818 = vmatprep.subr.mxu0 0.0
        %1819 = vmatpush1.msra.mxu0 0.0
        %1820 = vmatprep.subr.mxu0 0.0
        %1821 = vmatpush1.msra.mxu0 0.0
        %1822 = vmatprep.subr.mxu0 0.0
        %1823 = vmatpush1.msra.mxu0 0.0
        %1824 = vmatprep.subr.mxu0 0.0
        %1825 = vmatpush1.msra.mxu0 0.0
        %1826 = vmatprep.subr.mxu0 0.0
        %1827 = vmatpush1.msra.mxu0 0.0
        %1828 = vmatprep.subr.mxu0 0.0
        %1829 = vmatpush1.msra.mxu0 0.0
        %1830 = vmatprep.subr.mxu0 0.0
        %1831 = vmatpush1.msra.mxu0 0.0
        %1832 = vmatprep.subr.mxu0 0.0
        %1833 = vmatpush1.msra.mxu0 0.0
        %1834 = vmatprep.subr.mxu0 0.0
        %1835 = vmatpush1.msra.mxu0 0.0
        %1836 = vmatprep.subr.mxu0 0.0
        %1837 = vmatpush1.msra.mxu0 0.0
        %1838 = vmatprep.subr.mxu0 0.0
        %1839 = vmatpush1.msra.mxu0 0.0
        %1840 = vmatprep.subr.mxu0 0.0
        %1841 = vmatpush1.msra.mxu0 0.0
        %1842 = vmatprep.subr.mxu0 0.0
        %1843 = vmatpush1.msra.mxu0 0.0
        %1844 = vmatprep.subr.mxu0 0.0
        %1845 = vmatpush1.msra.mxu0 0.0
        %1846 = vmatprep.subr.mxu0 0.0
        %1847 = vmatpush1.msra.mxu0 0.0
        %1848 = vmatprep.subr.mxu0 0.0
        %1849 = vmatpush1.msra.mxu0 0.0
        %1850 = vmatprep.subr.mxu0 0.0
        %1851 = vmatpush1.msra.mxu0 0.0
        %1852 = vmatprep.subr.mxu0 0.0
        %1853 = vmatpush1.msra.mxu0 0.0
        %1854 = vmatprep.subr.mxu0 0.0
        %1855 = vmatpush1.msra.mxu0 0.0
        %1856 = vmatprep.subr.mxu0 0.0
        %1857 = vmatpush1.msra.mxu0 0.0
        %1858 = vmatprep.subr.mxu0 0.0
        %1859 = vmatpush1.msra.mxu0 0.0
        %1860 = vmatprep.subr.mxu0 0.0
        %1861 = vmatpush1.msra.mxu0 0.0
        %1862 = vmatprep.subr.mxu0 0.0
        %1863 = vmatpush1.msra.mxu0 0.0
        %1864 = vmatprep.subr.mxu0 0.0
        %1865 = vmatpush1.msra.mxu0 0.0
        %1866 = vmatprep.subr.mxu0 0.0
        %1867 = vmatpush1.msra.mxu0 0.0
        %1868 = vmatprep.mubr.f32.mxu0 0.0
        %1869 = vmatmul.mubr.f32.gmra.mrb[0].mxu0 %v1802
        %v1870 = vpop.f32.mrb[0].mxu0
        %v1871 = vadd.f32 0.0, %v1870
        %v1872 = vpop.f32.mrb[0].mxu0
        %1873 = vdwg.mxu0
        %1874 = vrot.lane.b32.xlu0 %v1367, 112
        %v1875 = vpop.permute.xlu0 %1874
        %1876 = vrot.lane.b32.xlu0 %v1453, 112
        %v1877 = vpop.permute.xlu0 %1876
        %v1878 = vsel %vm1547, %v1875, 0
        %v1880 = vsel %vm1547, %v1877, 0
        %1882 = vmatprep.subr.mxu0 0.0
        %1883 = vmatpush1.xpose.msra.mxu0 %v1880
        %1884 = vmatprep.subr.mxu0 0.0
        %1885 = vmatpush1.xpose.msra.mxu0 0.0
        %1886 = vmatprep.subr.mxu0 0.0
        %1887 = vmatpush1.xpose.msra.mxu0 0.0
        %1888 = vmatprep.subr.mxu0 0.0
        %1889 = vmatpush1.xpose.msra.mxu0 0.0
        %1890 = vmatprep.subr.mxu0 0.0
        %1891 = vmatpush1.xpose.msra.mxu0 0.0
        %1892 = vmatprep.subr.mxu0 0.0
        %1893 = vmatpush1.xpose.msra.mxu0 0.0
        %1894 = vmatprep.subr.mxu0 0.0
        %1895 = vmatpush1.xpose.msra.mxu0 0.0
        %1896 = vmatprep.subr.mxu0 0.0
        %1897 = vmatpush1.xpose.msra.mxu0 0.0
        %1898 = vmatprep.subr.mxu0 0.0
        %1899 = vmatpush1.xpose.msra.mxu0 0.0
        %1900 = vmatprep.subr.mxu0 0.0
        %1901 = vmatpush1.xpose.msra.mxu0 0.0
        %1902 = vmatprep.subr.mxu0 0.0
        %1903 = vmatpush1.xpose.msra.mxu0 0.0
        %1904 = vmatprep.subr.mxu0 0.0
        %1905 = vmatpush1.xpose.msra.mxu0 0.0
        %1906 = vmatprep.subr.mxu0 0.0
        %1907 = vmatpush1.xpose.msra.mxu0 0.0
        %1908 = vmatprep.subr.mxu0 0.0
        %1909 = vmatpush1.xpose.msra.mxu0 0.0
        %1910 = vmatprep.subr.mxu0 0.0
        %1911 = vmatpush1.xpose.msra.mxu0 0.0
        %1912 = vmatprep.subr.mxu0 0.0
        %1913 = vmatpush1.xpose.msra.mxu0 0.0
        %1914 = vmatprep.subr.mxu0 0.0
        %1915 = vmatpush1.xpose.msra.mxu0 0.0
        %1916 = vmatprep.subr.mxu0 0.0
        %1917 = vmatpush1.xpose.msra.mxu0 0.0
        %1918 = vmatprep.subr.mxu0 0.0
        %1919 = vmatpush1.xpose.msra.mxu0 0.0
        %1920 = vmatprep.subr.mxu0 0.0
        %1921 = vmatpush1.xpose.msra.mxu0 0.0
        %1922 = vmatprep.subr.mxu0 0.0
        %1923 = vmatpush1.xpose.msra.mxu0 0.0
        %1924 = vmatprep.subr.mxu0 0.0
        %1925 = vmatpush1.xpose.msra.mxu0 0.0
        %1926 = vmatprep.subr.mxu0 0.0
        %1927 = vmatpush1.xpose.msra.mxu0 0.0
        %1928 = vmatprep.subr.mxu0 0.0
        %1929 = vmatpush1.xpose.msra.mxu0 0.0
        %1930 = vmatprep.subr.mxu0 0.0
        %1931 = vmatpush1.xpose.msra.mxu0 0.0
        %1932 = vmatprep.subr.mxu0 0.0
        %1933 = vmatpush1.xpose.msra.mxu0 0.0
        %1934 = vmatprep.subr.mxu0 0.0
        %1935 = vmatpush1.xpose.msra.mxu0 0.0
        %1936 = vmatprep.subr.mxu0 0.0
        %1937 = vmatpush1.xpose.msra.mxu0 0.0
        %1938 = vmatprep.subr.mxu0 0.0
        %1939 = vmatpush1.xpose.msra.mxu0 0.0
        %1940 = vmatprep.subr.mxu0 0.0
        %1941 = vmatpush1.xpose.msra.mxu0 0.0
        %1942 = vmatprep.subr.mxu0 0.0
        %1943 = vmatpush1.xpose.msra.mxu0 0.0
        %1944 = vmatprep.subr.mxu0 0.0
        %1945 = vmatpush1.xpose.msra.mxu0 0.0
        %1946 = vmatprep.mubr.f32.mxu0 0.0
        %1947 = vmatmul.mubr.f32.gmra.mrb[0].mxu0 %v1878
        %v1948 = vpop.f32.mrb[0].mxu0
        %v1949 = vadd.f32 %v1236, %v1948
        %v1950 = vpop.f32.mrb[0].mxu0
        %1951 = vdwg.mxu0
        %v1952 = vsel %vm1547, %v1949, -inf
        %1953 = vmax.xlane.f32.xlu0 %v1952
        %v1954 = vpop.xlane.xlu0 %1953
        %v1955 = vsub.f32 %v1949, %v1954
        %v1956 = vmul.f32 %v1955, 1.442695
        %v1957 = vpow.pop %v1956
        %v1958 = vsel %vm1547, %v1957, 0.0
        %1959 = vadd.xlane.f32.xlu0 %v1958
        %v1960 = vpop.xlane.xlu0 %1959
        %v1961 = vrcp.pop %v1960
        %v1962 = vmul.f32 %v1957, %v1961
        %1963 = vrot.lane.b32.xlu0 %v1539, 112
        %v1964 = vpop.permute.xlu0 %1963
        %v1967 = vsel %vm1547, %v1962, 0
        %1969 = vmatprep.subr.mxu0 0.0
        %1970 = vmatpush1.msra.mxu0 %v1964
        %1971 = vmatprep.subr.mxu0 0.0
        %1972 = vmatpush1.msra.mxu0 0.0
        %1973 = vmatprep.subr.mxu0 0.0
        %1974 = vmatpush1.msra.mxu0 0.0
        %1975 = vmatprep.subr.mxu0 0.0
        %1976 = vmatpush1.msra.mxu0 0.0
        %1977 = vmatprep.subr.mxu0 0.0
        %1978 = vmatpush1.msra.mxu0 0.0
        %1979 = vmatprep.subr.mxu0 0.0
        %1980 = vmatpush1.msra.mxu0 0.0
        %1981 = vmatprep.subr.mxu0 0.0
        %1982 = vmatpush1.msra.mxu0 0.0
        %1983 = vmatprep.subr.mxu0 0.0
        %1984 = vmatpush1.msra.mxu0 0.0
        %1985 = vmatprep.subr.mxu0 0.0
        %1986 = vmatpush1.msra.mxu0 0.0
        %1987 = vmatprep.subr.mxu0 0.0
        %1988 = vmatpush1.msra.mxu0 0.0
        %1989 = vmatprep.subr.mxu0 0.0
        %1990 = vmatpush1.msra.mxu0 0.0
        %1991 = vmatprep.subr.mxu0 0.0
        %1992 = vmatpush1.msra.mxu0 0.0
        %1993 = vmatprep.subr.mxu0 0.0
        %1994 = vmatpush1.msra.mxu0 0.0
        %1995 = vmatprep.subr.mxu0 0.0
        %1996 = vmatpush1.msra.mxu0 0.0
        %1997 = vmatprep.subr.mxu0 0.0
        %1998 = vmatpush1.msra.mxu0 0.0
        %1999 = vmatprep.subr.mxu0 0.0
        %2000 = vmatpush1.msra.mxu0 0.0
        %2001 = vmatprep.subr.mxu0 0.0
        %2002 = vmatpush1.msra.mxu0 0.0
        %2003 = vmatprep.subr.mxu0 0.0
        %2004 = vmatpush1.msra.mxu0 0.0
        %2005 = vmatprep.subr.mxu0 0.0
        %2006 = vmatpush1.msra.mxu0 0.0
        %2007 = vmatprep.subr.mxu0 0.0
        %2008 = vmatpush1.msra.mxu0 0.0
        %2009 = vmatprep.subr.mxu0 0.0
        %2010 = vmatpush1.msra.mxu0 0.0
        %2011 = vmatprep.subr.mxu0 0.0
        %2012 = vmatpush1.msra.mxu0 0.0
        %2013 = vmatprep.subr.mxu0 0.0
        %2014 = vmatpush1.msra.mxu0 0.0
        %2015 = vmatprep.subr.mxu0 0.0
        %2016 = vmatpush1.msra.mxu0 0.0
        %2017 = vmatprep.subr.mxu0 0.0
        %2018 = vmatpush1.msra.mxu0 0.0
        %2019 = vmatprep.subr.mxu0 0.0
        %2020 = vmatpush1.msra.mxu0 0.0
        %2021 = vmatprep.subr.mxu0 0.0
        %2022 = vmatpush1.msra.mxu0 0.0
        %2023 = vmatprep.subr.mxu0 0.0
        %2024 = vmatpush1.msra.mxu0 0.0
        %2025 = vmatprep.subr.mxu0 0.0
        %2026 = vmatpush1.msra.mxu0 0.0
        %2027 = vmatprep.subr.mxu0 0.0
        %2028 = vmatpush1.msra.mxu0 0.0
        %2029 = vmatprep.subr.mxu0 0.0
        %2030 = vmatpush1.msra.mxu0 0.0
        %2031 = vmatprep.subr.mxu0 0.0
        %2032 = vmatpush1.msra.mxu0 0.0
        %2033 = vmatprep.mubr.f32.mxu0 0.0
        %2034 = vmatmul.mubr.f32.gmra.mrb[0].mxu0 %v1967
        %v2035 = vpop.f32.mrb[0].mxu0
        %v2036 = vadd.f32 0.0, %v2035
        %v2037 = vpop.f32.mrb[0].mxu0
        %2038 = vdwg.mxu0
        %2039 = vrot.lane.b32.xlu0 %v1367, 104
        %v2040 = vpop.permute.xlu0 %2039
        %2041 = vrot.lane.b32.xlu0 %v1453, 104
        %v2042 = vpop.permute.xlu0 %2041
        %v2043 = vsel %vm1547, %v2040, 0
        %v2045 = vsel %vm1547, %v2042, 0
        %2047 = vmatprep.subr.mxu0 0.0
        %2048 = vmatpush1.xpose.msra.mxu0 %v2045
        %2049 = vmatprep.subr.mxu0 0.0
        %2050 = vmatpush1.xpose.msra.mxu0 0.0
        %2051 = vmatprep.subr.mxu0 0.0
        %2052 = vmatpush1.xpose.msra.mxu0 0.0
        %2053 = vmatprep.subr.mxu0 0.0
        %2054 = vmatpush1.xpose.msra.mxu0 0.0
        %2055 = vmatprep.subr.mxu0 0.0
        %2056 = vmatpush1.xpose.msra.mxu0 0.0
        %2057 = vmatprep.subr.mxu0 0.0
        %2058 = vmatpush1.xpose.msra.mxu0 0.0
        %2059 = vmatprep.subr.mxu0 0.0
        %2060 = vmatpush1.xpose.msra.mxu0 0.0
        %2061 = vmatprep.subr.mxu0 0.0
        %2062 = vmatpush1.xpose.msra.mxu0 0.0
        %2063 = vmatprep.subr.mxu0 0.0
        %2064 = vmatpush1.xpose.msra.mxu0 0.0
        %2065 = vmatprep.subr.mxu0 0.0
        %2066 = vmatpush1.xpose.msra.mxu0 0.0
        %2067 = vmatprep.subr.mxu0 0.0
        %2068 = vmatpush1.xpose.msra.mxu0 0.0
        %2069 = vmatprep.subr.mxu0 0.0
        %2070 = vmatpush1.xpose.msra.mxu0 0.0
        %2071 = vmatprep.subr.mxu0 0.0
        %2072 = vmatpush1.xpose.msra.mxu0 0.0
        %2073 = vmatprep.subr.mxu0 0.0
        %2074 = vmatpush1.xpose.msra.mxu0 0.0
        %2075 = vmatprep.subr.mxu0 0.0
        %2076 = vmatpush1.xpose.msra.mxu0 0.0
        %2077 = vmatprep.subr.mxu0 0.0
        %2078 = vmatpush1.xpose.msra.mxu0 0.0
        %2079 = vmatprep.subr.mxu0 0.0
        %2080 = vmatpush1.xpose.msra.mxu0 0.0
        %2081 = vmatprep.subr.mxu0 0.0
        %2082 = vmatpush1.xpose.msra.mxu0 0.0
        %2083 = vmatprep.subr.mxu0 0.0
        %2084 = vmatpush1.xpose.msra.mxu0 0.0
        %2085 = vmatprep.subr.mxu0 0.0
        %2086 = vmatpush1.xpose.msra.mxu0 0.0
        %2087 = vmatprep.subr.mxu0 0.0
        %2088 = vmatpush1.xpose.msra.mxu0 0.0
        %2089 = vmatprep.subr.mxu0 0.0
        %2090 = vmatpush1.xpose.msra.mxu0 0.0
        %2091 = vmatprep.subr.mxu0 0.0
        %2092 = vmatpush1.xpose.msra.mxu0 0.0
        %2093 = vmatprep.subr.mxu0 0.0
        %2094 = vmatpush1.xpose.msra.mxu0 0.0
        %2095 = vmatprep.subr.mxu0 0.0
        %2096 = vmatpush1.xpose.msra.mxu0 0.0
        %2097 = vmatprep.subr.mxu0 0.0
        %2098 = vmatpush1.xpose.msra.mxu0 0.0
        %2099 = vmatprep.subr.mxu0 0.0
        %2100 = vmatpush1.xpose.msra.mxu0 0.0
        %2101 = vmatprep.subr.mxu0 0.0
        %2102 = vmatpush1.xpose.msra.mxu0 0.0
        %2103 = vmatprep.subr.mxu0 0.0
        %2104 = vmatpush1.xpose.msra.mxu0 0.0
        %2105 = vmatprep.subr.mxu0 0.0
        %2106 = vmatpush1.xpose.msra.mxu0 0.0
        %2107 = vmatprep.subr.mxu0 0.0
        %2108 = vmatpush1.xpose.msra.mxu0 0.0
        %2109 = vmatprep.subr.mxu0 0.0
        %2110 = vmatpush1.xpose.msra.mxu0 0.0
        %2111 = vmatprep.mubr.f32.mxu0 0.0
        %2112 = vmatmul.mubr.f32.gmra.mrb[0].mxu0 %v2043
        %v2113 = vpop.f32.mrb[0].mxu0
        %v2114 = vadd.f32 %v1236, %v2113
        %v2115 = vpop.f32.mrb[0].mxu0
        %2116 = vdwg.mxu0
        %v2117 = vsel %vm1547, %v2114, -inf
        %2118 = vmax.xlane.f32.xlu0 %v2117
        %v2119 = vpop.xlane.xlu0 %2118
        %v2120 = vsub.f32 %v2114, %v2119
        %v2121 = vmul.f32 %v2120, 1.442695
        %v2122 = vpow.pop %v2121
        %v2123 = vsel %vm1547, %v2122, 0.0
        %2124 = vadd.xlane.f32.xlu0 %v2123
        %v2125 = vpop.xlane.xlu0 %2124
        %v2126 = vrcp.pop %v2125
        %v2127 = vmul.f32 %v2122, %v2126
        %2128 = vrot.lane.b32.xlu0 %v1539, 104
        %v2129 = vpop.permute.xlu0 %2128
        %v2132 = vsel %vm1547, %v2127, 0
        %2134 = vmatprep.subr.mxu0 0.0
        %2135 = vmatpush1.msra.mxu0 %v2129
        %2136 = vmatprep.subr.mxu0 0.0
        %2137 = vmatpush1.msra.mxu0 0.0
        %2138 = vmatprep.subr.mxu0 0.0
        %2139 = vmatpush1.msra.mxu0 0.0
        %2140 = vmatprep.subr.mxu0 0.0
        %2141 = vmatpush1.msra.mxu0 0.0
        %2142 = vmatprep.subr.mxu0 0.0
        %2143 = vmatpush1.msra.mxu0 0.0
        %2144 = vmatprep.subr.mxu0 0.0
        %2145 = vmatpush1.msra.mxu0 0.0
        %2146 = vmatprep.subr.mxu0 0.0
        %2147 = vmatpush1.msra.mxu0 0.0
        %2148 = vmatprep.subr.mxu0 0.0
        %2149 = vmatpush1.msra.mxu0 0.0
        %2150 = vmatprep.subr.mxu0 0.0
        %2151 = vmatpush1.msra.mxu0 0.0
        %2152 = vmatprep.subr.mxu0 0.0
        %2153 = vmatpush1.msra.mxu0 0.0
        %2154 = vmatprep.subr.mxu0 0.0
        %2155 = vmatpush1.msra.mxu0 0.0
        %2156 = vmatprep.subr.mxu0 0.0
        %2157 = vmatpush1.msra.mxu0 0.0
        %2158 = vmatprep.subr.mxu0 0.0
        %2159 = vmatpush1.msra.mxu0 0.0
        %2160 = vmatprep.subr.mxu0 0.0
        %2161 = vmatpush1.msra.mxu0 0.0
        %2162 = vmatprep.subr.mxu0 0.0
        %2163 = vmatpush1.msra.mxu0 0.0
        %2164 = vmatprep.subr.mxu0 0.0
        %2165 = vmatpush1.msra.mxu0 0.0
        %2166 = vmatprep.subr.mxu0 0.0
        %2167 = vmatpush1.msra.mxu0 0.0
        %2168 = vmatprep.subr.mxu0 0.0
        %2169 = vmatpush1.msra.mxu0 0.0
        %2170 = vmatprep.subr.mxu0 0.0
        %2171 = vmatpush1.msra.mxu0 0.0
        %2172 = vmatprep.subr.mxu0 0.0
        %2173 = vmatpush1.msra.mxu0 0.0
        %2174 = vmatprep.subr.mxu0 0.0
        %2175 = vmatpush1.msra.mxu0 0.0
        %2176 = vmatprep.subr.mxu0 0.0
        %2177 = vmatpush1.msra.mxu0 0.0
        %2178 = vmatprep.subr.mxu0 0.0
        %2179 = vmatpush1.msra.mxu0 0.0
        %2180 = vmatprep.subr.mxu0 0.0
        %2181 = vmatpush1.msra.mxu0 0.0
        %2182 = vmatprep.subr.mxu0 0.0
        %2183 = vmatpush1.msra.mxu0 0.0
        %2184 = vmatprep.subr.mxu0 0.0
        %2185 = vmatpush1.msra.mxu0 0.0
        %2186 = vmatprep.subr.mxu0 0.0
        %2187 = vmatpush1.msra.mxu0 0.0
        %2188 = vmatprep.subr.mxu0 0.0
        %2189 = vmatpush1.msra.mxu0 0.0
        %2190 = vmatprep.subr.mxu0 0.0
        %2191 = vmatpush1.msra.mxu0 0.0
        %2192 = vmatprep.subr.mxu0 0.0
        %2193 = vmatpush1.msra.mxu0 0.0
        %2194 = vmatprep.subr.mxu0 0.0
        %2195 = vmatpush1.msra.mxu0 0.0
        %2196 = vmatprep.subr.mxu0 0.0
        %2197 = vmatpush1.msra.mxu0 0.0
        %2198 = vmatprep.mubr.f32.mxu0 0.0
        %2199 = vmatmul.mubr.f32.gmra.mrb[0].mxu0 %v2132
        %v2200 = vpop.f32.mrb[0].mxu0
        %v2201 = vadd.f32 0.0, %v2200
        %v2202 = vpop.f32.mrb[0].mxu0
        %2203 = vdwg.mxu0
        %2205 = vrot.lane.b32.xlu0 %v1871, 8
        %v2206 = vpop.permute.xlu0 %2205
        %2209 = vrot.lane.b32.xlu0 %v2036, 16
        %v2210 = vpop.permute.xlu0 %2209
        %2213 = vrot.lane.b32.xlu0 %v2201, 24
        %v2214 = vpop.permute.xlu0 %2213
        %v2216 = vsel %vm1547, %v1705, %v2206
        %vm2217 = vcmask 130048
        %v2218 = vsel %vm2217, %v2216, %v2210
        %vm2219 = vcmask 195584
        %v2220 = vsel %vm2219, %v2218, %v2214
        %v2222 = vsel %vm1547, %v1372, 0
        %v2225 = vsel %vm1547, %v1458, 0
        %2227 = vmatprep.subr.mxu0 0.0
        %2228 = vmatpush1.xpose.msra.mxu0 %v2225
        %2229 = vmatprep.subr.mxu0 0.0
        %2230 = vmatpush1.xpose.msra.mxu0 0.0
        %2231 = vmatprep.subr.mxu0 0.0
        %2232 = vmatpush1.xpose.msra.mxu0 0.0
        %2233 = vmatprep.subr.mxu0 0.0
        %2234 = vmatpush1.xpose.msra.mxu0 0.0
        %2235 = vmatprep.subr.mxu0 0.0
        %2236 = vmatpush1.xpose.msra.mxu0 0.0
        %2237 = vmatprep.subr.mxu0 0.0
        %2238 = vmatpush1.xpose.msra.mxu0 0.0
        %2239 = vmatprep.subr.mxu0 0.0
        %2240 = vmatpush1.xpose.msra.mxu0 0.0
        %2241 = vmatprep.subr.mxu0 0.0
        %2242 = vmatpush1.xpose.msra.mxu0 0.0
        %2243 = vmatprep.subr.mxu0 0.0
        %2244 = vmatpush1.xpose.msra.mxu0 0.0
        %2245 = vmatprep.subr.mxu0 0.0
        %2246 = vmatpush1.xpose.msra.mxu0 0.0
        %2247 = vmatprep.subr.mxu0 0.0
        %2248 = vmatpush1.xpose.msra.mxu0 0.0
        %2249 = vmatprep.subr.mxu0 0.0
        %2250 = vmatpush1.xpose.msra.mxu0 0.0
        %2251 = vmatprep.subr.mxu0 0.0
        %2252 = vmatpush1.xpose.msra.mxu0 0.0
        %2253 = vmatprep.subr.mxu0 0.0
        %2254 = vmatpush1.xpose.msra.mxu0 0.0
        %2255 = vmatprep.subr.mxu0 0.0
        %2256 = vmatpush1.xpose.msra.mxu0 0.0
        %2257 = vmatprep.subr.mxu0 0.0
        %2258 = vmatpush1.xpose.msra.mxu0 0.0
        %2259 = vmatprep.subr.mxu0 0.0
        %2260 = vmatpush1.xpose.msra.mxu0 0.0
        %2261 = vmatprep.subr.mxu0 0.0
        %2262 = vmatpush1.xpose.msra.mxu0 0.0
        %2263 = vmatprep.subr.mxu0 0.0
        %2264 = vmatpush1.xpose.msra.mxu0 0.0
        %2265 = vmatprep.subr.mxu0 0.0
        %2266 = vmatpush1.xpose.msra.mxu0 0.0
        %2267 = vmatprep.subr.mxu0 0.0
        %2268 = vmatpush1.xpose.msra.mxu0 0.0
        %2269 = vmatprep.subr.mxu0 0.0
        %2270 = vmatpush1.xpose.msra.mxu0 0.0
        %2271 = vmatprep.subr.mxu0 0.0
        %2272 = vmatpush1.xpose.msra.mxu0 0.0
        %2273 = vmatprep.subr.mxu0 0.0
        %2274 = vmatpush1.xpose.msra.mxu0 0.0
        %2275 = vmatprep.subr.mxu0 0.0
        %2276 = vmatpush1.xpose.msra.mxu0 0.0
        %2277 = vmatprep.subr.mxu0 0.0
        %2278 = vmatpush1.xpose.msra.mxu0 0.0
        %2279 = vmatprep.subr.mxu0 0.0
        %2280 = vmatpush1.xpose.msra.mxu0 0.0
        %2281 = vmatprep.subr.mxu0 0.0
        %2282 = vmatpush1.xpose.msra.mxu0 0.0
        %2283 = vmatprep.subr.mxu0 0.0
        %2284 = vmatpush1.xpose.msra.mxu0 0.0
        %2285 = vmatprep.subr.mxu0 0.0
        %2286 = vmatpush1.xpose.msra.mxu0 0.0
        %2287 = vmatprep.subr.mxu0 0.0
        %2288 = vmatpush1.xpose.msra.mxu0 0.0
        %2289 = vmatprep.subr.mxu0 0.0
        %2290 = vmatpush1.xpose.msra.mxu0 0.0
        %2291 = vmatprep.mubr.f32.mxu0 0.0
        %2292 = vmatmul.mubr.f32.gmra.mrb[0].mxu0 %v2222
        %v2293 = vpop.f32.mrb[0].mxu0
        %v2294 = vadd.f32 %v1236, %v2293
        %v2295 = vpop.f32.mrb[0].mxu0
        %2296 = vdwg.mxu0
        %v2297 = vsel %vm1547, %v2294, -inf
        %2298 = vmax.xlane.f32.xlu0 %v2297
        %v2299 = vpop.xlane.xlu0 %2298
        %v2300 = vsub.f32 %v2294, %v2299
        %v2301 = vmul.f32 %v2300, 1.442695
        %v2302 = vpow.pop %v2301
        %v2303 = vsel %vm1547, %v2302, 0.0
        %2304 = vadd.xlane.f32.xlu0 %v2303
        %v2305 = vpop.xlane.xlu0 %2304
        %v2306 = vrcp.pop %v2305
        %v2307 = vmul.f32 %v2302, %v2306
        %v2309 = vsel %vm1547, %v2307, 0
        %2311 = vmatprep.subr.mxu0 0.0
        %2312 = vmatpush1.msra.mxu0 %v1544
        %2313 = vmatprep.subr.mxu0 0.0
        %2314 = vmatpush1.msra.mxu0 0.0
        %2315 = vmatprep.subr.mxu0 0.0
        %2316 = vmatpush1.msra.mxu0 0.0
        %2317 = vmatprep.subr.mxu0 0.0
        %2318 = vmatpush1.msra.mxu0 0.0
        %2319 = vmatprep.subr.mxu0 0.0
        %2320 = vmatpush1.msra.mxu0 0.0
        %2321 = vmatprep.subr.mxu0 0.0
        %2322 = vmatpush1.msra.mxu0 0.0
        %2323 = vmatprep.subr.mxu0 0.0
        %2324 = vmatpush1.msra.mxu0 0.0
        %2325 = vmatprep.subr.mxu0 0.0
        %2326 = vmatpush1.msra.mxu0 0.0
        %2327 = vmatprep.subr.mxu0 0.0
        %2328 = vmatpush1.msra.mxu0 0.0
        %2329 = vmatprep.subr.mxu0 0.0
        %2330 = vmatpush1.msra.mxu0 0.0
        %2331 = vmatprep.subr.mxu0 0.0
        %2332 = vmatpush1.msra.mxu0 0.0
        %2333 = vmatprep.subr.mxu0 0.0
        %2334 = vmatpush1.msra.mxu0 0.0
        %2335 = vmatprep.subr.mxu0 0.0
        %2336 = vmatpush1.msra.mxu0 0.0
        %2337 = vmatprep.subr.mxu0 0.0
        %2338 = vmatpush1.msra.mxu0 0.0
        %2339 = vmatprep.subr.mxu0 0.0
        %2340 = vmatpush1.msra.mxu0 0.0
        %2341 = vmatprep.subr.mxu0 0.0
        %2342 = vmatpush1.msra.mxu0 0.0
        %2343 = vmatprep.subr.mxu0 0.0
        %2344 = vmatpush1.msra.mxu0 0.0
        %2345 = vmatprep.subr.mxu0 0.0
        %2346 = vmatpush1.msra.mxu0 0.0
        %2347 = vmatprep.subr.mxu0 0.0
        %2348 = vmatpush1.msra.mxu0 0.0
        %2349 = vmatprep.subr.mxu0 0.0
        %2350 = vmatpush1.msra.mxu0 0.0
        %2351 = vmatprep.subr.mxu0 0.0
        %2352 = vmatpush1.msra.mxu0 0.0
        %2353 = vmatprep.subr.mxu0 0.0
        %2354 = vmatpush1.msra.mxu0 0.0
        %2355 = vmatprep.subr.mxu0 0.0
        %2356 = vmatpush1.msra.mxu0 0.0
        %2357 = vmatprep.subr.mxu0 0.0
        %2358 = vmatpush1.msra.mxu0 0.0
        %2359 = vmatprep.subr.mxu0 0.0
        %2360 = vmatpush1.msra.mxu0 0.0
        %2361 = vmatprep.subr.mxu0 0.0
        %2362 = vmatpush1.msra.mxu0 0.0
        %2363 = vmatprep.subr.mxu0 0.0
        %2364 = vmatpush1.msra.mxu0 0.0
        %2365 = vmatprep.subr.mxu0 0.0
        %2366 = vmatpush1.msra.mxu0 0.0
        %2367 = vmatprep.subr.mxu0 0.0
        %2368 = vmatpush1.msra.mxu0 0.0
        %2369 = vmatprep.subr.mxu0 0.0
        %2370 = vmatpush1.msra.mxu0 0.0
        %2371 = vmatprep.subr.mxu0 0.0
        %2372 = vmatpush1.msra.mxu0 0.0
        %2373 = vmatprep.subr.mxu0 0.0
        %2374 = vmatpush1.msra.mxu0 0.0
        %2375 = vmatprep.mubr.f32.mxu0 0.0
        %2376 = vmatmul.mubr.f32.gmra.mrb[0].mxu0 %v2309
        %v2377 = vpop.f32.mrb[0].mxu0
        %v2378 = vadd.f32 0.0, %v2377
        %v2379 = vpop.f32.mrb[0].mxu0
        %2380 = vdwg.mxu0
        %2381 = vrot.lane.b32.xlu0 %v1372, 120
        %v2382 = vpop.permute.xlu0 %2381
        %2383 = vrot.lane.b32.xlu0 %v1458, 120
        %v2384 = vpop.permute.xlu0 %2383
        %v2385 = vsel %vm1547, %v2382, 0
        %v2387 = vsel %vm1547, %v2384, 0
        %2389 = vmatprep.subr.mxu0 0.0
        %2390 = vmatpush1.xpose.msra.mxu0 %v2387
        %2391 = vmatprep.subr.mxu0 0.0
        %2392 = vmatpush1.xpose.msra.mxu0 0.0
        %2393 = vmatprep.subr.mxu0 0.0
        %2394 = vmatpush1.xpose.msra.mxu0 0.0
        %2395 = vmatprep.subr.mxu0 0.0
        %2396 = vmatpush1.xpose.msra.mxu0 0.0
        %2397 = vmatprep.subr.mxu0 0.0
        %2398 = vmatpush1.xpose.msra.mxu0 0.0
        %2399 = vmatprep.subr.mxu0 0.0
        %2400 = vmatpush1.xpose.msra.mxu0 0.0
        %2401 = vmatprep.subr.mxu0 0.0
        %2402 = vmatpush1.xpose.msra.mxu0 0.0
        %2403 = vmatprep.subr.mxu0 0.0
        %2404 = vmatpush1.xpose.msra.mxu0 0.0
        %2405 = vmatprep.subr.mxu0 0.0
        %2406 = vmatpush1.xpose.msra.mxu0 0.0
        %2407 = vmatprep.subr.mxu0 0.0
        %2408 = vmatpush1.xpose.msra.mxu0 0.0
        %2409 = vmatprep.subr.mxu0 0.0
        %2410 = vmatpush1.xpose.msra.mxu0 0.0
        %2411 = vmatprep.subr.mxu0 0.0
        %2412 = vmatpush1.xpose.msra.mxu0 0.0
        %2413 = vmatprep.subr.mxu0 0.0
        %2414 = vmatpush1.xpose.msra.mxu0 0.0
        %2415 = vmatprep.subr.mxu0 0.0
        %2416 = vmatpush1.xpose.msra.mxu0 0.0
        %2417 = vmatprep.subr.mxu0 0.0
        %2418 = vmatpush1.xpose.msra.mxu0 0.0
        %2419 = vmatprep.subr.mxu0 0.0
        %2420 = vmatpush1.xpose.msra.mxu0 0.0
        %2421 = vmatprep.subr.mxu0 0.0
        %2422 = vmatpush1.xpose.msra.mxu0 0.0
        %2423 = vmatprep.subr.mxu0 0.0
        %2424 = vmatpush1.xpose.msra.mxu0 0.0
        %2425 = vmatprep.subr.mxu0 0.0
        %2426 = vmatpush1.xpose.msra.mxu0 0.0
        %2427 = vmatprep.subr.mxu0 0.0
        %2428 = vmatpush1.xpose.msra.mxu0 0.0
        %2429 = vmatprep.subr.mxu0 0.0
        %2430 = vmatpush1.xpose.msra.mxu0 0.0
        %2431 = vmatprep.subr.mxu0 0.0
        %2432 = vmatpush1.xpose.msra.mxu0 0.0
        %2433 = vmatprep.subr.mxu0 0.0
        %2434 = vmatpush1.xpose.msra.mxu0 0.0
        %2435 = vmatprep.subr.mxu0 0.0
        %2436 = vmatpush1.xpose.msra.mxu0 0.0
        %2437 = vmatprep.subr.mxu0 0.0
        %2438 = vmatpush1.xpose.msra.mxu0 0.0
        %2439 = vmatprep.subr.mxu0 0.0
        %2440 = vmatpush1.xpose.msra.mxu0 0.0
        %2441 = vmatprep.subr.mxu0 0.0
        %2442 = vmatpush1.xpose.msra.mxu0 0.0
        %2443 = vmatprep.subr.mxu0 0.0
        %2444 = vmatpush1.xpose.msra.mxu0 0.0
        %2445 = vmatprep.subr.mxu0 0.0
        %2446 = vmatpush1.xpose.msra.mxu0 0.0
        %2447 = vmatprep.subr.mxu0 0.0
        %2448 = vmatpush1.xpose.msra.mxu0 0.0
        %2449 = vmatprep.subr.mxu0 0.0
        %2450 = vmatpush1.xpose.msra.mxu0 0.0
        %2451 = vmatprep.subr.mxu0 0.0
        %2452 = vmatpush1.xpose.msra.mxu0 0.0
        %2453 = vmatprep.mubr.f32.mxu0 0.0
        %2454 = vmatmul.mubr.f32.gmra.mrb[0].mxu0 %v2385
        %v2455 = vpop.f32.mrb[0].mxu0
        %v2456 = vadd.f32 %v1236, %v2455
        %v2457 = vpop.f32.mrb[0].mxu0
        %2458 = vdwg.mxu0
        %v2459 = vsel %vm1547, %v2456, -inf
        %2460 = vmax.xlane.f32.xlu0 %v2459
        %v2461 = vpop.xlane.xlu0 %2460
        %v2462 = vsub.f32 %v2456, %v2461
        %v2463 = vmul.f32 %v2462, 1.442695
        %v2464 = vpow.pop %v2463
        %v2465 = vsel %vm1547, %v2464, 0.0
        %2466 = vadd.xlane.f32.xlu0 %v2465
        %v2467 = vpop.xlane.xlu0 %2466
        %v2468 = vrcp.pop %v2467
        %v2469 = vmul.f32 %v2464, %v2468
        %2471 = vrot.lane.b32.xlu0 %v1544, 120
        %v2472 = vpop.permute.xlu0 %2471
        %v2475 = vsel %vm1547, %v2469, 0
        %2477 = vmatprep.subr.mxu0 0.0
        %2478 = vmatpush1.msra.mxu0 %v2472
        %2479 = vmatprep.subr.mxu0 0.0
        %2480 = vmatpush1.msra.mxu0 0.0
        %2481 = vmatprep.subr.mxu0 0.0
        %2482 = vmatpush1.msra.mxu0 0.0
        %2483 = vmatprep.subr.mxu0 0.0
        %2484 = vmatpush1.msra.mxu0 0.0
        %2485 = vmatprep.subr.mxu0 0.0
        %2486 = vmatpush1.msra.mxu0 0.0
        %2487 = vmatprep.subr.mxu0 0.0
        %2488 = vmatpush1.msra.mxu0 0.0
        %2489 = vmatprep.subr.mxu0 0.0
        %2490 = vmatpush1.msra.mxu0 0.0
        %2491 = vmatprep.subr.mxu0 0.0
        %2492 = vmatpush1.msra.mxu0 0.0
        %2493 = vmatprep.subr.mxu0 0.0
        %2494 = vmatpush1.msra.mxu0 0.0
        %2495 = vmatprep.subr.mxu0 0.0
        %2496 = vmatpush1.msra.mxu0 0.0
        %2497 = vmatprep.subr.mxu0 0.0
        %2498 = vmatpush1.msra.mxu0 0.0
        %2499 = vmatprep.subr.mxu0 0.0
        %2500 = vmatpush1.msra.mxu0 0.0
        %2501 = vmatprep.subr.mxu0 0.0
        %2502 = vmatpush1.msra.mxu0 0.0
        %2503 = vmatprep.subr.mxu0 0.0
        %2504 = vmatpush1.msra.mxu0 0.0
        %2505 = vmatprep.subr.mxu0 0.0
        %2506 = vmatpush1.msra.mxu0 0.0
        %2507 = vmatprep.subr.mxu0 0.0
        %2508 = vmatpush1.msra.mxu0 0.0
        %2509 = vmatprep.subr.mxu0 0.0
        %2510 = vmatpush1.msra.mxu0 0.0
        %2511 = vmatprep.subr.mxu0 0.0
        %2512 = vmatpush1.msra.mxu0 0.0
        %2513 = vmatprep.subr.mxu0 0.0
        %2514 = vmatpush1.msra.mxu0 0.0
        %2515 = vmatprep.subr.mxu0 0.0
        %2516 = vmatpush1.msra.mxu0 0.0
        %2517 = vmatprep.subr.mxu0 0.0
        %2518 = vmatpush1.msra.mxu0 0.0
        %2519 = vmatprep.subr.mxu0 0.0
        %2520 = vmatpush1.msra.mxu0 0.0
        %2521 = vmatprep.subr.mxu0 0.0
        %2522 = vmatpush1.msra.mxu0 0.0
        %2523 = vmatprep.subr.mxu0 0.0
        %2524 = vmatpush1.msra.mxu0 0.0
        %2525 = vmatprep.subr.mxu0 0.0
        %2526 = vmatpush1.msra.mxu0 0.0
        %2527 = vmatprep.subr.mxu0 0.0
        %2528 = vmatpush1.msra.mxu0 0.0
        %2529 = vmatprep.subr.mxu0 0.0
        %2530 = vmatpush1.msra.mxu0 0.0
        %2531 = vmatprep.subr.mxu0 0.0
        %2532 = vmatpush1.msra.mxu0 0.0
        %2533 = vmatprep.subr.mxu0 0.0
        %2534 = vmatpush1.msra.mxu0 0.0
        %2535 = vmatprep.subr.mxu0 0.0
        %2536 = vmatpush1.msra.mxu0 0.0
        %2537 = vmatprep.subr.mxu0 0.0
        %2538 = vmatpush1.msra.mxu0 0.0
        %2539 = vmatprep.subr.mxu0 0.0
        %2540 = vmatpush1.msra.mxu0 0.0
        %2541 = vmatprep.mubr.f32.mxu0 0.0
        %2542 = vmatmul.mubr.f32.gmra.mrb[0].mxu0 %v2475
        %v2543 = vpop.f32.mrb[0].mxu0
        %v2544 = vadd.f32 0.0, %v2543
        %v2545 = vpop.f32.mrb[0].mxu0
        %2546 = vdwg.mxu0
        %2547 = vrot.lane.b32.xlu0 %v1372, 112
        %v2548 = vpop.permute.xlu0 %2547
        %2549 = vrot.lane.b32.xlu0 %v1458, 112
        %v2550 = vpop.permute.xlu0 %2549
        %v2551 = vsel %vm1547, %v2548, 0
        %v2553 = vsel %vm1547, %v2550, 0
        %2555 = vmatprep.subr.mxu0 0.0
        %2556 = vmatpush1.xpose.msra.mxu0 %v2553
        %2557 = vmatprep.subr.mxu0 0.0
        %2558 = vmatpush1.xpose.msra.mxu0 0.0
        %2559 = vmatprep.subr.mxu0 0.0
        %2560 = vmatpush1.xpose.msra.mxu0 0.0
        %2561 = vmatprep.subr.mxu0 0.0
        %2562 = vmatpush1.xpose.msra.mxu0 0.0
        %2563 = vmatprep.subr.mxu0 0.0
        %2564 = vmatpush1.xpose.msra.mxu0 0.0
        %2565 = vmatprep.subr.mxu0 0.0
        %2566 = vmatpush1.xpose.msra.mxu0 0.0
        %2567 = vmatprep.subr.mxu0 0.0
        %2568 = vmatpush1.xpose.msra.mxu0 0.0
        %2569 = vmatprep.subr.mxu0 0.0
        %2570 = vmatpush1.xpose.msra.mxu0 0.0
        %2571 = vmatprep.subr.mxu0 0.0
        %2572 = vmatpush1.xpose.msra.mxu0 0.0
        %2573 = vmatprep.subr.mxu0 0.0
        %2574 = vmatpush1.xpose.msra.mxu0 0.0
        %2575 = vmatprep.subr.mxu0 0.0
        %2576 = vmatpush1.xpose.msra.mxu0 0.0
        %2577 = vmatprep.subr.mxu0 0.0
        %2578 = vmatpush1.xpose.msra.mxu0 0.0
        %2579 = vmatprep.subr.mxu0 0.0
        %2580 = vmatpush1.xpose.msra.mxu0 0.0
        %2581 = vmatprep.subr.mxu0 0.0
        %2582 = vmatpush1.xpose.msra.mxu0 0.0
        %2583 = vmatprep.subr.mxu0 0.0
        %2584 = vmatpush1.xpose.msra.mxu0 0.0
        %2585 = vmatprep.subr.mxu0 0.0
        %2586 = vmatpush1.xpose.msra.mxu0 0.0
        %2587 = vmatprep.subr.mxu0 0.0
        %2588 = vmatpush1.xpose.msra.mxu0 0.0
        %2589 = vmatprep.subr.mxu0 0.0
        %2590 = vmatpush1.xpose.msra.mxu0 0.0
        %2591 = vmatprep.subr.mxu0 0.0
        %2592 = vmatpush1.xpose.msra.mxu0 0.0
        %2593 = vmatprep.subr.mxu0 0.0
        %2594 = vmatpush1.xpose.msra.mxu0 0.0
        %2595 = vmatprep.subr.mxu0 0.0
        %2596 = vmatpush1.xpose.msra.mxu0 0.0
        %2597 = vmatprep.subr.mxu0 0.0
        %2598 = vmatpush1.xpose.msra.mxu0 0.0
        %2599 = vmatprep.subr.mxu0 0.0
        %2600 = vmatpush1.xpose.msra.mxu0 0.0
        %2601 = vmatprep.subr.mxu0 0.0
        %2602 = vmatpush1.xpose.msra.mxu0 0.0
        %2603 = vmatprep.subr.mxu0 0.0
        %2604 = vmatpush1.xpose.msra.mxu0 0.0
        %2605 = vmatprep.subr.mxu0 0.0
        %2606 = vmatpush1.xpose.msra.mxu0 0.0
        %2607 = vmatprep.subr.mxu0 0.0
        %2608 = vmatpush1.xpose.msra.mxu0 0.0
        %2609 = vmatprep.subr.mxu0 0.0
        %2610 = vmatpush1.xpose.msra.mxu0 0.0
        %2611 = vmatprep.subr.mxu0 0.0
        %2612 = vmatpush1.xpose.msra.mxu0 0.0
        %2613 = vmatprep.subr.mxu0 0.0
        %2614 = vmatpush1.xpose.msra.mxu0 0.0
        %2615 = vmatprep.subr.mxu0 0.0
        %2616 = vmatpush1.xpose.msra.mxu0 0.0
        %2617 = vmatprep.subr.mxu0 0.0
        %2618 = vmatpush1.xpose.msra.mxu0 0.0
        %2619 = vmatprep.mubr.f32.mxu0 0.0
        %2620 = vmatmul.mubr.f32.gmra.mrb[0].mxu0 %v2551
        %v2621 = vpop.f32.mrb[0].mxu0
        %v2622 = vadd.f32 %v1236, %v2621
        %v2623 = vpop.f32.mrb[0].mxu0
        %2624 = vdwg.mxu0
        %v2625 = vsel %vm1547, %v2622, -inf
        %2626 = vmax.xlane.f32.xlu0 %v2625
        %v2627 = vpop.xlane.xlu0 %2626
        %v2628 = vsub.f32 %v2622, %v2627
        %v2629 = vmul.f32 %v2628, 1.442695
        %v2630 = vpow.pop %v2629
        %v2631 = vsel %vm1547, %v2630, 0.0
        %2632 = vadd.xlane.f32.xlu0 %v2631
        %v2633 = vpop.xlane.xlu0 %2632
        %v2634 = vrcp.pop %v2633
        %v2635 = vmul.f32 %v2630, %v2634
        %2636 = vrot.lane.b32.xlu0 %v1544, 112
        %v2637 = vpop.permute.xlu0 %2636
        %v2640 = vsel %vm1547, %v2635, 0
        %2642 = vmatprep.subr.mxu0 0.0
        %2643 = vmatpush1.msra.mxu0 %v2637
        %2644 = vmatprep.subr.mxu0 0.0
        %2645 = vmatpush1.msra.mxu0 0.0
        %2646 = vmatprep.subr.mxu0 0.0
        %2647 = vmatpush1.msra.mxu0 0.0
        %2648 = vmatprep.subr.mxu0 0.0
        %2649 = vmatpush1.msra.mxu0 0.0
        %2650 = vmatprep.subr.mxu0 0.0
        %2651 = vmatpush1.msra.mxu0 0.0
        %2652 = vmatprep.subr.mxu0 0.0
        %2653 = vmatpush1.msra.mxu0 0.0
        %2654 = vmatprep.subr.mxu0 0.0
        %2655 = vmatpush1.msra.mxu0 0.0
        %2656 = vmatprep.subr.mxu0 0.0
        %2657 = vmatpush1.msra.mxu0 0.0
        %2658 = vmatprep.subr.mxu0 0.0
        %2659 = vmatpush1.msra.mxu0 0.0
        %2660 = vmatprep.subr.mxu0 0.0
        %2661 = vmatpush1.msra.mxu0 0.0
        %2662 = vmatprep.subr.mxu0 0.0
        %2663 = vmatpush1.msra.mxu0 0.0
        %2664 = vmatprep.subr.mxu0 0.0
        %2665 = vmatpush1.msra.mxu0 0.0
        %2666 = vmatprep.subr.mxu0 0.0
        %2667 = vmatpush1.msra.mxu0 0.0
        %2668 = vmatprep.subr.mxu0 0.0
        %2669 = vmatpush1.msra.mxu0 0.0
        %2670 = vmatprep.subr.mxu0 0.0
        %2671 = vmatpush1.msra.mxu0 0.0
        %2672 = vmatprep.subr.mxu0 0.0
        %2673 = vmatpush1.msra.mxu0 0.0
        %2674 = vmatprep.subr.mxu0 0.0
        %2675 = vmatpush1.msra.mxu0 0.0
        %2676 = vmatprep.subr.mxu0 0.0
        %2677 = vmatpush1.msra.mxu0 0.0
        %2678 = vmatprep.subr.mxu0 0.0
        %2679 = vmatpush1.msra.mxu0 0.0
        %2680 = vmatprep.subr.mxu0 0.0
        %2681 = vmatpush1.msra.mxu0 0.0
        %2682 = vmatprep.subr.mxu0 0.0
        %2683 = vmatpush1.msra.mxu0 0.0
        %2684 = vmatprep.subr.mxu0 0.0
        %2685 = vmatpush1.msra.mxu0 0.0
        %2686 = vmatprep.subr.mxu0 0.0
        %2687 = vmatpush1.msra.mxu0 0.0
        %2688 = vmatprep.subr.mxu0 0.0
        %2689 = vmatpush1.msra.mxu0 0.0
        %2690 = vmatprep.subr.mxu0 0.0
        %2691 = vmatpush1.msra.mxu0 0.0
        %2692 = vmatprep.subr.mxu0 0.0
        %2693 = vmatpush1.msra.mxu0 0.0
        %2694 = vmatprep.subr.mxu0 0.0
        %2695 = vmatpush1.msra.mxu0 0.0
        %2696 = vmatprep.subr.mxu0 0.0
        %2697 = vmatpush1.msra.mxu0 0.0
        %2698 = vmatprep.subr.mxu0 0.0
        %2699 = vmatpush1.msra.mxu0 0.0
        %2700 = vmatprep.subr.mxu0 0.0
        %2701 = vmatpush1.msra.mxu0 0.0
        %2702 = vmatprep.subr.mxu0 0.0
        %2703 = vmatpush1.msra.mxu0 0.0
        %2704 = vmatprep.subr.mxu0 0.0
        %2705 = vmatpush1.msra.mxu0 0.0
        %2706 = vmatprep.mubr.f32.mxu0 0.0
        %2707 = vmatmul.mubr.f32.gmra.mrb[0].mxu0 %v2640
        %v2708 = vpop.f32.mrb[0].mxu0
        %v2709 = vadd.f32 0.0, %v2708
        %v2710 = vpop.f32.mrb[0].mxu0
        %2711 = vdwg.mxu0
        %2712 = vrot.lane.b32.xlu0 %v1372, 104
        %v2713 = vpop.permute.xlu0 %2712
        %2714 = vrot.lane.b32.xlu0 %v1458, 104
        %v2715 = vpop.permute.xlu0 %2714
        %v2716 = vsel %vm1547, %v2713, 0
        %v2718 = vsel %vm1547, %v2715, 0
        %2720 = vmatprep.subr.mxu0 0.0
        %2721 = vmatpush1.xpose.msra.mxu0 %v2718
        %2722 = vmatprep.subr.mxu0 0.0
        %2723 = vmatpush1.xpose.msra.mxu0 0.0
        %2724 = vmatprep.subr.mxu0 0.0
        %2725 = vmatpush1.xpose.msra.mxu0 0.0
        %2726 = vmatprep.subr.mxu0 0.0
        %2727 = vmatpush1.xpose.msra.mxu0 0.0
        %2728 = vmatprep.subr.mxu0 0.0
        %2729 = vmatpush1.xpose.msra.mxu0 0.0
        %2730 = vmatprep.subr.mxu0 0.0
        %2731 = vmatpush1.xpose.msra.mxu0 0.0
        %2732 = vmatprep.subr.mxu0 0.0
        %2733 = vmatpush1.xpose.msra.mxu0 0.0
        %2734 = vmatprep.subr.mxu0 0.0
        %2735 = vmatpush1.xpose.msra.mxu0 0.0
        %2736 = vmatprep.subr.mxu0 0.0
        %2737 = vmatpush1.xpose.msra.mxu0 0.0
        %2738 = vmatprep.subr.mxu0 0.0
        %2739 = vmatpush1.xpose.msra.mxu0 0.0
        %2740 = vmatprep.subr.mxu0 0.0
        %2741 = vmatpush1.xpose.msra.mxu0 0.0
        %2742 = vmatprep.subr.mxu0 0.0
        %2743 = vmatpush1.xpose.msra.mxu0 0.0
        %2744 = vmatprep.subr.mxu0 0.0
        %2745 = vmatpush1.xpose.msra.mxu0 0.0
        %2746 = vmatprep.subr.mxu0 0.0
        %2747 = vmatpush1.xpose.msra.mxu0 0.0
        %2748 = vmatprep.subr.mxu0 0.0
        %2749 = vmatpush1.xpose.msra.mxu0 0.0
        %2750 = vmatprep.subr.mxu0 0.0
        %2751 = vmatpush1.xpose.msra.mxu0 0.0
        %2752 = vmatprep.subr.mxu0 0.0
        %2753 = vmatpush1.xpose.msra.mxu0 0.0
        %2754 = vmatprep.subr.mxu0 0.0
        %2755 = vmatpush1.xpose.msra.mxu0 0.0
        %2756 = vmatprep.subr.mxu0 0.0
        %2757 = vmatpush1.xpose.msra.mxu0 0.0
        %2758 = vmatprep.subr.mxu0 0.0
        %2759 = vmatpush1.xpose.msra.mxu0 0.0
        %2760 = vmatprep.subr.mxu0 0.0
        %2761 = vmatpush1.xpose.msra.mxu0 0.0
        %2762 = vmatprep.subr.mxu0 0.0
        %2763 = vmatpush1.xpose.msra.mxu0 0.0
        %2764 = vmatprep.subr.mxu0 0.0
        %2765 = vmatpush1.xpose.msra.mxu0 0.0
        %2766 = vmatprep.subr.mxu0 0.0
        %2767 = vmatpush1.xpose.msra.mxu0 0.0
        %2768 = vmatprep.subr.mxu0 0.0
        %2769 = vmatpush1.xpose.msra.mxu0 0.0
        %2770 = vmatprep.subr.mxu0 0.0
        %2771 = vmatpush1.xpose.msra.mxu0 0.0
        %2772 = vmatprep.subr.mxu0 0.0
        %2773 = vmatpush1.xpose.msra.mxu0 0.0
        %2774 = vmatprep.subr.mxu0 0.0
        %2775 = vmatpush1.xpose.msra.mxu0 0.0
        %2776 = vmatprep.subr.mxu0 0.0
        %2777 = vmatpush1.xpose.msra.mxu0 0.0
        %2778 = vmatprep.subr.mxu0 0.0
        %2779 = vmatpush1.xpose.msra.mxu0 0.0
        %2780 = vmatprep.subr.mxu0 0.0
        %2781 = vmatpush1.xpose.msra.mxu0 0.0
        %2782 = vmatprep.subr.mxu0 0.0
        %2783 = vmatpush1.xpose.msra.mxu0 0.0
        %2784 = vmatprep.mubr.f32.mxu0 0.0
        %2785 = vmatmul.mubr.f32.gmra.mrb[0].mxu0 %v2716
        %v2786 = vpop.f32.mrb[0].mxu0
        %v2787 = vadd.f32 %v1236, %v2786
        %v2788 = vpop.f32.mrb[0].mxu0
        %2789 = vdwg.mxu0
        %v2790 = vsel %vm1547, %v2787, -inf
        %2791 = vmax.xlane.f32.xlu0 %v2790
        %v2792 = vpop.xlane.xlu0 %2791
        %v2793 = vsub.f32 %v2787, %v2792
        %v2794 = vmul.f32 %v2793, 1.442695
        %v2795 = vpow.pop %v2794
        %v2796 = vsel %vm1547, %v2795, 0.0
        %2797 = vadd.xlane.f32.xlu0 %v2796
        %v2798 = vpop.xlane.xlu0 %2797
        %v2799 = vrcp.pop %v2798
        %v2800 = vmul.f32 %v2795, %v2799
        %2801 = vrot.lane.b32.xlu0 %v1544, 104
        %v2802 = vpop.permute.xlu0 %2801
        %v2805 = vsel %vm1547, %v2800, 0
        %2807 = vmatprep.subr.mxu0 0.0
        %2808 = vmatpush1.msra.mxu0 %v2802
        %2809 = vmatprep.subr.mxu0 0.0
        %2810 = vmatpush1.msra.mxu0 0.0
        %2811 = vmatprep.subr.mxu0 0.0
        %2812 = vmatpush1.msra.mxu0 0.0
        %2813 = vmatprep.subr.mxu0 0.0
        %2814 = vmatpush1.msra.mxu0 0.0
        %2815 = vmatprep.subr.mxu0 0.0
        %2816 = vmatpush1.msra.mxu0 0.0
        %2817 = vmatprep.subr.mxu0 0.0
        %2818 = vmatpush1.msra.mxu0 0.0
        %2819 = vmatprep.subr.mxu0 0.0
        %2820 = vmatpush1.msra.mxu0 0.0
        %2821 = vmatprep.subr.mxu0 0.0
        %2822 = vmatpush1.msra.mxu0 0.0
        %2823 = vmatprep.subr.mxu0 0.0
        %2824 = vmatpush1.msra.mxu0 0.0
        %2825 = vmatprep.subr.mxu0 0.0
        %2826 = vmatpush1.msra.mxu0 0.0
        %2827 = vmatprep.subr.mxu0 0.0
        %2828 = vmatpush1.msra.mxu0 0.0
        %2829 = vmatprep.subr.mxu0 0.0
        %2830 = vmatpush1.msra.mxu0 0.0
        %2831 = vmatprep.subr.mxu0 0.0
        %2832 = vmatpush1.msra.mxu0 0.0
        %2833 = vmatprep.subr.mxu0 0.0
        %2834 = vmatpush1.msra.mxu0 0.0
        %2835 = vmatprep.subr.mxu0 0.0
        %2836 = vmatpush1.msra.mxu0 0.0
        %2837 = vmatprep.subr.mxu0 0.0
        %2838 = vmatpush1.msra.mxu0 0.0
        %2839 = vmatprep.subr.mxu0 0.0
        %2840 = vmatpush1.msra.mxu0 0.0
        %2841 = vmatprep.subr.mxu0 0.0
        %2842 = vmatpush1.msra.mxu0 0.0
        %2843 = vmatprep.subr.mxu0 0.0
        %2844 = vmatpush1.msra.mxu0 0.0
        %2845 = vmatprep.subr.mxu0 0.0
        %2846 = vmatpush1.msra.mxu0 0.0
        %2847 = vmatprep.subr.mxu0 0.0
        %2848 = vmatpush1.msra.mxu0 0.0
        %2849 = vmatprep.subr.mxu0 0.0
        %2850 = vmatpush1.msra.mxu0 0.0
        %2851 = vmatprep.subr.mxu0 0.0
        %2852 = vmatpush1.msra.mxu0 0.0
        %2853 = vmatprep.subr.mxu0 0.0
        %2854 = vmatpush1.msra.mxu0 0.0
        %2855 = vmatprep.subr.mxu0 0.0
        %2856 = vmatpush1.msra.mxu0 0.0
        %2857 = vmatprep.subr.mxu0 0.0
        %2858 = vmatpush1.msra.mxu0 0.0
        %2859 = vmatprep.subr.mxu0 0.0
        %2860 = vmatpush1.msra.mxu0 0.0
        %2861 = vmatprep.subr.mxu0 0.0
        %2862 = vmatpush1.msra.mxu0 0.0
        %2863 = vmatprep.subr.mxu0 0.0
        %2864 = vmatpush1.msra.mxu0 0.0
        %2865 = vmatprep.subr.mxu0 0.0
        %2866 = vmatpush1.msra.mxu0 0.0
        %2867 = vmatprep.subr.mxu0 0.0
        %2868 = vmatpush1.msra.mxu0 0.0
        %2869 = vmatprep.subr.mxu0 0.0
        %2870 = vmatpush1.msra.mxu0 0.0
        %2871 = vmatprep.mubr.f32.mxu0 0.0
        %2872 = vmatmul.mubr.f32.gmra.mrb[0].mxu0 %v2805
        %v2873 = vpop.f32.mrb[0].mxu0
        %v2874 = vadd.f32 0.0, %v2873
        %v2875 = vpop.f32.mrb[0].mxu0
        %2876 = vdwg.mxu0
        %2878 = vrot.lane.b32.xlu0 %v2544, 8
        %v2879 = vpop.permute.xlu0 %2878
        %2882 = vrot.lane.b32.xlu0 %v2709, 16
        %v2883 = vpop.permute.xlu0 %2882
        %2886 = vrot.lane.b32.xlu0 %v2874, 24
        %v2887 = vpop.permute.xlu0 %2886
        %v2889 = vsel %vm1547, %v2378, %v2879
        %v2890 = vsel %vm2217, %v2889, %v2883
        %v2891 = vsel %vm2219, %v2890, %v2887
        %v2892 = vld [vmem:[%s938] sm:$0xff]
        %v2893 = vld [vmem:[%s938 + $0x8] sm:$0xff]
        %v2894 = vld [vmem:[%s938 + $0x10] sm:$0xff]
        %v2895 = vld [vmem:[%s938 + $0x18] sm:$0xff]
        %v2897 = vsel %vm1239, %v2220, 0
        %v2900 = vsel %vm1239, %v2891, 0
        %2902 = vmatprep.subr.mxu0 0.0
        %2903 = vmatpush1.msra.mxu0 %v2892
        %2904 = vmatprep.subr.mxu0 0.0
        %2905 = vmatpush1.msra.mxu0 %v2893
        %2906 = vmatprep.subr.mxu0 0.0
        %2907 = vmatpush1.msra.mxu0 %v2894
        %2908 = vmatprep.subr.mxu0 0.0
        %2909 = vmatpush1.msra.mxu0 %v2895
        %2910 = vmatprep.subr.mxu0 0.0
        %2911 = vmatpush1.msra.mxu0 0.0
        %2912 = vmatprep.subr.mxu0 0.0
        %2913 = vmatpush1.msra.mxu0 0.0
        %2914 = vmatprep.subr.mxu0 0.0
        %2915 = vmatpush1.msra.mxu0 0.0
        %2916 = vmatprep.subr.mxu0 0.0
        %2917 = vmatpush1.msra.mxu0 0.0
        %2918 = vmatprep.subr.mxu0 0.0
        %2919 = vmatpush1.msra.mxu0 0.0
        %2920 = vmatprep.subr.mxu0 0.0
        %2921 = vmatpush1.msra.mxu0 0.0
        %2922 = vmatprep.subr.mxu0 0.0
        %2923 = vmatpush1.msra.mxu0 0.0
        %2924 = vmatprep.subr.mxu0 0.0
        %2925 = vmatpush1.msra.mxu0 0.0
        %2926 = vmatprep.subr.mxu0 0.0
        %2927 = vmatpush1.msra.mxu0 0.0
        %2928 = vmatprep.subr.mxu0 0.0
        %2929 = vmatpush1.msra.mxu0 0.0
        %2930 = vmatprep.subr.mxu0 0.0
        %2931 = vmatpush1.msra.mxu0 0.0
        %2932 = vmatprep.subr.mxu0 0.0
        %2933 = vmatpush1.msra.mxu0 0.0
        %2934 = vmatprep.subr.mxu0 0.0
        %2935 = vmatpush1.msra.mxu0 0.0
        %2936 = vmatprep.subr.mxu0 0.0
        %2937 = vmatpush1.msra.mxu0 0.0
        %2938 = vmatprep.subr.mxu0 0.0
        %2939 = vmatpush1.msra.mxu0 0.0
        %2940 = vmatprep.subr.mxu0 0.0
        %2941 = vmatpush1.msra.mxu0 0.0
        %2942 = vmatprep.subr.mxu0 0.0
        %2943 = vmatpush1.msra.mxu0 0.0
        %2944 = vmatprep.subr.mxu0 0.0
        %2945 = vmatpush1.msra.mxu0 0.0
        %2946 = vmatprep.subr.mxu0 0.0
        %2947 = vmatpush1.msra.mxu0 0.0
        %2948 = vmatprep.subr.mxu0 0.0
        %2949 = vmatpush1.msra.mxu0 0.0
        %2950 = vmatprep.subr.mxu0 0.0
        %2951 = vmatpush1.msra.mxu0 0.0
        %2952 = vmatprep.subr.mxu0 0.0
        %2953 = vmatpush1.msra.mxu0 0.0
        %2954 = vmatprep.subr.mxu0 0.0
        %2955 = vmatpush1.msra.mxu0 0.0
        %2956 = vmatprep.subr.mxu0 0.0
        %2957 = vmatpush1.msra.mxu0 0.0
        %2958 = vmatprep.subr.mxu0 0.0
        %2959 = vmatpush1.msra.mxu0 0.0
        %2960 = vmatprep.subr.mxu0 0.0
        %2961 = vmatpush1.msra.mxu0 0.0
        %2962 = vmatprep.subr.mxu0 0.0
        %2963 = vmatpush1.msra.mxu0 0.0
        %2964 = vmatprep.subr.mxu0 0.0
        %2965 = vmatpush1.msra.mxu0 0.0
        %2966 = vmatprep.mubr.f32.mxu0 0.0
        %2967 = vmatmul.mubr.f32.gmra.mrb[0].mxu0 %v2897
        %v2968 = vpop.f32.mrb[0].mxu0
        %v2969 = vadd.f32 0.0, %v2968
        %v2970 = vpop.f32.mrb[0].mxu0
        %2971 = vmatprep.mubr.f32.mxu0 0.0
        %2972 = vmatmul.mubr.f32.gmra.mrb[0].mxu0 %v2900
        %v2973 = vpop.f32.mrb[0].mxu0
        %v2974 = vadd.f32 0.0, %v2973
        %v2975 = vpop.f32.mrb[0].mxu0
        %2976 = vdwg.mxu0
        %v2977 = vadd.f32 %v1234, %v2969
        %v2978 = vadd.f32 %v1235, %v2974
        %v2979 = vld [vmem:[%s946] sm:$0x1]
        %v2981 = vlaneseq
        %v2982 = vshrl.u32 %v2981, 7
        %v2983 = vsub.s32 0, %v2982
        %v2984 = vrot.slane %v2979, %v2983
        %v2986 = vadd.f32 %v2977, %v2984
        %v2987 = vadd.f32 %v2978, %v2984
        %v2988 = vld [vmem:[%s954] sm:$0x1]
        %v2989 = vld [vmem:[%s962] sm:$0x1]
        %v2990 = vsel %vm1239, %v2986, 0.0
        %2991 = vadd.xlane.f32.xlu0 %v2990
        %v2992 = vpop.xlane.xlu0 %2991
        %v2993 = vsel %vm1239, %v2987, 0.0
        %2994 = vadd.xlane.f32.xlu0 %v2993
        %v2995 = vpop.xlane.xlu0 %2994
        %v2996 = vmul.f32 %v2992, %v1246
        %v2997 = vmul.f32 %v2995, %v1246
        %v2998 = vsub.f32 %v2986, %v2996
        %v2999 = vsub.f32 %v2987, %v2997
        %v3000 = vmul.f32 %v2998, %v2998
        %v3001 = vmul.f32 %v2999, %v2999
        %v3002 = vsel %vm1239, %v3000, 0.0
        %3003 = vadd.xlane.f32.xlu0 %v3002
        %v3004 = vpop.xlane.xlu0 %3003
        %v3005 = vsel %vm1239, %v3001, 0.0
        %3006 = vadd.xlane.f32.xlu0 %v3005
        %v3007 = vpop.xlane.xlu0 %3006
        %v3008 = vmul.f32 %v3004, %v1246
        %v3009 = vmul.f32 %v3007, %v1246
        %v3010 = vadd.f32 %v3008, 1e-05
        %v3011 = vadd.f32 %v3009, 1e-05
        %v3012 = vrsqrt.pop %v3010
        %v3013 = vrsqrt.pop %v3011
        %v3014 = vmul.f32 %v2998, %v3012
        %v3015 = vmul.f32 %v2999, %v3013
        %v3017 = vlaneseq
        %v3018 = vshrl.u32 %v3017, 7
        %v3019 = vsub.s32 0, %v3018
        %v3020 = vrot.slane %v2988, %v3019
        %v3022 = vmul.f32 %v3014, %v3020
        %v3023 = vmul.f32 %v3015, %v3020
        %v3025 = vlaneseq
        %v3026 = vshrl.u32 %v3025, 7
        %v3027 = vsub.s32 0, %v3026
        %v3028 = vrot.slane %v2989, %v3027
        %v3030 = vadd.f32 %v3022, %v3028
        %v3031 = vadd.f32 %v3023, %v3028
        %v3032 = vld [vmem:[%s971] sm:$0xff]
        %v3033 = vld [vmem:[%s971 + $0x8] sm:$0xff]
        %v3034 = vld [vmem:[%s971 + $0x10] sm:$0xff]
        %v3035 = vld [vmem:[%s971 + $0x18] sm:$0xff]
        %v3036 = vld [vmem:[%s979] sm:$0x1]
        %v3038 = vlaneseq
        %v3039 = vshrl.u32 %v3038, 7
        %v3040 = vsub.s32 0, %v3039
        %v3041 = vrot.slane %v3036, %v3040
        %v3044 = vsel %vm1239, %v3030, 0
        %v3047 = vsel %vm1239, %v3031, 0
        %3049 = vmatprep.subr.mxu0 0.0
        %3050 = vmatpush1.msra.mxu0 %v3032
        %3051 = vmatprep.subr.mxu0 0.0
        %3052 = vmatpush1.msra.mxu0 %v3033
        %3053 = vmatprep.subr.mxu0 0.0
        %3054 = vmatpush1.msra.mxu0 %v3034
        %3055 = vmatprep.subr.mxu0 0.0
        %3056 = vmatpush1.msra.mxu0 %v3035
        %3057 = vmatprep.subr.mxu0 0.0
        %3058 = vmatpush1.msra.mxu0 0.0
        %3059 = vmatprep.subr.mxu0 0.0
        %3060 = vmatpush1.msra.mxu0 0.0
        %3061 = vmatprep.subr.mxu0 0.0
        %3062 = vmatpush1.msra.mxu0 0.0
        %3063 = vmatprep.subr.mxu0 0.0
        %3064 = vmatpush1.msra.mxu0 0.0
        %3065 = vmatprep.subr.mxu0 0.0
        %3066 = vmatpush1.msra.mxu0 0.0
        %3067 = vmatprep.subr.mxu0 0.0
        %3068 = vmatpush1.msra.mxu0 0.0
        %3069 = vmatprep.subr.mxu0 0.0
        %3070 = vmatpush1.msra.mxu0 0.0
        %3071 = vmatprep.subr.mxu0 0.0
        %3072 = vmatpush1.msra.mxu0 0.0
        %3073 = vmatprep.subr.mxu0 0.0
        %3074 = vmatpush1.msra.mxu0 0.0
        %3075 = vmatprep.subr.mxu0 0.0
        %3076 = vmatpush1.msra.mxu0 0.0
        %3077 = vmatprep.subr.mxu0 0.0
        %3078 = vmatpush1.msra.mxu0 0.0
        %3079 = vmatprep.subr.mxu0 0.0
        %3080 = vmatpush1.msra.mxu0 0.0
        %3081 = vmatprep.subr.mxu0 0.0
        %3082 = vmatpush1.msra.mxu0 0.0
        %3083 = vmatprep.subr.mxu0 0.0
        %3084 = vmatpush1.msra.mxu0 0.0
        %3085 = vmatprep.subr.mxu0 0.0
        %3086 = vmatpush1.msra.mxu0 0.0
        %3087 = vmatprep.subr.mxu0 0.0
        %3088 = vmatpush1.msra.mxu0 0.0
        %3089 = vmatprep.subr.mxu0 0.0
        %3090 = vmatpush1.msra.mxu0 0.0
        %3091 = vmatprep.subr.mxu0 0.0
        %3092 = vmatpush1.msra.mxu0 0.0
        %3093 = vmatprep.subr.mxu0 0.0
        %3094 = vmatpush1.msra.mxu0 0.0
        %3095 = vmatprep.subr.mxu0 0.0
        %3096 = vmatpush1.msra.mxu0 0.0
        %3097 = vmatprep.subr.mxu0 0.0
        %3098 = vmatpush1.msra.mxu0 0.0
        %3099 = vmatprep.subr.mxu0 0.0
        %3100 = vmatpush1.msra.mxu0 0.0
        %3101 = vmatprep.subr.mxu0 0.0
        %3102 = vmatpush1.msra.mxu0 0.0
        %3103 = vmatprep.subr.mxu0 0.0
        %3104 = vmatpush1.msra.mxu0 0.0
        %3105 = vmatprep.subr.mxu0 0.0
        %3106 = vmatpush1.msra.mxu0 0.0
        %3107 = vmatprep.subr.mxu0 0.0
        %3108 = vmatpush1.msra.mxu0 0.0
        %3109 = vmatprep.subr.mxu0 0.0
        %3110 = vmatpush1.msra.mxu0 0.0
        %3111 = vmatprep.subr.mxu0 0.0
        %3112 = vmatpush1.msra.mxu0 0.0
        %3113 = vmatprep.mubr.f32.mxu0 0.0
        %3114 = vmatmul.mubr.f32.gmra.mrb[0].mxu0 %v3044
        %v3115 = vpop.f32.mrb[0].mxu0
        %v3116 = vadd.f32 %v3041, %v3115
        %v3117 = vpop.f32.mrb[0].mxu0
        %3118 = vmatprep.mubr.f32.mxu0 0.0
        %3119 = vmatmul.mubr.f32.gmra.mrb[0].mxu0 %v3047
        %v3120 = vpop.f32.mrb[0].mxu0
        %v3121 = vadd.f32 %v3041, %v3120
        %v3122 = vpop.f32.mrb[0].mxu0
        %3123 = vdwg.mxu0
        %v3124 = vmax.f32 %v3116, 0.0
        %v3125 = vmax.f32 %v3121, 0.0
        %v3126 = vld [vmem:[%s1126] sm:$0xff]
        %v3127 = vld [vmem:[%s1126 + $0x8] sm:$0xff]
        %v3128 = vld [vmem:[%s1126 + $0x10] sm:$0xff]
        %v3129 = vld [vmem:[%s1126 + $0x18] sm:$0xff]
        %v3130 = vld [vmem:[%s1126 + $0x20] sm:$0xff]
        %v3131 = vld [vmem:[%s1126 + $0x28] sm:$0xff]
        %v3132 = vld [vmem:[%s1126 + $0x30] sm:$0xff]
        %v3133 = vld [vmem:[%s1126 + $0x38] sm:$0xff]
        %vm3134 = vcmask 523264
        %v3136 = vsel %vm3134, %v3124, 0
        %v3139 = vsel %vm3134, %v3125, 0
        %3141 = vmatprep.subr.mxu0 0.0
        %3142 = vmatpush1.msra.mxu0 %v3126
        %3143 = vmatprep.subr.mxu0 0.0
        %3144 = vmatpush1.msra.mxu0 %v3127
        %3145 = vmatprep.subr.mxu0 0.0
        %3146 = vmatpush1.msra.mxu0 %v3128
        %3147 = vmatprep.subr.mxu0 0.0
        %3148 = vmatpush1.msra.mxu0 %v3129
        %3149 = vmatprep.subr.mxu0 0.0
        %3150 = vmatpush1.msra.mxu0 %v3130
        %3151 = vmatprep.subr.mxu0 0.0
        %3152 = vmatpush1.msra.mxu0 %v3131
        %3153 = vmatprep.subr.mxu0 0.0
        %3154 = vmatpush1.msra.mxu0 %v3132
        %3155 = vmatprep.subr.mxu0 0.0
        %3156 = vmatpush1.msra.mxu0 %v3133
        %3157 = vmatprep.subr.mxu0 0.0
        %3158 = vmatpush1.msra.mxu0 0.0
        %3159 = vmatprep.subr.mxu0 0.0
        %3160 = vmatpush1.msra.mxu0 0.0
        %3161 = vmatprep.subr.mxu0 0.0
        %3162 = vmatpush1.msra.mxu0 0.0
        %3163 = vmatprep.subr.mxu0 0.0
        %3164 = vmatpush1.msra.mxu0 0.0
        %3165 = vmatprep.subr.mxu0 0.0
        %3166 = vmatpush1.msra.mxu0 0.0
        %3167 = vmatprep.subr.mxu0 0.0
        %3168 = vmatpush1.msra.mxu0 0.0
        %3169 = vmatprep.subr.mxu0 0.0
        %3170 = vmatpush1.msra.mxu0 0.0
        %3171 = vmatprep.subr.mxu0 0.0
        %3172 = vmatpush1.msra.mxu0 0.0
        %3173 = vmatprep.subr.mxu0 0.0
        %3174 = vmatpush1.msra.mxu0 0.0
        %3175 = vmatprep.subr.mxu0 0.0
        %3176 = vmatpush1.msra.mxu0 0.0
        %3177 = vmatprep.subr.mxu0 0.0
        %3178 = vmatpush1.msra.mxu0 0.0
        %3179 = vmatprep.subr.mxu0 0.0
        %3180 = vmatpush1.msra.mxu0 0.0
        %3181 = vmatprep.subr.mxu0 0.0
        %3182 = vmatpush1.msra.mxu0 0.0
        %3183 = vmatprep.subr.mxu0 0.0
        %3184 = vmatpush1.msra.mxu0 0.0
        %3185 = vmatprep.subr.mxu0 0.0
        %3186 = vmatpush1.msra.mxu0 0.0
        %3187 = vmatprep.subr.mxu0 0.0
        %3188 = vmatpush1.msra.mxu0 0.0
        %3189 = vmatprep.subr.mxu0 0.0
        %3190 = vmatpush1.msra.mxu0 0.0
        %3191 = vmatprep.subr.mxu0 0.0
        %3192 = vmatpush1.msra.mxu0 0.0
        %3193 = vmatprep.subr.mxu0 0.0
        %3194 = vmatpush1.msra.mxu0 0.0
        %3195 = vmatprep.subr.mxu0 0.0
        %3196 = vmatpush1.msra.mxu0 0.0
        %3197 = vmatprep.subr.mxu0 0.0
        %3198 = vmatpush1.msra.mxu0 0.0
        %3199 = vmatprep.subr.mxu0 0.0
        %3200 = vmatpush1.msra.mxu0 0.0
        %3201 = vmatprep.subr.mxu0 0.0
        %3202 = vmatpush1.msra.mxu0 0.0
        %3203 = vmatprep.subr.mxu0 0.0
        %3204 = vmatpush1.msra.mxu0 0.0
        %3205 = vmatprep.mubr.f32.mxu0 0.0
        %3206 = vmatmul.mubr.f32.gmra.mrb[0].mxu0 %v3136
        %v3207 = vpop.f32.mrb[0].mxu0
        %v3208 = vadd.f32 0.0, %v3207
        %v3209 = vpop.f32.mrb[0].mxu0
        %3210 = vmatprep.mubr.f32.mxu0 0.0
        %3211 = vmatmul.mubr.f32.gmra.mrb[0].mxu0 %v3139
        %v3212 = vpop.f32.mrb[0].mxu0
        %v3213 = vadd.f32 0.0, %v3212
        %v3214 = vpop.f32.mrb[0].mxu0
        %3215 = vdwg.mxu0
        %v3216 = vadd.f32 %v2986, %v3208
        %v3217 = vadd.f32 %v2987, %v3213
        %v3218 = vld [vmem:[%s1129] sm:$0x1]
        %v3220 = vlaneseq
        %v3221 = vshrl.u32 %v3220, 7
        %v3222 = vsub.s32 0, %v3221
        %v3223 = vrot.slane %v3218, %v3222
        %v3225 = vadd.f32 %v3216, %v3223
        %v3226 = vadd.f32 %v3217, %v3223
        %3227 = vst.msk [vmem:[#allocation2] sm:$0xff] %vm1239, %v3225
        %3228 = vst.msk [vmem:[#allocation2 + $0x8] sm:$0xff] %vm1239, %v3226
        %p3229 = scmp.eq.s32.totalorder %s38, 1
        // Predicated region
        $region165: #{tpu_custom_call.1} parent=111 // pred_check
          %p3230 = pneg %p3229
        $region166: #{tpu_custom_call.1} parent=111 // pred_check_branch
          %3232 = sbr.rel (%p3230) target = $region168
        $region167: #{tpu_custom_call.1} parent=111 // pred_region
          %v3233 = vld [vmem:[%s21] sm:$0x1]
          %v3234 = vld [vmem:[%s22] sm:$0x1]
          %v3235 = vsel %vm1239, %v3225, 0.0
          %3236 = vadd.xlane.f32.xlu0 %v3235
          %v3237 = vpop.xlane.xlu0 %3236
          %v3238 = vsel %vm1239, %v3226, 0.0
          %3239 = vadd.xlane.f32.xlu0 %v3238
          %v3240 = vpop.xlane.xlu0 %3239
          %v3241 = vmul.f32 %v3237, %v1246
          %v3242 = vmul.f32 %v3240, %v1246
          %v3243 = vsub.f32 %v3225, %v3241
          %v3244 = vsub.f32 %v3226, %v3242
          %v3245 = vmul.f32 %v3243, %v3243
          %v3246 = vmul.f32 %v3244, %v3244
          %v3247 = vsel %vm1239, %v3245, 0.0
          %3248 = vadd.xlane.f32.xlu0 %v3247
          %v3249 = vpop.xlane.xlu0 %3248
          %v3250 = vsel %vm1239, %v3246, 0.0
          %3251 = vadd.xlane.f32.xlu0 %v3250
          %v3252 = vpop.xlane.xlu0 %3251
          %v3253 = vmul.f32 %v3249, %v1246
          %v3254 = vmul.f32 %v3252, %v1246
          %v3255 = vadd.f32 %v3253, 1e-05
          %v3256 = vadd.f32 %v3254, 1e-05
          %v3257 = vrsqrt.pop %v3255
          %v3258 = vrsqrt.pop %v3256
          %v3259 = vmul.f32 %v3243, %v3257
          %v3260 = vmul.f32 %v3244, %v3258
          %v3262 = vlaneseq
          %v3263 = vshrl.u32 %v3262, 7
          %v3264 = vsub.s32 0, %v3263
          %v3265 = vrot.slane %v3233, %v3264
          %v3267 = vmul.f32 %v3259, %v3265
          %v3268 = vmul.f32 %v3260, %v3265
          %v3270 = vlaneseq
          %v3271 = vshrl.u32 %v3270, 7
          %v3272 = vsub.s32 0, %v3271
          %v3273 = vrot.slane %v3234, %v3272
          %v3275 = vadd.f32 %v3267, %v3273
          %v3276 = vadd.f32 %v3268, %v3273
          %3277 = vst.msk [vmem:[#allocation19] sm:$0xff] %vm1239, %v3275
          %3278 = vst.msk [vmem:[#allocation19 + $0x8] sm:$0xff] %vm1239, %v3276
        $region168: #{tpu_custom_call.1} parent=111 // pred_fallthru
          _
        // Predicated region
        $region169: #{tpu_custom_call.1} parent=111 // pred_check
          %p3279 = pneg %p614
        $region170: #{tpu_custom_call.1} parent=111 // pred_check_branch
          %3281 = sbr.rel (%p3279) target = $region172
        $region171: #{tpu_custom_call.1} parent=111 // pred_region
          %s3283 = ssub.s32 256, 256
          %3284 = vsyncadd [#allocation5], %s3283
          %s3285 = sshll.u32 [#allocation19], 4
          %s3286 = int_to_ptr.vmem [resolvable:$true] %s3285
          %3291 = dma.vmem_to_hbm [thread:$0]  %s3286, 256, %s23, [#allocation5], 128, 128, 8
        $region172: #{tpu_custom_call.1} parent=111 // pred_fallthru
          _
        // Predicated region
        $region173: #{tpu_custom_call.1} parent=111 // pred_check
          %p3292 = pneg %p614
        $region174: #{tpu_custom_call.1} parent=111 // pred_check_branch
          %3294 = sbr.rel (%p3292) target = $region176
        $region175: #{tpu_custom_call.1} parent=111 // pred_region
          %3295 = dma.done [#allocation5], 256
        $region176: #{tpu_custom_call.1} parent=111 // pred_fallthru
          _
      $region112: #{tpu_custom_call.1} parent=5 // pred_fallthru
        _
      %p3296 = scmp.le.s32.totalorder 2, %s33
      // Predicated region
      $region177: #{tpu_custom_call.1} parent=5 // pred_check
        %p3297 = pneg %p3296
      $region178: #{tpu_custom_call.1} parent=5 // pred_check_branch
        %3299 = sbr.rel (%p3297) target = $region180
      $region179: #{tpu_custom_call.1} parent=5 // pred_region
        %s3300 = ssub.s32 %s33, 2
      $region180: #{tpu_custom_call.1} parent=5 // pred_fallthru
        _
    $region6: #{tpu_custom_call.1} parent=1 // loop_footer
      %s37 = sadd.s32 1, %s33
    $region7: #{tpu_custom_call.1} parent=1 // loop_footer_branch
      %32 = sbr.rel target = $region3
    $region8: #{tpu_custom_call.1} parent=1 // loop_exit
      _
    %3301 = vsyncpa [#allocation4], 1
    %s3302 = scalar_lea.sflag [#allocation4], 1
    %3303 = vsyncpa %s3302, 1
    %3304 = vsyncpa [#allocation7], 1
    %3305 = vsyncpa [#allocation10], 1
    %3306 = vsyncpa [#allocation5], 1
    %s3307 = scalar_lea.sflag [#allocation5], 1
    %3308 = vsyncpa %s3307, 1

</llo_original>
